<compile_context>
chip_gen: v5e
topology: v5e:2x2
jax: 0.10.0
libtpu: 0.0.40
codegen_flags: <defaults>
</compile_context>

<pallas_src>
import functools

import jax
import jax.numpy as jnp
import numpy as np
from jax.experimental import pallas as pl
from jax.experimental.pallas import tpu as pltpu


# ----------------------------- helpers ---------------------------------------
def _round_up(n, m):
    return ((n + m - 1) // m) * m


def _zero_index_map(nd):
    def im():
        return (0,) * nd
    return im


# ----------------------------- fused kernel ----------------------------------
def _fused_gru_kernel(*refs, seq_len, batch, hidden_pad, num_layers):
    T, B, Hp = seq_len, batch, hidden_pad
    x_ref, ln_g_ref, ln_b_ref = refs[0], refs[1], refs[2]
    layer_refs = refs[3:3 + 4 * num_layers]
    fcw_ref, fcb_ref, o_ref = refs[3 + 4 * num_layers:]

    # --- LayerNorm over features (rows are (t, b) positions, time-major) ---
    x = x_ref[...].astype(jnp.float32)                       # (T*B, D)
    mean = jnp.mean(x, axis=-1, keepdims=True)
    var = jnp.mean((x - mean) ** 2, axis=-1, keepdims=True)
    seq = (x - mean) * jax.lax.rsqrt(var + 1e-5) * ln_g_ref[...] + ln_b_ref[...]

    h = None
    for l in range(num_layers):
        wih = layer_refs[4 * l][...]                          # (D_in, 3*Hp)
        whh = layer_refs[4 * l + 1][...]                      # (Hp,   3*Hp)
        bi = layer_refs[4 * l + 2][...]                       # (1,    3*Hp)
        bhn = layer_refs[4 * l + 3][...]                      # (1,    Hp)

        # Hoisted, time-parallel input projection: one matmul for all steps.
        gi = jnp.dot(seq, wih, preferred_element_type=jnp.float32) + bi

        h = jnp.zeros((B, Hp), jnp.float32)                   # h0 = zeros
        outs = []
        # Statically unrolled serial recurrence over time.
        for t in range(T):
            gi_t = gi[t * B:(t + 1) * B, :]                   # (B, 3*Hp)
            gh = jnp.dot(h, whh, preferred_element_type=jnp.float32)
            # 128-lane-aligned gate slabs.
            r = jax.nn.sigmoid(gi_t[:, 0:Hp] + gh[:, 0:Hp])
            z = jax.nn.sigmoid(gi_t[:, Hp:2 * Hp] + gh[:, Hp:2 * Hp])
            n = jnp.tanh(gi_t[:, 2 * Hp:3 * Hp] + r * (gh[:, 2 * Hp:3 * Hp] + bhn))
            h = (1.0 - z) * n + z * h
            if l < num_layers - 1:
                outs.append(h)
        if l < num_layers - 1:
            seq = jnp.concatenate(outs, axis=0)               # (T*B, Hp) time-major

    # Final step hidden -> FC logits; only this (B, C) tile goes back to HBM.
    out = jnp.dot(h, fcw_ref[...], preferred_element_type=jnp.float32) + fcb_ref[...]
    o_ref[...] = out.astype(o_ref.dtype)


def gru_forward(x, kparams, *, num_layers):
    # x: (B, T, D) -- matches PyTorch batch_first=True
    B, T, D = x.shape
    Hp = kparams["hidden_pad"]
    C = kparams["fcw"].shape[1]

    # Time-major flatten so each time step is a contiguous sublane block.
    x_flat = jnp.transpose(x, (1, 0, 2)).reshape(T * B, D)

    inputs = [x_flat, kparams["ln_w"], kparams["ln_b"]]
    for l in range(num_layers):
        inputs += [kparams["wih"][l], kparams["whh"][l],
                   kparams["bi"][l], kparams["bhn"][l]]
    inputs += [kparams["fcw"], kparams["fcb"]]

    kernel = functools.partial(
        _fused_gru_kernel, seq_len=T, batch=B, hidden_pad=Hp,
        num_layers=num_layers)

    in_specs = [pl.BlockSpec(a.shape, _zero_index_map(a.ndim)) for a in inputs]
    return pl.pallas_call(
        kernel,
        out_shape=jax.ShapeDtypeStruct((B, C), x.dtype),
        in_specs=in_specs,
        out_specs=pl.BlockSpec((B, C), lambda: (0, 0)),
    )(*inputs)


# ----------------------------- param packing ---------------------------------
def pack_params(params, hidden_size, num_layers):
    """Pad each gate slab to a 128-lane boundary and pre-combine biases."""
    H = hidden_size
    Hp = _round_up(H, 128)
    kp = {"wih": [], "whh": [], "bi": [], "bhn": []}
    for l in range(num_layers):
        w_ih = params["w_ih_t"][l]                 # (d_in, 3H)
        w_hh = params["w_hh_t"][l]                 # (H,    3H)
        b_ih = params["b_ih"][l][0]                # (3H,)
        b_hh = params["b_hh"][l][0]                # (3H,)
        d_in = w_ih.shape[0]
        d_in_p = d_in if l == 0 else Hp            # layer>0 input is padded hidden

        wih_p = jnp.zeros((d_in_p, 3 * Hp), jnp.float32)
        whh_p = jnp.zeros((Hp, 3 * Hp), jnp.float32)
        bi_p = jnp.zeros((1, 3 * Hp), jnp.float32)
        for g in range(3):
            wih_p = wih_p.at[:d_in, g * Hp:g * Hp + H].set(w_ih[:, g * H:(g + 1) * H])
            whh_p = whh_p.at[:H, g * Hp:g * Hp + H].set(w_hh[:, g * H:(g + 1) * H])
        # r/z gates: fold b_hh into the hoisted input-path bias; n gate: b_ih only.
        bi_p = bi_p.at[0, 0 * Hp:0 * Hp + H].set(b_ih[0:H] + b_hh[0:H])
        bi_p = bi_p.at[0, 1 * Hp:1 * Hp + H].set(b_ih[H:2 * H] + b_hh[H:2 * H])
        bi_p = bi_p.at[0, 2 * Hp:2 * Hp + H].set(b_ih[2 * H:3 * H])
        bhn_p = jnp.zeros((1, Hp), jnp.float32).at[0, :H].set(b_hh[2 * H:3 * H])

        kp["wih"].append(wih_p)
        kp["whh"].append(whh_p)
        kp["bi"].append(bi_p)
        kp["bhn"].append(bhn_p)

    C = params["fc_w_t"].shape[1]
    kp["fcw"] = jnp.zeros((Hp, C), jnp.float32).at[:H, :].set(params["fc_w_t"])
    kp["fcb"] = params["fc_b"]
    kp["ln_w"] = params["ln_w"]
    kp["ln_b"] = params["ln_b"]
    kp["hidden_pad"] = Hp
    return kp


# ----------------------------- Pure-JAX reference -----------------------------
def gru_forward_ref(x, params, *, hidden_size, num_layers):
    mean = jnp.mean(x, axis=-1, keepdims=True)
    var = jnp.mean((x - mean) ** 2, axis=-1, keepdims=True)
    xn = (x - mean) / jnp.sqrt(var + 1e-5) * params["ln_w"][0] + params["ln_b"][0]
    B, T, _ = x.shape
    H = hidden_size
    seq = xn
    for l in range(num_layers):
        h = jnp.zeros((B, H), jnp.float32)
        outs = []
        for t in range(T):
            gi = seq[:, t, :] @ params["w_ih_t"][l] + params["b_ih"][l]
            gh = h @ params["w_hh_t"][l] + params["b_hh"][l]
            r = jax.nn.sigmoid(gi[:, :H] + gh[:, :H])
            z = jax.nn.sigmoid(gi[:, H:2 * H] + gh[:, H:2 * H])
            n = jnp.tanh(gi[:, 2 * H:] + r * gh[:, 2 * H:])
            h = (1 - z) * n + z * h
            outs.append(h)
        seq = jnp.stack(outs, axis=1)
    return seq[:, -1, :] @ params["fc_w_t"] + params["fc_b"][0]


# ----------------------------- Param init --------------------------------------
def init_params(key, input_size, hidden_size, num_layers, num_classes):
    params = {
        "ln_w": jnp.ones((1, input_size), jnp.float32),
        "ln_b": jnp.zeros((1, input_size), jnp.float32),
        "w_ih_t": [], "w_hh_t": [], "b_ih": [], "b_hh": [],
    }
    k = 1.0 / np.sqrt(hidden_size)
    for l in range(num_layers):
        d_in = input_size if l == 0 else hidden_size
        key, k1, k2, k3, k4 = jax.random.split(key, 5)
        params["w_ih_t"].append(
            jax.random.uniform(k1, (d_in, 3 * hidden_size), jnp.float32, -k, k))
        params["w_hh_t"].append(
            jax.random.uniform(k2, (hidden_size, 3 * hidden_size), jnp.float32, -k, k))
        params["b_ih"].append(
            jax.random.uniform(k3, (1, 3 * hidden_size), jnp.float32, -k, k))
        params["b_hh"].append(
            jax.random.uniform(k4, (1, 3 * hidden_size), jnp.float32, -k, k))
    kf = 1.0 / np.sqrt(hidden_size)
    key, k1, k2 = jax.random.split(key, 3)
    params["fc_w_t"] = jax.random.uniform(
        k1, (hidden_size, num_classes), jnp.float32, -kf, kf)
    params["fc_b"] = jax.random.uniform(k2, (1, num_classes), jnp.float32, -kf, kf)
    return params


if __name__ == "__main__":
    batch, seq_len, input_size = 2, 8, 16
    hidden_size, num_layers, num_classes = 32, 2, 10

    key = jax.random.PRNGKey(0)
    key, kx = jax.random.split(key)
    x = jax.random.normal(kx, (batch, seq_len, input_size), jnp.float32)
    params = init_params(key, input_size, hidden_size, num_layers, num_classes)
    kparams = pack_params(params, hidden_size, num_layers)

    out = gru_forward(x, kparams, num_layers=num_layers)
    out = jax.block_until_ready(out)

    ref = gru_forward_ref(x, params, hidden_size=hidden_size, num_layers=num_layers)
    np.testing.assert_allclose(np.asarray(out), np.asarray(ref), atol=2e-4, rtol=2e-4)

    assert out.shape == (batch, num_classes)
    print("KERNEL_OK")
</pallas_src>

<mosaic_0001>
module attributes {stable_mosaic.version = 11 : i64} {
  func.func @_fused_gru_kernel(%arg0: memref<16x16xf32, #tpu.memory_space<vmem>>, %arg1: memref<1x16xf32, #tpu.memory_space<vmem>>, %arg2: memref<1x16xf32, #tpu.memory_space<vmem>>, %arg3: memref<16x384xf32, #tpu.memory_space<vmem>>, %arg4: memref<128x384xf32, #tpu.memory_space<vmem>>, %arg5: memref<1x384xf32, #tpu.memory_space<vmem>>, %arg6: memref<1x128xf32, #tpu.memory_space<vmem>>, %arg7: memref<128x384xf32, #tpu.memory_space<vmem>>, %arg8: memref<128x384xf32, #tpu.memory_space<vmem>>, %arg9: memref<1x384xf32, #tpu.memory_space<vmem>>, %arg10: memref<1x128xf32, #tpu.memory_space<vmem>>, %arg11: memref<128x10xf32, #tpu.memory_space<vmem>>, %arg12: memref<1x10xf32, #tpu.memory_space<vmem>>, %arg13: memref<2x10xf32, #tpu.memory_space<vmem>>) attributes {dimension_semantics = [], scalar_prefetch = 0 : i64, scratch_operands = 0 : i64, tpu.core_type = #tpu.core_type<tc>} {
    %c0 = arith.constant 0 : index
    %c0_0 = arith.constant 0 : index
    %0 = vector.load %arg0[%c0, %c0_0] : memref<16x16xf32, #tpu.memory_space<vmem>>, vector<16x16xf32>
    %cst = arith.constant dense<0.000000e+00> : vector<16xf32>
    %1 = vector.multi_reduction <add>, %0, %cst [1] : vector<16x16xf32> to vector<16xf32>
    %2 = vector.shape_cast %1 : vector<16xf32> to vector<16x1xf32>
    %cst_1 = arith.constant 1.600000e+01 : f32
    %3 = vector.broadcast %cst_1 : f32 to vector<16x1xf32>
    %4 = arith.divf %2, %3 : vector<16x1xf32>
    %5 = vector.broadcast %4 : vector<16x1xf32> to vector<16x16xf32>
    %6 = arith.subf %0, %5 : vector<16x16xf32>
    %7 = arith.mulf %6, %6 : vector<16x16xf32>
    %cst_2 = arith.constant dense<0.000000e+00> : vector<16xf32>
    %8 = vector.multi_reduction <add>, %7, %cst_2 [1] : vector<16x16xf32> to vector<16xf32>
    %9 = vector.shape_cast %8 : vector<16xf32> to vector<16x1xf32>
    %cst_3 = arith.constant 1.600000e+01 : f32
    %10 = vector.broadcast %cst_3 : f32 to vector<16x1xf32>
    %11 = arith.divf %9, %10 : vector<16x1xf32>
    %12 = vector.broadcast %4 : vector<16x1xf32> to vector<16x16xf32>
    %13 = arith.subf %0, %12 : vector<16x16xf32>
    %cst_4 = arith.constant 9.99999974E-6 : f32
    %14 = vector.broadcast %cst_4 : f32 to vector<16x1xf32>
    %15 = arith.addf %11, %14 : vector<16x1xf32>
    %16 = math.rsqrt %15 : vector<16x1xf32>
    %17 = vector.broadcast %16 : vector<16x1xf32> to vector<16x16xf32>
    %18 = arith.mulf %13, %17 : vector<16x16xf32>
    %c0_5 = arith.constant 0 : index
    %c0_6 = arith.constant 0 : index
    %19 = vector.load %arg1[%c0_5, %c0_6] : memref<1x16xf32, #tpu.memory_space<vmem>>, vector<1x16xf32>
    %20 = vector.broadcast %19 : vector<1x16xf32> to vector<16x16xf32>
    %21 = arith.mulf %18, %20 : vector<16x16xf32>
    %c0_7 = arith.constant 0 : index
    %c0_8 = arith.constant 0 : index
    %22 = vector.load %arg2[%c0_7, %c0_8] : memref<1x16xf32, #tpu.memory_space<vmem>>, vector<1x16xf32>
    %23 = vector.broadcast %22 : vector<1x16xf32> to vector<16x16xf32>
    %24 = arith.addf %21, %23 : vector<16x16xf32>
    %c0_9 = arith.constant 0 : index
    %c0_10 = arith.constant 0 : index
    %25 = vector.load %arg3[%c0_9, %c0_10] : memref<16x384xf32, #tpu.memory_space<vmem>>, vector<16x384xf32>
    %c0_11 = arith.constant 0 : index
    %c0_12 = arith.constant 0 : index
    %26 = vector.load %arg4[%c0_11, %c0_12] : memref<128x384xf32, #tpu.memory_space<vmem>>, vector<128x384xf32>
    %c0_13 = arith.constant 0 : index
    %c0_14 = arith.constant 0 : index
    %27 = vector.load %arg5[%c0_13, %c0_14] : memref<1x384xf32, #tpu.memory_space<vmem>>, vector<1x384xf32>
    %c0_15 = arith.constant 0 : index
    %c0_16 = arith.constant 0 : index
    %28 = vector.load %arg6[%c0_15, %c0_16] : memref<1x128xf32, #tpu.memory_space<vmem>>, vector<1x128xf32>
    %cst_17 = arith.constant dense<0.000000e+00> : vector<16x384xf32>
    %29 = tpu.matmul %24, %25, %cst_17 {dimension_numbers = #tpu.dot_dimension_numbers<[1], [0], [0], [1], [0, 0, 1, 1], [], []>} : vector<16x16xf32>, vector<16x384xf32>, vector<16x384xf32> -> vector<16x384xf32>
    %30 = vector.broadcast %27 : vector<1x384xf32> to vector<16x384xf32>
    %31 = arith.addf %29, %30 : vector<16x384xf32>
    %cst_18 = arith.constant 0.000000e+00 : f32
    %32 = vector.broadcast %cst_18 : f32 to vector<2x128xf32>
    %33 = vector.extract_strided_slice %31 {offsets = [0, 0], sizes = [2, 384], strides = [1, 1]} : vector<16x384xf32> to vector<2x384xf32>
    %cst_19 = arith.constant dense<0.000000e+00> : vector<2x384xf32>
    %34 = tpu.matmul %32, %26, %cst_19 {dimension_numbers = #tpu.dot_dimension_numbers<[1], [0], [0], [1], [0, 0, 1, 1], [], []>} : vector<2x128xf32>, vector<128x384xf32>, vector<2x384xf32> -> vector<2x384xf32>
    %35 = vector.extract_strided_slice %33 {offsets = [0, 0], sizes = [2, 128], strides = [1, 1]} : vector<2x384xf32> to vector<2x128xf32>
    %36 = vector.extract_strided_slice %34 {offsets = [0, 0], sizes = [2, 128], strides = [1, 1]} : vector<2x384xf32> to vector<2x128xf32>
    %37 = arith.addf %35, %36 : vector<2x128xf32>
    %38 = arith.negf %37 : vector<2x128xf32>
    %39 = math.exp %38 : vector<2x128xf32>
    %cst_20 = arith.constant 1.000000e+00 : f32
    %40 = vector.broadcast %cst_20 : f32 to vector<2x128xf32>
    %41 = arith.addf %40, %39 : vector<2x128xf32>
    %42 = arith.divf %40, %41 : vector<2x128xf32>
    %43 = vector.extract_strided_slice %33 {offsets = [0, 128], sizes = [2, 128], strides = [1, 1]} : vector<2x384xf32> to vector<2x128xf32>
    %44 = vector.extract_strided_slice %34 {offsets = [0, 128], sizes = [2, 128], strides = [1, 1]} : vector<2x384xf32> to vector<2x128xf32>
    %45 = arith.addf %43, %44 : vector<2x128xf32>
    %46 = arith.negf %45 : vector<2x128xf32>
    %47 = math.exp %46 : vector<2x128xf32>
    %cst_21 = arith.constant 1.000000e+00 : f32
    %48 = vector.broadcast %cst_21 : f32 to vector<2x128xf32>
    %49 = arith.addf %48, %47 : vector<2x128xf32>
    %50 = arith.divf %48, %49 : vector<2x128xf32>
    %51 = vector.extract_strided_slice %33 {offsets = [0, 256], sizes = [2, 128], strides = [1, 1]} : vector<2x384xf32> to vector<2x128xf32>
    %52 = vector.extract_strided_slice %34 {offsets = [0, 256], sizes = [2, 128], strides = [1, 1]} : vector<2x384xf32> to vector<2x128xf32>
    %53 = vector.broadcast %28 : vector<1x128xf32> to vector<2x128xf32>
    %54 = arith.addf %52, %53 : vector<2x128xf32>
    %55 = arith.mulf %42, %54 : vector<2x128xf32>
    %56 = arith.addf %51, %55 : vector<2x128xf32>
    %57 = math.tanh %56 : vector<2x128xf32>
    %cst_22 = arith.constant 1.000000e+00 : f32
    %58 = vector.broadcast %cst_22 : f32 to vector<2x128xf32>
    %59 = arith.subf %58, %50 : vector<2x128xf32>
    %60 = arith.mulf %59, %57 : vector<2x128xf32>
    %61 = arith.mulf %50, %32 : vector<2x128xf32>
    %62 = arith.addf %60, %61 : vector<2x128xf32>
    %63 = vector.extract_strided_slice %31 {offsets = [2, 0], sizes = [2, 384], strides = [1, 1]} : vector<16x384xf32> to vector<2x384xf32>
    %cst_23 = arith.constant dense<0.000000e+00> : vector<2x384xf32>
    %64 = tpu.matmul %62, %26, %cst_23 {dimension_numbers = #tpu.dot_dimension_numbers<[1], [0], [0], [1], [0, 0, 1, 1], [], []>} : vector<2x128xf32>, vector<128x384xf32>, vector<2x384xf32> -> vector<2x384xf32>
    %65 = vector.extract_strided_slice %63 {offsets = [0, 0], sizes = [2, 128], strides = [1, 1]} : vector<2x384xf32> to vector<2x128xf32>
    %66 = vector.extract_strided_slice %64 {offsets = [0, 0], sizes = [2, 128], strides = [1, 1]} : vector<2x384xf32> to vector<2x128xf32>
    %67 = arith.addf %65, %66 : vector<2x128xf32>
    %68 = arith.negf %67 : vector<2x128xf32>
    %69 = math.exp %68 : vector<2x128xf32>
    %cst_24 = arith.constant 1.000000e+00 : f32
    %70 = vector.broadcast %cst_24 : f32 to vector<2x128xf32>
    %71 = arith.addf %70, %69 : vector<2x128xf32>
    %72 = arith.divf %70, %71 : vector<2x128xf32>
    %73 = vector.extract_strided_slice %63 {offsets = [0, 128], sizes = [2, 128], strides = [1, 1]} : vector<2x384xf32> to vector<2x128xf32>
    %74 = vector.extract_strided_slice %64 {offsets = [0, 128], sizes = [2, 128], strides = [1, 1]} : vector<2x384xf32> to vector<2x128xf32>
    %75 = arith.addf %73, %74 : vector<2x128xf32>
    %76 = arith.negf %75 : vector<2x128xf32>
    %77 = math.exp %76 : vector<2x128xf32>
    %cst_25 = arith.constant 1.000000e+00 : f32
    %78 = vector.broadcast %cst_25 : f32 to vector<2x128xf32>
    %79 = arith.addf %78, %77 : vector<2x128xf32>
    %80 = arith.divf %78, %79 : vector<2x128xf32>
    %81 = vector.extract_strided_slice %63 {offsets = [0, 256], sizes = [2, 128], strides = [1, 1]} : vector<2x384xf32> to vector<2x128xf32>
    %82 = vector.extract_strided_slice %64 {offsets = [0, 256], sizes = [2, 128], strides = [1, 1]} : vector<2x384xf32> to vector<2x128xf32>
    %83 = vector.broadcast %28 : vector<1x128xf32> to vector<2x128xf32>
    %84 = arith.addf %82, %83 : vector<2x128xf32>
    %85 = arith.mulf %72, %84 : vector<2x128xf32>
    %86 = arith.addf %81, %85 : vector<2x128xf32>
    %87 = math.tanh %86 : vector<2x128xf32>
    %cst_26 = arith.constant 1.000000e+00 : f32
    %88 = vector.broadcast %cst_26 : f32 to vector<2x128xf32>
    %89 = arith.subf %88, %80 : vector<2x128xf32>
    %90 = arith.mulf %89, %87 : vector<2x128xf32>
    %91 = arith.mulf %80, %62 : vector<2x128xf32>
    %92 = arith.addf %90, %91 : vector<2x128xf32>
    %93 = vector.extract_strided_slice %31 {offsets = [4, 0], sizes = [2, 384], strides = [1, 1]} : vector<16x384xf32> to vector<2x384xf32>
    %cst_27 = arith.constant dense<0.000000e+00> : vector<2x384xf32>
    %94 = tpu.matmul %92, %26, %cst_27 {dimension_numbers = #tpu.dot_dimension_numbers<[1], [0], [0], [1], [0, 0, 1, 1], [], []>} : vector<2x128xf32>, vector<128x384xf32>, vector<2x384xf32> -> vector<2x384xf32>
    %95 = vector.extract_strided_slice %93 {offsets = [0, 0], sizes = [2, 128], strides = [1, 1]} : vector<2x384xf32> to vector<2x128xf32>
    %96 = vector.extract_strided_slice %94 {offsets = [0, 0], sizes = [2, 128], strides = [1, 1]} : vector<2x384xf32> to vector<2x128xf32>
    %97 = arith.addf %95, %96 : vector<2x128xf32>
    %98 = arith.negf %97 : vector<2x128xf32>
    %99 = math.exp %98 : vector<2x128xf32>
    %cst_28 = arith.constant 1.000000e+00 : f32
    %100 = vector.broadcast %cst_28 : f32 to vector<2x128xf32>
    %101 = arith.addf %100, %99 : vector<2x128xf32>
    %102 = arith.divf %100, %101 : vector<2x128xf32>
    %103 = vector.extract_strided_slice %93 {offsets = [0, 128], sizes = [2, 128], strides = [1, 1]} : vector<2x384xf32> to vector<2x128xf32>
    %104 = vector.extract_strided_slice %94 {offsets = [0, 128], sizes = [2, 128], strides = [1, 1]} : vector<2x384xf32> to vector<2x128xf32>
    %105 = arith.addf %103, %104 : vector<2x128xf32>
    %106 = arith.negf %105 : vector<2x128xf32>
    %107 = math.exp %106 : vector<2x128xf32>
    %cst_29 = arith.constant 1.000000e+00 : f32
    %108 = vector.broadcast %cst_29 : f32 to vector<2x128xf32>
    %109 = arith.addf %108, %107 : vector<2x128xf32>
    %110 = arith.divf %108, %109 : vector<2x128xf32>
    %111 = vector.extract_strided_slice %93 {offsets = [0, 256], sizes = [2, 128], strides = [1, 1]} : vector<2x384xf32> to vector<2x128xf32>
    %112 = vector.extract_strided_slice %94 {offsets = [0, 256], sizes = [2, 128], strides = [1, 1]} : vector<2x384xf32> to vector<2x128xf32>
    %113 = vector.broadcast %28 : vector<1x128xf32> to vector<2x128xf32>
    %114 = arith.addf %112, %113 : vector<2x128xf32>
    %115 = arith.mulf %102, %114 : vector<2x128xf32>
    %116 = arith.addf %111, %115 : vector<2x128xf32>
    %117 = math.tanh %116 : vector<2x128xf32>
    %cst_30 = arith.constant 1.000000e+00 : f32
    %118 = vector.broadcast %cst_30 : f32 to vector<2x128xf32>
    %119 = arith.subf %118, %110 : vector<2x128xf32>
    %120 = arith.mulf %119, %117 : vector<2x128xf32>
    %121 = arith.mulf %110, %92 : vector<2x128xf32>
    %122 = arith.addf %120, %121 : vector<2x128xf32>
    %123 = vector.extract_strided_slice %31 {offsets = [6, 0], sizes = [2, 384], strides = [1, 1]} : vector<16x384xf32> to vector<2x384xf32>
    %cst_31 = arith.constant dense<0.000000e+00> : vector<2x384xf32>
    %124 = tpu.matmul %122, %26, %cst_31 {dimension_numbers = #tpu.dot_dimension_numbers<[1], [0], [0], [1], [0, 0, 1, 1], [], []>} : vector<2x128xf32>, vector<128x384xf32>, vector<2x384xf32> -> vector<2x384xf32>
    %125 = vector.extract_strided_slice %123 {offsets = [0, 0], sizes = [2, 128], strides = [1, 1]} : vector<2x384xf32> to vector<2x128xf32>
    %126 = vector.extract_strided_slice %124 {offsets = [0, 0], sizes = [2, 128], strides = [1, 1]} : vector<2x384xf32> to vector<2x128xf32>
    %127 = arith.addf %125, %126 : vector<2x128xf32>
    %128 = arith.negf %127 : vector<2x128xf32>
    %129 = math.exp %128 : vector<2x128xf32>
    %cst_32 = arith.constant 1.000000e+00 : f32
    %130 = vector.broadcast %cst_32 : f32 to vector<2x128xf32>
    %131 = arith.addf %130, %129 : vector<2x128xf32>
    %132 = arith.divf %130, %131 : vector<2x128xf32>
    %133 = vector.extract_strided_slice %123 {offsets = [0, 128], sizes = [2, 128], strides = [1, 1]} : vector<2x384xf32> to vector<2x128xf32>
    %134 = vector.extract_strided_slice %124 {offsets = [0, 128], sizes = [2, 128], strides = [1, 1]} : vector<2x384xf32> to vector<2x128xf32>
    %135 = arith.addf %133, %134 : vector<2x128xf32>
    %136 = arith.negf %135 : vector<2x128xf32>
    %137 = math.exp %136 : vector<2x128xf32>
    %cst_33 = arith.constant 1.000000e+00 : f32
    %138 = vector.broadcast %cst_33 : f32 to vector<2x128xf32>
    %139 = arith.addf %138, %137 : vector<2x128xf32>
    %140 = arith.divf %138, %139 : vector<2x128xf32>
    %141 = vector.extract_strided_slice %123 {offsets = [0, 256], sizes = [2, 128], strides = [1, 1]} : vector<2x384xf32> to vector<2x128xf32>
    %142 = vector.extract_strided_slice %124 {offsets = [0, 256], sizes = [2, 128], strides = [1, 1]} : vector<2x384xf32> to vector<2x128xf32>
    %143 = vector.broadcast %28 : vector<1x128xf32> to vector<2x128xf32>
    %144 = arith.addf %142, %143 : vector<2x128xf32>
    %145 = arith.mulf %132, %144 : vector<2x128xf32>
    %146 = arith.addf %141, %145 : vector<2x128xf32>
    %147 = math.tanh %146 : vector<2x128xf32>
    %cst_34 = arith.constant 1.000000e+00 : f32
    %148 = vector.broadcast %cst_34 : f32 to vector<2x128xf32>
    %149 = arith.subf %148, %140 : vector<2x128xf32>
    %150 = arith.mulf %149, %147 : vector<2x128xf32>
    %151 = arith.mulf %140, %122 : vector<2x128xf32>
    %152 = arith.addf %150, %151 : vector<2x128xf32>
    %153 = vector.extract_strided_slice %31 {offsets = [8, 0], sizes = [2, 384], strides = [1, 1]} : vector<16x384xf32> to vector<2x384xf32>
    %cst_35 = arith.constant dense<0.000000e+00> : vector<2x384xf32>
    %154 = tpu.matmul %152, %26, %cst_35 {dimension_numbers = #tpu.dot_dimension_numbers<[1], [0], [0], [1], [0, 0, 1, 1], [], []>} : vector<2x128xf32>, vector<128x384xf32>, vector<2x384xf32> -> vector<2x384xf32>
    %155 = vector.extract_strided_slice %153 {offsets = [0, 0], sizes = [2, 128], strides = [1, 1]} : vector<2x384xf32> to vector<2x128xf32>
    %156 = vector.extract_strided_slice %154 {offsets = [0, 0], sizes = [2, 128], strides = [1, 1]} : vector<2x384xf32> to vector<2x128xf32>
    %157 = arith.addf %155, %156 : vector<2x128xf32>
    %158 = arith.negf %157 : vector<2x128xf32>
    %159 = math.exp %158 : vector<2x128xf32>
    %cst_36 = arith.constant 1.000000e+00 : f32
    %160 = vector.broadcast %cst_36 : f32 to vector<2x128xf32>
    %161 = arith.addf %160, %159 : vector<2x128xf32>
    %162 = arith.divf %160, %161 : vector<2x128xf32>
    %163 = vector.extract_strided_slice %153 {offsets = [0, 128], sizes = [2, 128], strides = [1, 1]} : vector<2x384xf32> to vector<2x128xf32>
    %164 = vector.extract_strided_slice %154 {offsets = [0, 128], sizes = [2, 128], strides = [1, 1]} : vector<2x384xf32> to vector<2x128xf32>
    %165 = arith.addf %163, %164 : vector<2x128xf32>
    %166 = arith.negf %165 : vector<2x128xf32>
    %167 = math.exp %166 : vector<2x128xf32>
    %cst_37 = arith.constant 1.000000e+00 : f32
    %168 = vector.broadcast %cst_37 : f32 to vector<2x128xf32>
    %169 = arith.addf %168, %167 : vector<2x128xf32>
    %170 = arith.divf %168, %169 : vector<2x128xf32>
    %171 = vector.extract_strided_slice %153 {offsets = [0, 256], sizes = [2, 128], strides = [1, 1]} : vector<2x384xf32> to vector<2x128xf32>
    %172 = vector.extract_strided_slice %154 {offsets = [0, 256], sizes = [2, 128], strides = [1, 1]} : vector<2x384xf32> to vector<2x128xf32>
    %173 = vector.broadcast %28 : vector<1x128xf32> to vector<2x128xf32>
    %174 = arith.addf %172, %173 : vector<2x128xf32>
    %175 = arith.mulf %162, %174 : vector<2x128xf32>
    %176 = arith.addf %171, %175 : vector<2x128xf32>
    %177 = math.tanh %176 : vector<2x128xf32>
    %cst_38 = arith.constant 1.000000e+00 : f32
    %178 = vector.broadcast %cst_38 : f32 to vector<2x128xf32>
    %179 = arith.subf %178, %170 : vector<2x128xf32>
    %180 = arith.mulf %179, %177 : vector<2x128xf32>
    %181 = arith.mulf %170, %152 : vector<2x128xf32>
    %182 = arith.addf %180, %181 : vector<2x128xf32>
    %183 = vector.extract_strided_slice %31 {offsets = [10, 0], sizes = [2, 384], strides = [1, 1]} : vector<16x384xf32> to vector<2x384xf32>
    %cst_39 = arith.constant dense<0.000000e+00> : vector<2x384xf32>
    %184 = tpu.matmul %182, %26, %cst_39 {dimension_numbers = #tpu.dot_dimension_numbers<[1], [0], [0], [1], [0, 0, 1, 1], [], []>} : vector<2x128xf32>, vector<128x384xf32>, vector<2x384xf32> -> vector<2x384xf32>
    %185 = vector.extract_strided_slice %183 {offsets = [0, 0], sizes = [2, 128], strides = [1, 1]} : vector<2x384xf32> to vector<2x128xf32>
    %186 = vector.extract_strided_slice %184 {offsets = [0, 0], sizes = [2, 128], strides = [1, 1]} : vector<2x384xf32> to vector<2x128xf32>
    %187 = arith.addf %185, %186 : vector<2x128xf32>
    %188 = arith.negf %187 : vector<2x128xf32>
    %189 = math.exp %188 : vector<2x128xf32>
    %cst_40 = arith.constant 1.000000e+00 : f32
    %190 = vector.broadcast %cst_40 : f32 to vector<2x128xf32>
    %191 = arith.addf %190, %189 : vector<2x128xf32>
    %192 = arith.divf %190, %191 : vector<2x128xf32>
    %193 = vector.extract_strided_slice %183 {offsets = [0, 128], sizes = [2, 128], strides = [1, 1]} : vector<2x384xf32> to vector<2x128xf32>
    %194 = vector.extract_strided_slice %184 {offsets = [0, 128], sizes = [2, 128], strides = [1, 1]} : vector<2x384xf32> to vector<2x128xf32>
    %195 = arith.addf %193, %194 : vector<2x128xf32>
    %196 = arith.negf %195 : vector<2x128xf32>
    %197 = math.exp %196 : vector<2x128xf32>
    %cst_41 = arith.constant 1.000000e+00 : f32
    %198 = vector.broadcast %cst_41 : f32 to vector<2x128xf32>
    %199 = arith.addf %198, %197 : vector<2x128xf32>
    %200 = arith.divf %198, %199 : vector<2x128xf32>
    %201 = vector.extract_strided_slice %183 {offsets = [0, 256], sizes = [2, 128], strides = [1, 1]} : vector<2x384xf32> to vector<2x128xf32>
    %202 = vector.extract_strided_slice %184 {offsets = [0, 256], sizes = [2, 128], strides = [1, 1]} : vector<2x384xf32> to vector<2x128xf32>
    %203 = vector.broadcast %28 : vector<1x128xf32> to vector<2x128xf32>
    %204 = arith.addf %202, %203 : vector<2x128xf32>
    %205 = arith.mulf %192, %204 : vector<2x128xf32>
    %206 = arith.addf %201, %205 : vector<2x128xf32>
    %207 = math.tanh %206 : vector<2x128xf32>
    %cst_42 = arith.constant 1.000000e+00 : f32
    %208 = vector.broadcast %cst_42 : f32 to vector<2x128xf32>
    %209 = arith.subf %208, %200 : vector<2x128xf32>
    %210 = arith.mulf %209, %207 : vector<2x128xf32>
    %211 = arith.mulf %200, %182 : vector<2x128xf32>
    %212 = arith.addf %210, %211 : vector<2x128xf32>
    %213 = vector.extract_strided_slice %31 {offsets = [12, 0], sizes = [2, 384], strides = [1, 1]} : vector<16x384xf32> to vector<2x384xf32>
    %cst_43 = arith.constant dense<0.000000e+00> : vector<2x384xf32>
    %214 = tpu.matmul %212, %26, %cst_43 {dimension_numbers = #tpu.dot_dimension_numbers<[1], [0], [0], [1], [0, 0, 1, 1], [], []>} : vector<2x128xf32>, vector<128x384xf32>, vector<2x384xf32> -> vector<2x384xf32>
    %215 = vector.extract_strided_slice %213 {offsets = [0, 0], sizes = [2, 128], strides = [1, 1]} : vector<2x384xf32> to vector<2x128xf32>
    %216 = vector.extract_strided_slice %214 {offsets = [0, 0], sizes = [2, 128], strides = [1, 1]} : vector<2x384xf32> to vector<2x128xf32>
    %217 = arith.addf %215, %216 : vector<2x128xf32>
    %218 = arith.negf %217 : vector<2x128xf32>
    %219 = math.exp %218 : vector<2x128xf32>
    %cst_44 = arith.constant 1.000000e+00 : f32
    %220 = vector.broadcast %cst_44 : f32 to vector<2x128xf32>
    %221 = arith.addf %220, %219 : vector<2x128xf32>
    %222 = arith.divf %220, %221 : vector<2x128xf32>
    %223 = vector.extract_strided_slice %213 {offsets = [0, 128], sizes = [2, 128], strides = [1, 1]} : vector<2x384xf32> to vector<2x128xf32>
    %224 = vector.extract_strided_slice %214 {offsets = [0, 128], sizes = [2, 128], strides = [1, 1]} : vector<2x384xf32> to vector<2x128xf32>
    %225 = arith.addf %223, %224 : vector<2x128xf32>
    %226 = arith.negf %225 : vector<2x128xf32>
    %227 = math.exp %226 : vector<2x128xf32>
    %cst_45 = arith.constant 1.000000e+00 : f32
    %228 = vector.broadcast %cst_45 : f32 to vector<2x128xf32>
    %229 = arith.addf %228, %227 : vector<2x128xf32>
    %230 = arith.divf %228, %229 : vector<2x128xf32>
    %231 = vector.extract_strided_slice %213 {offsets = [0, 256], sizes = [2, 128], strides = [1, 1]} : vector<2x384xf32> to vector<2x128xf32>
    %232 = vector.extract_strided_slice %214 {offsets = [0, 256], sizes = [2, 128], strides = [1, 1]} : vector<2x384xf32> to vector<2x128xf32>
    %233 = vector.broadcast %28 : vector<1x128xf32> to vector<2x128xf32>
    %234 = arith.addf %232, %233 : vector<2x128xf32>
    %235 = arith.mulf %222, %234 : vector<2x128xf32>
    %236 = arith.addf %231, %235 : vector<2x128xf32>
    %237 = math.tanh %236 : vector<2x128xf32>
    %cst_46 = arith.constant 1.000000e+00 : f32
    %238 = vector.broadcast %cst_46 : f32 to vector<2x128xf32>
    %239 = arith.subf %238, %230 : vector<2x128xf32>
    %240 = arith.mulf %239, %237 : vector<2x128xf32>
    %241 = arith.mulf %230, %212 : vector<2x128xf32>
    %242 = arith.addf %240, %241 : vector<2x128xf32>
    %243 = vector.extract_strided_slice %31 {offsets = [14, 0], sizes = [2, 384], strides = [1, 1]} : vector<16x384xf32> to vector<2x384xf32>
    %cst_47 = arith.constant dense<0.000000e+00> : vector<2x384xf32>
    %244 = tpu.matmul %242, %26, %cst_47 {dimension_numbers = #tpu.dot_dimension_numbers<[1], [0], [0], [1], [0, 0, 1, 1], [], []>} : vector<2x128xf32>, vector<128x384xf32>, vector<2x384xf32> -> vector<2x384xf32>
    %245 = vector.extract_strided_slice %243 {offsets = [0, 0], sizes = [2, 128], strides = [1, 1]} : vector<2x384xf32> to vector<2x128xf32>
    %246 = vector.extract_strided_slice %244 {offsets = [0, 0], sizes = [2, 128], strides = [1, 1]} : vector<2x384xf32> to vector<2x128xf32>
    %247 = arith.addf %245, %246 : vector<2x128xf32>
    %248 = arith.negf %247 : vector<2x128xf32>
    %249 = math.exp %248 : vector<2x128xf32>
    %cst_48 = arith.constant 1.000000e+00 : f32
    %250 = vector.broadcast %cst_48 : f32 to vector<2x128xf32>
    %251 = arith.addf %250, %249 : vector<2x128xf32>
    %252 = arith.divf %250, %251 : vector<2x128xf32>
    %253 = vector.extract_strided_slice %243 {offsets = [0, 128], sizes = [2, 128], strides = [1, 1]} : vector<2x384xf32> to vector<2x128xf32>
    %254 = vector.extract_strided_slice %244 {offsets = [0, 128], sizes = [2, 128], strides = [1, 1]} : vector<2x384xf32> to vector<2x128xf32>
    %255 = arith.addf %253, %254 : vector<2x128xf32>
    %256 = arith.negf %255 : vector<2x128xf32>
    %257 = math.exp %256 : vector<2x128xf32>
    %cst_49 = arith.constant 1.000000e+00 : f32
    %258 = vector.broadcast %cst_49 : f32 to vector<2x128xf32>
    %259 = arith.addf %258, %257 : vector<2x128xf32>
    %260 = arith.divf %258, %259 : vector<2x128xf32>
    %261 = vector.extract_strided_slice %243 {offsets = [0, 256], sizes = [2, 128], strides = [1, 1]} : vector<2x384xf32> to vector<2x128xf32>
    %262 = vector.extract_strided_slice %244 {offsets = [0, 256], sizes = [2, 128], strides = [1, 1]} : vector<2x384xf32> to vector<2x128xf32>
    %263 = vector.broadcast %28 : vector<1x128xf32> to vector<2x128xf32>
    %264 = arith.addf %262, %263 : vector<2x128xf32>
    %265 = arith.mulf %252, %264 : vector<2x128xf32>
    %266 = arith.addf %261, %265 : vector<2x128xf32>
    %267 = math.tanh %266 : vector<2x128xf32>
    %cst_50 = arith.constant 1.000000e+00 : f32
    %268 = vector.broadcast %cst_50 : f32 to vector<2x128xf32>
    %269 = arith.subf %268, %260 : vector<2x128xf32>
    %270 = arith.mulf %269, %267 : vector<2x128xf32>
    %271 = arith.mulf %260, %242 : vector<2x128xf32>
    %272 = arith.addf %270, %271 : vector<2x128xf32>
    %273 = tpu.concatenate %62, %92, %122, %152, %182, %212, %242, %272 in 0 : vector<2x128xf32>, vector<2x128xf32>, vector<2x128xf32>, vector<2x128xf32>, vector<2x128xf32>, vector<2x128xf32>, vector<2x128xf32>, vector<2x128xf32> -> vector<16x128xf32>
    %c0_51 = arith.constant 0 : index
    %c0_52 = arith.constant 0 : index
    %274 = vector.load %arg7[%c0_51, %c0_52] : memref<128x384xf32, #tpu.memory_space<vmem>>, vector<128x384xf32>
    %c0_53 = arith.constant 0 : index
    %c0_54 = arith.constant 0 : index
    %275 = vector.load %arg8[%c0_53, %c0_54] : memref<128x384xf32, #tpu.memory_space<vmem>>, vector<128x384xf32>
    %c0_55 = arith.constant 0 : index
    %c0_56 = arith.constant 0 : index
    %276 = vector.load %arg9[%c0_55, %c0_56] : memref<1x384xf32, #tpu.memory_space<vmem>>, vector<1x384xf32>
    %c0_57 = arith.constant 0 : index
    %c0_58 = arith.constant 0 : index
    %277 = vector.load %arg10[%c0_57, %c0_58] : memref<1x128xf32, #tpu.memory_space<vmem>>, vector<1x128xf32>
    %cst_59 = arith.constant dense<0.000000e+00> : vector<16x384xf32>
    %278 = tpu.matmul %273, %274, %cst_59 {dimension_numbers = #tpu.dot_dimension_numbers<[1], [0], [0], [1], [0, 0, 1, 1], [], []>} : vector<16x128xf32>, vector<128x384xf32>, vector<16x384xf32> -> vector<16x384xf32>
    %279 = vector.broadcast %276 : vector<1x384xf32> to vector<16x384xf32>
    %280 = arith.addf %278, %279 : vector<16x384xf32>
    %cst_60 = arith.constant 0.000000e+00 : f32
    %281 = vector.broadcast %cst_60 : f32 to vector<2x128xf32>
    %282 = vector.extract_strided_slice %280 {offsets = [0, 0], sizes = [2, 384], strides = [1, 1]} : vector<16x384xf32> to vector<2x384xf32>
    %cst_61 = arith.constant dense<0.000000e+00> : vector<2x384xf32>
    %283 = tpu.matmul %281, %275, %cst_61 {dimension_numbers = #tpu.dot_dimension_numbers<[1], [0], [0], [1], [0, 0, 1, 1], [], []>} : vector<2x128xf32>, vector<128x384xf32>, vector<2x384xf32> -> vector<2x384xf32>
    %284 = vector.extract_strided_slice %282 {offsets = [0, 0], sizes = [2, 128], strides = [1, 1]} : vector<2x384xf32> to vector<2x128xf32>
    %285 = vector.extract_strided_slice %283 {offsets = [0, 0], sizes = [2, 128], strides = [1, 1]} : vector<2x384xf32> to vector<2x128xf32>
    %286 = arith.addf %284, %285 : vector<2x128xf32>
    %287 = arith.negf %286 : vector<2x128xf32>
    %288 = math.exp %287 : vector<2x128xf32>
    %cst_62 = arith.constant 1.000000e+00 : f32
    %289 = vector.broadcast %cst_62 : f32 to vector<2x128xf32>
    %290 = arith.addf %289, %288 : vector<2x128xf32>
    %291 = arith.divf %289, %290 : vector<2x128xf32>
    %292 = vector.extract_strided_slice %282 {offsets = [0, 128], sizes = [2, 128], strides = [1, 1]} : vector<2x384xf32> to vector<2x128xf32>
    %293 = vector.extract_strided_slice %283 {offsets = [0, 128], sizes = [2, 128], strides = [1, 1]} : vector<2x384xf32> to vector<2x128xf32>
    %294 = arith.addf %292, %293 : vector<2x128xf32>
    %295 = arith.negf %294 : vector<2x128xf32>
    %296 = math.exp %295 : vector<2x128xf32>
    %cst_63 = arith.constant 1.000000e+00 : f32
    %297 = vector.broadcast %cst_63 : f32 to vector<2x128xf32>
    %298 = arith.addf %297, %296 : vector<2x128xf32>
    %299 = arith.divf %297, %298 : vector<2x128xf32>
    %300 = vector.extract_strided_slice %282 {offsets = [0, 256], sizes = [2, 128], strides = [1, 1]} : vector<2x384xf32> to vector<2x128xf32>
    %301 = vector.extract_strided_slice %283 {offsets = [0, 256], sizes = [2, 128], strides = [1, 1]} : vector<2x384xf32> to vector<2x128xf32>
    %302 = vector.broadcast %277 : vector<1x128xf32> to vector<2x128xf32>
    %303 = arith.addf %301, %302 : vector<2x128xf32>
    %304 = arith.mulf %291, %303 : vector<2x128xf32>
    %305 = arith.addf %300, %304 : vector<2x128xf32>
    %306 = math.tanh %305 : vector<2x128xf32>
    %cst_64 = arith.constant 1.000000e+00 : f32
    %307 = vector.broadcast %cst_64 : f32 to vector<2x128xf32>
    %308 = arith.subf %307, %299 : vector<2x128xf32>
    %309 = arith.mulf %308, %306 : vector<2x128xf32>
    %310 = arith.mulf %299, %281 : vector<2x128xf32>
    %311 = arith.addf %309, %310 : vector<2x128xf32>
    %312 = vector.extract_strided_slice %280 {offsets = [2, 0], sizes = [2, 384], strides = [1, 1]} : vector<16x384xf32> to vector<2x384xf32>
    %cst_65 = arith.constant dense<0.000000e+00> : vector<2x384xf32>
    %313 = tpu.matmul %311, %275, %cst_65 {dimension_numbers = #tpu.dot_dimension_numbers<[1], [0], [0], [1], [0, 0, 1, 1], [], []>} : vector<2x128xf32>, vector<128x384xf32>, vector<2x384xf32> -> vector<2x384xf32>
    %314 = vector.extract_strided_slice %312 {offsets = [0, 0], sizes = [2, 128], strides = [1, 1]} : vector<2x384xf32> to vector<2x128xf32>
    %315 = vector.extract_strided_slice %313 {offsets = [0, 0], sizes = [2, 128], strides = [1, 1]} : vector<2x384xf32> to vector<2x128xf32>
    %316 = arith.addf %314, %315 : vector<2x128xf32>
    %317 = arith.negf %316 : vector<2x128xf32>
    %318 = math.exp %317 : vector<2x128xf32>
    %cst_66 = arith.constant 1.000000e+00 : f32
    %319 = vector.broadcast %cst_66 : f32 to vector<2x128xf32>
    %320 = arith.addf %319, %318 : vector<2x128xf32>
    %321 = arith.divf %319, %320 : vector<2x128xf32>
    %322 = vector.extract_strided_slice %312 {offsets = [0, 128], sizes = [2, 128], strides = [1, 1]} : vector<2x384xf32> to vector<2x128xf32>
    %323 = vector.extract_strided_slice %313 {offsets = [0, 128], sizes = [2, 128], strides = [1, 1]} : vector<2x384xf32> to vector<2x128xf32>
    %324 = arith.addf %322, %323 : vector<2x128xf32>
    %325 = arith.negf %324 : vector<2x128xf32>
    %326 = math.exp %325 : vector<2x128xf32>
    %cst_67 = arith.constant 1.000000e+00 : f32
    %327 = vector.broadcast %cst_67 : f32 to vector<2x128xf32>
    %328 = arith.addf %327, %326 : vector<2x128xf32>
    %329 = arith.divf %327, %328 : vector<2x128xf32>
    %330 = vector.extract_strided_slice %312 {offsets = [0, 256], sizes = [2, 128], strides = [1, 1]} : vector<2x384xf32> to vector<2x128xf32>
    %331 = vector.extract_strided_slice %313 {offsets = [0, 256], sizes = [2, 128], strides = [1, 1]} : vector<2x384xf32> to vector<2x128xf32>
    %332 = vector.broadcast %277 : vector<1x128xf32> to vector<2x128xf32>
    %333 = arith.addf %331, %332 : vector<2x128xf32>
    %334 = arith.mulf %321, %333 : vector<2x128xf32>
    %335 = arith.addf %330, %334 : vector<2x128xf32>
    %336 = math.tanh %335 : vector<2x128xf32>
    %cst_68 = arith.constant 1.000000e+00 : f32
    %337 = vector.broadcast %cst_68 : f32 to vector<2x128xf32>
    %338 = arith.subf %337, %329 : vector<2x128xf32>
    %339 = arith.mulf %338, %336 : vector<2x128xf32>
    %340 = arith.mulf %329, %311 : vector<2x128xf32>
    %341 = arith.addf %339, %340 : vector<2x128xf32>
    %342 = vector.extract_strided_slice %280 {offsets = [4, 0], sizes = [2, 384], strides = [1, 1]} : vector<16x384xf32> to vector<2x384xf32>
    %cst_69 = arith.constant dense<0.000000e+00> : vector<2x384xf32>
    %343 = tpu.matmul %341, %275, %cst_69 {dimension_numbers = #tpu.dot_dimension_numbers<[1], [0], [0], [1], [0, 0, 1, 1], [], []>} : vector<2x128xf32>, vector<128x384xf32>, vector<2x384xf32> -> vector<2x384xf32>
    %344 = vector.extract_strided_slice %342 {offsets = [0, 0], sizes = [2, 128], strides = [1, 1]} : vector<2x384xf32> to vector<2x128xf32>
    %345 = vector.extract_strided_slice %343 {offsets = [0, 0], sizes = [2, 128], strides = [1, 1]} : vector<2x384xf32> to vector<2x128xf32>
    %346 = arith.addf %344, %345 : vector<2x128xf32>
    %347 = arith.negf %346 : vector<2x128xf32>
    %348 = math.exp %347 : vector<2x128xf32>
    %cst_70 = arith.constant 1.000000e+00 : f32
    %349 = vector.broadcast %cst_70 : f32 to vector<2x128xf32>
    %350 = arith.addf %349, %348 : vector<2x128xf32>
    %351 = arith.divf %349, %350 : vector<2x128xf32>
    %352 = vector.extract_strided_slice %342 {offsets = [0, 128], sizes = [2, 128], strides = [1, 1]} : vector<2x384xf32> to vector<2x128xf32>
    %353 = vector.extract_strided_slice %343 {offsets = [0, 128], sizes = [2, 128], strides = [1, 1]} : vector<2x384xf32> to vector<2x128xf32>
    %354 = arith.addf %352, %353 : vector<2x128xf32>
    %355 = arith.negf %354 : vector<2x128xf32>
    %356 = math.exp %355 : vector<2x128xf32>
    %cst_71 = arith.constant 1.000000e+00 : f32
    %357 = vector.broadcast %cst_71 : f32 to vector<2x128xf32>
    %358 = arith.addf %357, %356 : vector<2x128xf32>
    %359 = arith.divf %357, %358 : vector<2x128xf32>
    %360 = vector.extract_strided_slice %342 {offsets = [0, 256], sizes = [2, 128], strides = [1, 1]} : vector<2x384xf32> to vector<2x128xf32>
    %361 = vector.extract_strided_slice %343 {offsets = [0, 256], sizes = [2, 128], strides = [1, 1]} : vector<2x384xf32> to vector<2x128xf32>
    %362 = vector.broadcast %277 : vector<1x128xf32> to vector<2x128xf32>
    %363 = arith.addf %361, %362 : vector<2x128xf32>
    %364 = arith.mulf %351, %363 : vector<2x128xf32>
    %365 = arith.addf %360, %364 : vector<2x128xf32>
    %366 = math.tanh %365 : vector<2x128xf32>
    %cst_72 = arith.constant 1.000000e+00 : f32
    %367 = vector.broadcast %cst_72 : f32 to vector<2x128xf32>
    %368 = arith.subf %367, %359 : vector<2x128xf32>
    %369 = arith.mulf %368, %366 : vector<2x128xf32>
    %370 = arith.mulf %359, %341 : vector<2x128xf32>
    %371 = arith.addf %369, %370 : vector<2x128xf32>
    %372 = vector.extract_strided_slice %280 {offsets = [6, 0], sizes = [2, 384], strides = [1, 1]} : vector<16x384xf32> to vector<2x384xf32>
    %cst_73 = arith.constant dense<0.000000e+00> : vector<2x384xf32>
    %373 = tpu.matmul %371, %275, %cst_73 {dimension_numbers = #tpu.dot_dimension_numbers<[1], [0], [0], [1], [0, 0, 1, 1], [], []>} : vector<2x128xf32>, vector<128x384xf32>, vector<2x384xf32> -> vector<2x384xf32>
    %374 = vector.extract_strided_slice %372 {offsets = [0, 0], sizes = [2, 128], strides = [1, 1]} : vector<2x384xf32> to vector<2x128xf32>
    %375 = vector.extract_strided_slice %373 {offsets = [0, 0], sizes = [2, 128], strides = [1, 1]} : vector<2x384xf32> to vector<2x128xf32>
    %376 = arith.addf %374, %375 : vector<2x128xf32>
    %377 = arith.negf %376 : vector<2x128xf32>
    %378 = math.exp %377 : vector<2x128xf32>
    %cst_74 = arith.constant 1.000000e+00 : f32
    %379 = vector.broadcast %cst_74 : f32 to vector<2x128xf32>
    %380 = arith.addf %379, %378 : vector<2x128xf32>
    %381 = arith.divf %379, %380 : vector<2x128xf32>
    %382 = vector.extract_strided_slice %372 {offsets = [0, 128], sizes = [2, 128], strides = [1, 1]} : vector<2x384xf32> to vector<2x128xf32>
    %383 = vector.extract_strided_slice %373 {offsets = [0, 128], sizes = [2, 128], strides = [1, 1]} : vector<2x384xf32> to vector<2x128xf32>
    %384 = arith.addf %382, %383 : vector<2x128xf32>
    %385 = arith.negf %384 : vector<2x128xf32>
    %386 = math.exp %385 : vector<2x128xf32>
    %cst_75 = arith.constant 1.000000e+00 : f32
    %387 = vector.broadcast %cst_75 : f32 to vector<2x128xf32>
    %388 = arith.addf %387, %386 : vector<2x128xf32>
    %389 = arith.divf %387, %388 : vector<2x128xf32>
    %390 = vector.extract_strided_slice %372 {offsets = [0, 256], sizes = [2, 128], strides = [1, 1]} : vector<2x384xf32> to vector<2x128xf32>
    %391 = vector.extract_strided_slice %373 {offsets = [0, 256], sizes = [2, 128], strides = [1, 1]} : vector<2x384xf32> to vector<2x128xf32>
    %392 = vector.broadcast %277 : vector<1x128xf32> to vector<2x128xf32>
    %393 = arith.addf %391, %392 : vector<2x128xf32>
    %394 = arith.mulf %381, %393 : vector<2x128xf32>
    %395 = arith.addf %390, %394 : vector<2x128xf32>
    %396 = math.tanh %395 : vector<2x128xf32>
    %cst_76 = arith.constant 1.000000e+00 : f32
    %397 = vector.broadcast %cst_76 : f32 to vector<2x128xf32>
    %398 = arith.subf %397, %389 : vector<2x128xf32>
    %399 = arith.mulf %398, %396 : vector<2x128xf32>
    %400 = arith.mulf %389, %371 : vector<2x128xf32>
    %401 = arith.addf %399, %400 : vector<2x128xf32>
    %402 = vector.extract_strided_slice %280 {offsets = [8, 0], sizes = [2, 384], strides = [1, 1]} : vector<16x384xf32> to vector<2x384xf32>
    %cst_77 = arith.constant dense<0.000000e+00> : vector<2x384xf32>
    %403 = tpu.matmul %401, %275, %cst_77 {dimension_numbers = #tpu.dot_dimension_numbers<[1], [0], [0], [1], [0, 0, 1, 1], [], []>} : vector<2x128xf32>, vector<128x384xf32>, vector<2x384xf32> -> vector<2x384xf32>
    %404 = vector.extract_strided_slice %402 {offsets = [0, 0], sizes = [2, 128], strides = [1, 1]} : vector<2x384xf32> to vector<2x128xf32>
    %405 = vector.extract_strided_slice %403 {offsets = [0, 0], sizes = [2, 128], strides = [1, 1]} : vector<2x384xf32> to vector<2x128xf32>
    %406 = arith.addf %404, %405 : vector<2x128xf32>
    %407 = arith.negf %406 : vector<2x128xf32>
    %408 = math.exp %407 : vector<2x128xf32>
    %cst_78 = arith.constant 1.000000e+00 : f32
    %409 = vector.broadcast %cst_78 : f32 to vector<2x128xf32>
    %410 = arith.addf %409, %408 : vector<2x128xf32>
    %411 = arith.divf %409, %410 : vector<2x128xf32>
    %412 = vector.extract_strided_slice %402 {offsets = [0, 128], sizes = [2, 128], strides = [1, 1]} : vector<2x384xf32> to vector<2x128xf32>
    %413 = vector.extract_strided_slice %403 {offsets = [0, 128], sizes = [2, 128], strides = [1, 1]} : vector<2x384xf32> to vector<2x128xf32>
    %414 = arith.addf %412, %413 : vector<2x128xf32>
    %415 = arith.negf %414 : vector<2x128xf32>
    %416 = math.exp %415 : vector<2x128xf32>
    %cst_79 = arith.constant 1.000000e+00 : f32
    %417 = vector.broadcast %cst_79 : f32 to vector<2x128xf32>
    %418 = arith.addf %417, %416 : vector<2x128xf32>
    %419 = arith.divf %417, %418 : vector<2x128xf32>
    %420 = vector.extract_strided_slice %402 {offsets = [0, 256], sizes = [2, 128], strides = [1, 1]} : vector<2x384xf32> to vector<2x128xf32>
    %421 = vector.extract_strided_slice %403 {offsets = [0, 256], sizes = [2, 128], strides = [1, 1]} : vector<2x384xf32> to vector<2x128xf32>
    %422 = vector.broadcast %277 : vector<1x128xf32> to vector<2x128xf32>
    %423 = arith.addf %421, %422 : vector<2x128xf32>
    %424 = arith.mulf %411, %423 : vector<2x128xf32>
    %425 = arith.addf %420, %424 : vector<2x128xf32>
    %426 = math.tanh %425 : vector<2x128xf32>
    %cst_80 = arith.constant 1.000000e+00 : f32
    %427 = vector.broadcast %cst_80 : f32 to vector<2x128xf32>
    %428 = arith.subf %427, %419 : vector<2x128xf32>
    %429 = arith.mulf %428, %426 : vector<2x128xf32>
    %430 = arith.mulf %419, %401 : vector<2x128xf32>
    %431 = arith.addf %429, %430 : vector<2x128xf32>
    %432 = vector.extract_strided_slice %280 {offsets = [10, 0], sizes = [2, 384], strides = [1, 1]} : vector<16x384xf32> to vector<2x384xf32>
    %cst_81 = arith.constant dense<0.000000e+00> : vector<2x384xf32>
    %433 = tpu.matmul %431, %275, %cst_81 {dimension_numbers = #tpu.dot_dimension_numbers<[1], [0], [0], [1], [0, 0, 1, 1], [], []>} : vector<2x128xf32>, vector<128x384xf32>, vector<2x384xf32> -> vector<2x384xf32>
    %434 = vector.extract_strided_slice %432 {offsets = [0, 0], sizes = [2, 128], strides = [1, 1]} : vector<2x384xf32> to vector<2x128xf32>
    %435 = vector.extract_strided_slice %433 {offsets = [0, 0], sizes = [2, 128], strides = [1, 1]} : vector<2x384xf32> to vector<2x128xf32>
    %436 = arith.addf %434, %435 : vector<2x128xf32>
    %437 = arith.negf %436 : vector<2x128xf32>
    %438 = math.exp %437 : vector<2x128xf32>
    %cst_82 = arith.constant 1.000000e+00 : f32
    %439 = vector.broadcast %cst_82 : f32 to vector<2x128xf32>
    %440 = arith.addf %439, %438 : vector<2x128xf32>
    %441 = arith.divf %439, %440 : vector<2x128xf32>
    %442 = vector.extract_strided_slice %432 {offsets = [0, 128], sizes = [2, 128], strides = [1, 1]} : vector<2x384xf32> to vector<2x128xf32>
    %443 = vector.extract_strided_slice %433 {offsets = [0, 128], sizes = [2, 128], strides = [1, 1]} : vector<2x384xf32> to vector<2x128xf32>
    %444 = arith.addf %442, %443 : vector<2x128xf32>
    %445 = arith.negf %444 : vector<2x128xf32>
    %446 = math.exp %445 : vector<2x128xf32>
    %cst_83 = arith.constant 1.000000e+00 : f32
    %447 = vector.broadcast %cst_83 : f32 to vector<2x128xf32>
    %448 = arith.addf %447, %446 : vector<2x128xf32>
    %449 = arith.divf %447, %448 : vector<2x128xf32>
    %450 = vector.extract_strided_slice %432 {offsets = [0, 256], sizes = [2, 128], strides = [1, 1]} : vector<2x384xf32> to vector<2x128xf32>
    %451 = vector.extract_strided_slice %433 {offsets = [0, 256], sizes = [2, 128], strides = [1, 1]} : vector<2x384xf32> to vector<2x128xf32>
    %452 = vector.broadcast %277 : vector<1x128xf32> to vector<2x128xf32>
    %453 = arith.addf %451, %452 : vector<2x128xf32>
    %454 = arith.mulf %441, %453 : vector<2x128xf32>
    %455 = arith.addf %450, %454 : vector<2x128xf32>
    %456 = math.tanh %455 : vector<2x128xf32>
    %cst_84 = arith.constant 1.000000e+00 : f32
    %457 = vector.broadcast %cst_84 : f32 to vector<2x128xf32>
    %458 = arith.subf %457, %449 : vector<2x128xf32>
    %459 = arith.mulf %458, %456 : vector<2x128xf32>
    %460 = arith.mulf %449, %431 : vector<2x128xf32>
    %461 = arith.addf %459, %460 : vector<2x128xf32>
    %462 = vector.extract_strided_slice %280 {offsets = [12, 0], sizes = [2, 384], strides = [1, 1]} : vector<16x384xf32> to vector<2x384xf32>
    %cst_85 = arith.constant dense<0.000000e+00> : vector<2x384xf32>
    %463 = tpu.matmul %461, %275, %cst_85 {dimension_numbers = #tpu.dot_dimension_numbers<[1], [0], [0], [1], [0, 0, 1, 1], [], []>} : vector<2x128xf32>, vector<128x384xf32>, vector<2x384xf32> -> vector<2x384xf32>
    %464 = vector.extract_strided_slice %462 {offsets = [0, 0], sizes = [2, 128], strides = [1, 1]} : vector<2x384xf32> to vector<2x128xf32>
    %465 = vector.extract_strided_slice %463 {offsets = [0, 0], sizes = [2, 128], strides = [1, 1]} : vector<2x384xf32> to vector<2x128xf32>
    %466 = arith.addf %464, %465 : vector<2x128xf32>
    %467 = arith.negf %466 : vector<2x128xf32>
    %468 = math.exp %467 : vector<2x128xf32>
    %cst_86 = arith.constant 1.000000e+00 : f32
    %469 = vector.broadcast %cst_86 : f32 to vector<2x128xf32>
    %470 = arith.addf %469, %468 : vector<2x128xf32>
    %471 = arith.divf %469, %470 : vector<2x128xf32>
    %472 = vector.extract_strided_slice %462 {offsets = [0, 128], sizes = [2, 128], strides = [1, 1]} : vector<2x384xf32> to vector<2x128xf32>
    %473 = vector.extract_strided_slice %463 {offsets = [0, 128], sizes = [2, 128], strides = [1, 1]} : vector<2x384xf32> to vector<2x128xf32>
    %474 = arith.addf %472, %473 : vector<2x128xf32>
    %475 = arith.negf %474 : vector<2x128xf32>
    %476 = math.exp %475 : vector<2x128xf32>
    %cst_87 = arith.constant 1.000000e+00 : f32
    %477 = vector.broadcast %cst_87 : f32 to vector<2x128xf32>
    %478 = arith.addf %477, %476 : vector<2x128xf32>
    %479 = arith.divf %477, %478 : vector<2x128xf32>
    %480 = vector.extract_strided_slice %462 {offsets = [0, 256], sizes = [2, 128], strides = [1, 1]} : vector<2x384xf32> to vector<2x128xf32>
    %481 = vector.extract_strided_slice %463 {offsets = [0, 256], sizes = [2, 128], strides = [1, 1]} : vector<2x384xf32> to vector<2x128xf32>
    %482 = vector.broadcast %277 : vector<1x128xf32> to vector<2x128xf32>
    %483 = arith.addf %481, %482 : vector<2x128xf32>
    %484 = arith.mulf %471, %483 : vector<2x128xf32>
    %485 = arith.addf %480, %484 : vector<2x128xf32>
    %486 = math.tanh %485 : vector<2x128xf32>
    %cst_88 = arith.constant 1.000000e+00 : f32
    %487 = vector.broadcast %cst_88 : f32 to vector<2x128xf32>
    %488 = arith.subf %487, %479 : vector<2x128xf32>
    %489 = arith.mulf %488, %486 : vector<2x128xf32>
    %490 = arith.mulf %479, %461 : vector<2x128xf32>
    %491 = arith.addf %489, %490 : vector<2x128xf32>
    %492 = vector.extract_strided_slice %280 {offsets = [14, 0], sizes = [2, 384], strides = [1, 1]} : vector<16x384xf32> to vector<2x384xf32>
    %cst_89 = arith.constant dense<0.000000e+00> : vector<2x384xf32>
    %493 = tpu.matmul %491, %275, %cst_89 {dimension_numbers = #tpu.dot_dimension_numbers<[1], [0], [0], [1], [0, 0, 1, 1], [], []>} : vector<2x128xf32>, vector<128x384xf32>, vector<2x384xf32> -> vector<2x384xf32>
    %494 = vector.extract_strided_slice %492 {offsets = [0, 0], sizes = [2, 128], strides = [1, 1]} : vector<2x384xf32> to vector<2x128xf32>
    %495 = vector.extract_strided_slice %493 {offsets = [0, 0], sizes = [2, 128], strides = [1, 1]} : vector<2x384xf32> to vector<2x128xf32>
    %496 = arith.addf %494, %495 : vector<2x128xf32>
    %497 = arith.negf %496 : vector<2x128xf32>
    %498 = math.exp %497 : vector<2x128xf32>
    %cst_90 = arith.constant 1.000000e+00 : f32
    %499 = vector.broadcast %cst_90 : f32 to vector<2x128xf32>
    %500 = arith.addf %499, %498 : vector<2x128xf32>
    %501 = arith.divf %499, %500 : vector<2x128xf32>
    %502 = vector.extract_strided_slice %492 {offsets = [0, 128], sizes = [2, 128], strides = [1, 1]} : vector<2x384xf32> to vector<2x128xf32>
    %503 = vector.extract_strided_slice %493 {offsets = [0, 128], sizes = [2, 128], strides = [1, 1]} : vector<2x384xf32> to vector<2x128xf32>
    %504 = arith.addf %502, %503 : vector<2x128xf32>
    %505 = arith.negf %504 : vector<2x128xf32>
    %506 = math.exp %505 : vector<2x128xf32>
    %cst_91 = arith.constant 1.000000e+00 : f32
    %507 = vector.broadcast %cst_91 : f32 to vector<2x128xf32>
    %508 = arith.addf %507, %506 : vector<2x128xf32>
    %509 = arith.divf %507, %508 : vector<2x128xf32>
    %510 = vector.extract_strided_slice %492 {offsets = [0, 256], sizes = [2, 128], strides = [1, 1]} : vector<2x384xf32> to vector<2x128xf32>
    %511 = vector.extract_strided_slice %493 {offsets = [0, 256], sizes = [2, 128], strides = [1, 1]} : vector<2x384xf32> to vector<2x128xf32>
    %512 = vector.broadcast %277 : vector<1x128xf32> to vector<2x128xf32>
    %513 = arith.addf %511, %512 : vector<2x128xf32>
    %514 = arith.mulf %501, %513 : vector<2x128xf32>
    %515 = arith.addf %510, %514 : vector<2x128xf32>
    %516 = math.tanh %515 : vector<2x128xf32>
    %cst_92 = arith.constant 1.000000e+00 : f32
    %517 = vector.broadcast %cst_92 : f32 to vector<2x128xf32>
    %518 = arith.subf %517, %509 : vector<2x128xf32>
    %519 = arith.mulf %518, %516 : vector<2x128xf32>
    %520 = arith.mulf %509, %491 : vector<2x128xf32>
    %521 = arith.addf %519, %520 : vector<2x128xf32>
    %c0_93 = arith.constant 0 : index
    %c0_94 = arith.constant 0 : index
    %522 = vector.load %arg11[%c0_93, %c0_94] : memref<128x10xf32, #tpu.memory_space<vmem>>, vector<128x10xf32>
    %cst_95 = arith.constant dense<0.000000e+00> : vector<2x10xf32>
    %523 = tpu.matmul %521, %522, %cst_95 {dimension_numbers = #tpu.dot_dimension_numbers<[1], [0], [0], [1], [0, 0, 1, 1], [], []>} : vector<2x128xf32>, vector<128x10xf32>, vector<2x10xf32> -> vector<2x10xf32>
    %c0_96 = arith.constant 0 : index
    %c0_97 = arith.constant 0 : index
    %524 = vector.load %arg12[%c0_96, %c0_97] : memref<1x10xf32, #tpu.memory_space<vmem>>, vector<1x10xf32>
    %525 = vector.broadcast %524 : vector<1x10xf32> to vector<2x10xf32>
    %526 = arith.addf %523, %525 : vector<2x10xf32>
    %c0_98 = arith.constant 0 : index
    %c0_99 = arith.constant 0 : index
    %527 = vector.load %arg13[%c0_98, %c0_99] : memref<2x10xf32, #tpu.memory_space<vmem>>, vector<2x10xf32>
    tpu.vector_store %arg13[%c0_98, %c0_99], %526 {strides = array<i32>} : memref<2x10xf32, #tpu.memory_space<vmem>>, vector<2x10xf32>,
    return
  }
}

</mosaic_0001>

<llo_original>
// kernel: tpu_custom_call.1
$region0: #{tpu_custom_call.1}
  #allocation0 [shape = 'u32[]', space=smem, size = 0x4, offset = 0x4, fixed_abs, tag = 'smem constant byte address 0x4 - core index']
  #allocation1 [shape = 'u32[72,128]{1,0:T(1,128)}', space=vmem, size = 0x9000, scoped, tag = 'internal scratch']
  %s0 = inlined_call_operand.vmem [shape: f32[16,16], index: 0, kind: input, shape index: {}]
  %s1 = inlined_call_operand.vmem [shape: f32[1,16], index: 1, kind: input, shape index: {}]
  %s2 = inlined_call_operand.vmem [shape: f32[1,16], index: 2, kind: input, shape index: {}]
  %s3 = inlined_call_operand.vmem [shape: f32[16,384], index: 3, kind: input, shape index: {}]
  %s4 = inlined_call_operand.hbm [shape: f32[128,384], index: 4, kind: input, shape index: {}]
  %s5 = inlined_call_operand.vmem [shape: f32[1,384], index: 5, kind: input, shape index: {}]
  %s6 = inlined_call_operand.vmem [shape: f32[1,128], index: 6, kind: input, shape index: {}]
  %s7 = inlined_call_operand.hbm [shape: f32[128,384], index: 7, kind: input, shape index: {}]
  %s8 = inlined_call_operand.hbm [shape: f32[128,384], index: 8, kind: input, shape index: {}]
  %s9 = inlined_call_operand.vmem [shape: f32[1,384], index: 9, kind: input, shape index: {}]
  %s10 = inlined_call_operand.vmem [shape: f32[1,128], index: 10, kind: input, shape index: {}]
  %s11 = inlined_call_operand.vmem [shape: f32[128,10], index: 11, kind: input, shape index: {}]
  %s12 = inlined_call_operand.vmem [shape: f32[1,10], index: 12, kind: input, shape index: {}]
  %s13 = inlined_call_operand.hbm [shape: f32[2,10], index: 13, kind: output, shape index: {}]
  %s14 = sld [smem:[#allocation0]]
  $region74: #{tpu_custom_call.1} parent=0
    _
  %s16 = ssub.s32 1, %s14
  %s17 = scalar_select 0, %s16, %s14
  $region1: #{tpu_custom_call.1} parent=0
    #allocation2 [shape = 'u8[196608]{0}', space=vmem, size = 0x30000, scoped, tag = 'input window, operand 4, single buffered']
    #allocation3 [shape = 's32[1]{0}', space=sflag, size = 0x4, scoped, tag = 'scoped memory for tpu_custom_call.1']
    #allocation4 [shape = 's32[1]{0}', space=sflag, size = 0x4, scoped, tag = 'scoped memory for tpu_custom_call.1']
    #allocation5 [shape = 'u8[196608]{0}', space=vmem, size = 0x30000, scoped, tag = 'input window, operand 7, single buffered']
    #allocation6 [shape = 's32[1]{0}', space=sflag, size = 0x4, scoped, tag = 'scoped memory for tpu_custom_call.1']
    #allocation7 [shape = 'u8[196608]{0}', space=vmem, size = 0x30000, scoped, tag = 'input window, operand 8, single buffered']
    #allocation8 [shape = 'u8[1024]{0}', space=vmem, size = 0x400, scoped, tag = 'output window, operand 0, single buffered']
    %18 = vsyncpa [#allocation3], 0
    %19 = vsyncpa [#allocation6], 0
    %20 = vsyncpa [#allocation4], 0
    // Predicated region
    $region2: #{tpu_custom_call.1} parent=1 // pred_check
      _
    $region3: #{tpu_custom_call.1} parent=1 // pred_check_branch
      %22 = sbr.rel (0) target = $region5
    $region4: #{tpu_custom_call.1} parent=1 // pred_region
      _
    $region5: #{tpu_custom_call.1} parent=1 // pred_fallthru
      _
    // Predicated region
    $region6: #{tpu_custom_call.1} parent=1 // pred_check
      _
    $region7: #{tpu_custom_call.1} parent=1 // pred_check_branch
      %24 = sbr.rel (0) target = $region9
    $region8: #{tpu_custom_call.1} parent=1 // pred_region
      _
    $region9: #{tpu_custom_call.1} parent=1 // pred_fallthru
      _
    // Predicated region
    $region10: #{tpu_custom_call.1} parent=1 // pred_check
      _
    $region11: #{tpu_custom_call.1} parent=1 // pred_check_branch
      %26 = sbr.rel (0) target = $region13
    $region12: #{tpu_custom_call.1} parent=1 // pred_region
      _
    $region13: #{tpu_custom_call.1} parent=1 // pred_fallthru
      _
    // Predicated region
    $region14: #{tpu_custom_call.1} parent=1 // pred_check
      _
    $region15: #{tpu_custom_call.1} parent=1 // pred_check_branch
      %28 = sbr.rel (0) target = $region17
    $region16: #{tpu_custom_call.1} parent=1 // pred_region
      _
    $region17: #{tpu_custom_call.1} parent=1 // pred_fallthru
      _
    // Predicated region
    $region18: #{tpu_custom_call.1} parent=1 // pred_check
      _
    $region19: #{tpu_custom_call.1} parent=1 // pred_check_branch
      %30 = sbr.rel (0) target = $region21
    $region20: #{tpu_custom_call.1} parent=1 // pred_region
      %32 = vsyncadd [#allocation3], 0
      %s33 = sshll.u32 %s4, 4
      %s34 = int_to_ptr.hbm [resolvable:$true] %s33
      %s35 = sshll.u32 [#allocation2], 4
      %s36 = int_to_ptr.vmem [resolvable:$true] %s35
      %41 = dma.hbm_to_vmem [thread:$0]  %s34, 6144, %s36, [#allocation3], 384, 384, 24
    $region21: #{tpu_custom_call.1} parent=1 // pred_fallthru
      _
    // Predicated region
    $region22: #{tpu_custom_call.1} parent=1 // pred_check
      _
    $region23: #{tpu_custom_call.1} parent=1 // pred_check_branch
      %43 = sbr.rel (0) target = $region25
    $region24: #{tpu_custom_call.1} parent=1 // pred_region
      _
    $region25: #{tpu_custom_call.1} parent=1 // pred_fallthru
      _
    // Predicated region
    $region26: #{tpu_custom_call.1} parent=1 // pred_check
      _
    $region27: #{tpu_custom_call.1} parent=1 // pred_check_branch
      %45 = sbr.rel (0) target = $region29
    $region28: #{tpu_custom_call.1} parent=1 // pred_region
      _
    $region29: #{tpu_custom_call.1} parent=1 // pred_fallthru
      _
    // Predicated region
    $region30: #{tpu_custom_call.1} parent=1 // pred_check
      _
    $region31: #{tpu_custom_call.1} parent=1 // pred_check_branch
      %47 = sbr.rel (0) target = $region33
    $region32: #{tpu_custom_call.1} parent=1 // pred_region
      %49 = vsyncadd [#allocation6], 0
      %s50 = sshll.u32 %s7, 4
      %s51 = int_to_ptr.hbm [resolvable:$true] %s50
      %s52 = sshll.u32 [#allocation5], 4
      %s53 = int_to_ptr.vmem [resolvable:$true] %s52
      %58 = dma.hbm_to_vmem [thread:$0]  %s51, 6144, %s53, [#allocation6], 384, 384, 24
    $region33: #{tpu_custom_call.1} parent=1 // pred_fallthru
      _
    // Predicated region
    $region34: #{tpu_custom_call.1} parent=1 // pred_check
      _
    $region35: #{tpu_custom_call.1} parent=1 // pred_check_branch
      %60 = sbr.rel (0) target = $region37
    $region36: #{tpu_custom_call.1} parent=1 // pred_region
      %62 = vsyncadd [#allocation6], 0
      %s63 = sshll.u32 %s8, 4
      %s64 = int_to_ptr.hbm [resolvable:$true] %s63
      %s65 = sshll.u32 [#allocation7], 4
      %s66 = int_to_ptr.vmem [resolvable:$true] %s65
      %71 = dma.hbm_to_vmem [thread:$0]  %s64, 6144, %s66, [#allocation6], 384, 384, 24
    $region37: #{tpu_custom_call.1} parent=1 // pred_fallthru
      _
    // Predicated region
    $region38: #{tpu_custom_call.1} parent=1 // pred_check
      _
    $region39: #{tpu_custom_call.1} parent=1 // pred_check_branch
      %73 = sbr.rel (0) target = $region41
    $region40: #{tpu_custom_call.1} parent=1 // pred_region
      _
    $region41: #{tpu_custom_call.1} parent=1 // pred_fallthru
      _
    // Predicated region
    $region42: #{tpu_custom_call.1} parent=1 // pred_check
      _
    $region43: #{tpu_custom_call.1} parent=1 // pred_check_branch
      %75 = sbr.rel (0) target = $region45
    $region44: #{tpu_custom_call.1} parent=1 // pred_region
      _
    $region45: #{tpu_custom_call.1} parent=1 // pred_fallthru
      _
    // Predicated region
    $region46: #{tpu_custom_call.1} parent=1 // pred_check
      _
    $region47: #{tpu_custom_call.1} parent=1 // pred_check_branch
      %77 = sbr.rel (0) target = $region49
    $region48: #{tpu_custom_call.1} parent=1 // pred_region
      _
    $region49: #{tpu_custom_call.1} parent=1 // pred_fallthru
      _
    // Predicated region
    $region50: #{tpu_custom_call.1} parent=1 // pred_check
      _
    $region51: #{tpu_custom_call.1} parent=1 // pred_check_branch
      %79 = sbr.rel (0) target = $region53
    $region52: #{tpu_custom_call.1} parent=1 // pred_region
      _
    $region53: #{tpu_custom_call.1} parent=1 // pred_fallthru
      _
    // Predicated region
    $region54: #{tpu_custom_call.1} parent=1 // pred_check
      _
    $region55: #{tpu_custom_call.1} parent=1 // pred_check_branch
      %81 = sbr.rel (0) target = $region57
    $region56: #{tpu_custom_call.1} parent=1 // pred_region
      %83 = dma.done [#allocation3], 6144
    $region57: #{tpu_custom_call.1} parent=1 // pred_fallthru
      _
    // Predicated region
    $region58: #{tpu_custom_call.1} parent=1 // pred_check
      _
    $region59: #{tpu_custom_call.1} parent=1 // pred_check_branch
      %85 = sbr.rel (0) target = $region61
    $region60: #{tpu_custom_call.1} parent=1 // pred_region
      %87 = dma.done [#allocation6], 6144
    $region61: #{tpu_custom_call.1} parent=1 // pred_fallthru
      _
    // Predicated region
    $region62: #{tpu_custom_call.1} parent=1 // pred_check
      _
    $region63: #{tpu_custom_call.1} parent=1 // pred_check_branch
      %89 = sbr.rel (0) target = $region65
    $region64: #{tpu_custom_call.1} parent=1 // pred_region
      %91 = dma.done [#allocation6], 6144
    $region65: #{tpu_custom_call.1} parent=1 // pred_fallthru
      _
    %v92 = vld [vmem:[%s0] sm:$0xff]
    %v93 = vld [vmem:[%s0 + $0x8] sm:$0xff]
    %vm94 = vcmask 130048
    %v95 = vsel %vm94, %v92, 0.0
    %96 = vadd.xlane.f32.xlu0 %v95
    %v97 = vpop.xlane.xlu0 %96
    %v98 = vsel %vm94, %v93, 0.0
    %99 = vadd.xlane.f32.xlu0 %v98
    %v100 = vpop.xlane.xlu0 %99
    %v101 = vrcp.pop 16.0
    %v102 = vmul.f32 16.0, %v101
    %v103 = vsub.f32 1.0, %v102
    %v104 = vmul.f32 %v101, %v103
    %v105 = vadd.f32 %v101, %v104
    %vm106 = vweird.f32 %v101
    %v107 = vsel %vm106, %v101, %v105
    %v108 = vmul.f32 %v97, %v107
    %v109 = vmul.f32 %v100, %v107
    %v110 = vsub.f32 %v92, %v108
    %v111 = vsub.f32 %v93, %v109
    %v112 = vmul.f32 %v110, %v110
    %v113 = vmul.f32 %v111, %v111
    %v114 = vsel %vm94, %v112, 0.0
    %115 = vadd.xlane.f32.xlu0 %v114
    %v116 = vpop.xlane.xlu0 %115
    %v117 = vsel %vm94, %v113, 0.0
    %118 = vadd.xlane.f32.xlu0 %v117
    %v119 = vpop.xlane.xlu0 %118
    %v120 = vmul.f32 %v116, %v107
    %v121 = vmul.f32 %v119, %v107
    %v122 = vadd.f32 %v120, 1e-05
    %v123 = vadd.f32 %v121, 1e-05
    %v124 = vrsqrt.pop %v122
    %v125 = vmul.f32 %v124, %v122
    %v126 = vmul.f32 %v125, %v124
    %v127 = vmul.f32 0.5, %v126
    %v128 = vsub.f32 1.5, %v127
    %v129 = vmul.f32 %v124, %v128
    %vm130 = vweird.f32 %v122
    %vm131 = vweird.f32 %v124
    %vm132 = vmor %vm130, %vm131
    %v133 = vsel %vm132, %v124, %v129
    %v134 = vrsqrt.pop %v123
    %v135 = vmul.f32 %v134, %v123
    %v136 = vmul.f32 %v135, %v134
    %v137 = vmul.f32 0.5, %v136
    %v138 = vsub.f32 1.5, %v137
    %v139 = vmul.f32 %v134, %v138
    %vm140 = vweird.f32 %v123
    %vm141 = vweird.f32 %v134
    %vm142 = vmor %vm140, %vm141
    %v143 = vsel %vm142, %v134, %v139
    %v144 = vmul.f32 %v110, %v133
    %v145 = vmul.f32 %v111, %v143
    %v146 = vld [vmem:[%s1] sm:$0x1]
    %v148 = vperm.slane %v146, 0
    %v150 = vmul.f32 %v144, %v148
    %v151 = vmul.f32 %v145, %v148
    %v152 = vld [vmem:[%s2] sm:$0x1]
    %v154 = vperm.slane %v152, 0
    %v156 = vadd.f32 %v150, %v154
    %v157 = vadd.f32 %v151, %v154
    %v158 = vld [vmem:[%s3] sm:$0xff]
    %v159 = vld [vmem:[%s3 + $0x8] sm:$0xff]
    %v160 = vld [vmem:[%s3 + $0x10] sm:$0xff]
    %v161 = vld [vmem:[%s3 + $0x18] sm:$0xff]
    %v162 = vld [vmem:[%s3 + $0x20] sm:$0xff]
    %v163 = vld [vmem:[%s3 + $0x28] sm:$0xff]
    %v164 = vld [vmem:[#allocation2] sm:$0xff]
    %v165 = vld [vmem:[#allocation2 + $0x8] sm:$0xff]
    %v166 = vld [vmem:[#allocation2 + $0x10] sm:$0xff]
    %v167 = vld [vmem:[#allocation2 + $0x18] sm:$0xff]
    %v168 = vld [vmem:[#allocation2 + $0x20] sm:$0xff]
    %v169 = vld [vmem:[#allocation2 + $0x28] sm:$0xff]
    %v170 = vld [vmem:[#allocation2 + $0x30] sm:$0xff]
    %v171 = vld [vmem:[#allocation2 + $0x38] sm:$0xff]
    %v172 = vld [vmem:[#allocation2 + $0x40] sm:$0xff]
    %v173 = vld [vmem:[#allocation2 + $0x48] sm:$0xff]
    %v174 = vld [vmem:[#allocation2 + $0x50] sm:$0xff]
    %v175 = vld [vmem:[#allocation2 + $0x58] sm:$0xff]
    %v176 = vld [vmem:[#allocation2 + $0x60] sm:$0xff]
    %v177 = vld [vmem:[#allocation2 + $0x68] sm:$0xff]
    %v178 = vld [vmem:[#allocation2 + $0x70] sm:$0xff]
    %v179 = vld [vmem:[#allocation2 + $0x78] sm:$0xff]
    %v180 = vld [vmem:[#allocation2 + $0x80] sm:$0xff]
    %v181 = vld [vmem:[#allocation2 + $0x88] sm:$0xff]
    %v182 = vld [vmem:[#allocation2 + $0x90] sm:$0xff]
    %v183 = vld [vmem:[#allocation2 + $0x98] sm:$0xff]
    %v184 = vld [vmem:[#allocation2 + $0xa0] sm:$0xff]
    %v185 = vld [vmem:[#allocation2 + $0xa8] sm:$0xff]
    %v186 = vld [vmem:[#allocation2 + $0xb0] sm:$0xff]
    %v187 = vld [vmem:[#allocation2 + $0xb8] sm:$0xff]
    %v188 = vld [vmem:[#allocation2 + $0xc0] sm:$0xff]
    %v189 = vld [vmem:[#allocation2 + $0xc8] sm:$0xff]
    %v190 = vld [vmem:[#allocation2 + $0xd0] sm:$0xff]
    %v191 = vld [vmem:[#allocation2 + $0xd8] sm:$0xff]
    %v192 = vld [vmem:[#allocation2 + $0xe0] sm:$0xff]
    %v193 = vld [vmem:[#allocation2 + $0xe8] sm:$0xff]
    %v194 = vld [vmem:[#allocation2 + $0xf0] sm:$0xff]
    %v195 = vld [vmem:[#allocation2 + $0xf8] sm:$0xff]
    %v196 = vld [vmem:[#allocation2 + $0x100] sm:$0xff]
    %v197 = vld [vmem:[#allocation2 + $0x108] sm:$0xff]
    %v198 = vld [vmem:[#allocation2 + $0x110] sm:$0xff]
    %v199 = vld [vmem:[#allocation2 + $0x118] sm:$0xff]
    %v200 = vld [vmem:[#allocation2 + $0x120] sm:$0xff]
    %v201 = vld [vmem:[#allocation2 + $0x128] sm:$0xff]
    %v202 = vld [vmem:[#allocation2 + $0x130] sm:$0xff]
    %v203 = vld [vmem:[#allocation2 + $0x138] sm:$0xff]
    %v204 = vld [vmem:[#allocation2 + $0x140] sm:$0xff]
    %v205 = vld [vmem:[#allocation2 + $0x148] sm:$0xff]
    %v206 = vld [vmem:[#allocation2 + $0x150] sm:$0xff]
    %v207 = vld [vmem:[#allocation2 + $0x158] sm:$0xff]
    %v208 = vld [vmem:[#allocation2 + $0x160] sm:$0xff]
    %v209 = vld [vmem:[#allocation2 + $0x168] sm:$0xff]
    %v210 = vld [vmem:[#allocation2 + $0x170] sm:$0xff]
    %v211 = vld [vmem:[#allocation2 + $0x178] sm:$0xff]
    %v212 = vld [vmem:[%s5] sm:$0x7]
    %v213 = vld [vmem:[%s6] sm:$0x1]
    %v215 = vperm.slane %v212, 0
    %v216 = vperm.slane %v212, 1
    %v217 = vperm.slane %v212, 2
    %v222 = vsel %vm94, %v156, 0
    %v225 = vsel %vm94, %v157, 0
    %227 = vmatpush.msra.mxu0 0.0
    %228 = vmatpush.msra.mxu0 0.0
    %229 = vmatpush.msra.mxu0 0.0
    %230 = vmatpush.msra.mxu0 0.0
    %231 = vmatpush.msra.mxu0 0.0
    %232 = vmatpush.msra.mxu0 0.0
    %233 = vmatpush.msra.mxu0 0.0
    %234 = vmatpush.msra.mxu0 0.0
    %235 = vmatpush.msra.mxu0 0.0
    %236 = vmatpush.msra.mxu0 0.0
    %237 = vmatpush.msra.mxu0 0.0
    %238 = vmatpush.msra.mxu0 0.0
    %239 = vmatpush.msra.mxu0 0.0
    %240 = vmatpush.msra.mxu0 0.0
    %241 = vmatpush.msra.mxu0 %v161
    %242 = vmatpush.msra.mxu0 %v158
    %243 = vmatmul.f32.gmra.mxu0 %v222
    %v244 = vpop.f32.mrf.mxu0
    %v245 = vadd.f32 %v215, %v244
    %246 = vmatmul.f32.gmra.mxu0 %v225
    %v247 = vpop.f32.mrf.mxu0
    %v248 = vadd.f32 %v215, %v247
    %249 = vdwg.mxu0
    %250 = vmatpush.msra.mxu0 0.0
    %251 = vmatpush.msra.mxu0 0.0
    %252 = vmatpush.msra.mxu0 0.0
    %253 = vmatpush.msra.mxu0 0.0
    %254 = vmatpush.msra.mxu0 0.0
    %255 = vmatpush.msra.mxu0 0.0
    %256 = vmatpush.msra.mxu0 0.0
    %257 = vmatpush.msra.mxu0 0.0
    %258 = vmatpush.msra.mxu0 0.0
    %259 = vmatpush.msra.mxu0 0.0
    %260 = vmatpush.msra.mxu0 0.0
    %261 = vmatpush.msra.mxu0 0.0
    %262 = vmatpush.msra.mxu0 0.0
    %263 = vmatpush.msra.mxu0 0.0
    %264 = vmatpush.msra.mxu0 %v162
    %265 = vmatpush.msra.mxu0 %v159
    %266 = vmatmul.f32.gmra.mxu0 %v222
    %v267 = vpop.f32.mrf.mxu0
    %v268 = vadd.f32 %v216, %v267
    %269 = vmatmul.f32.gmra.mxu0 %v225
    %v270 = vpop.f32.mrf.mxu0
    %v271 = vadd.f32 %v216, %v270
    %272 = vdwg.mxu0
    %273 = vmatpush.msra.mxu0 0.0
    %274 = vmatpush.msra.mxu0 0.0
    %275 = vmatpush.msra.mxu0 0.0
    %276 = vmatpush.msra.mxu0 0.0
    %277 = vmatpush.msra.mxu0 0.0
    %278 = vmatpush.msra.mxu0 0.0
    %279 = vmatpush.msra.mxu0 0.0
    %280 = vmatpush.msra.mxu0 0.0
    %281 = vmatpush.msra.mxu0 0.0
    %282 = vmatpush.msra.mxu0 0.0
    %283 = vmatpush.msra.mxu0 0.0
    %284 = vmatpush.msra.mxu0 0.0
    %285 = vmatpush.msra.mxu0 0.0
    %286 = vmatpush.msra.mxu0 0.0
    %287 = vmatpush.msra.mxu0 %v163
    %288 = vmatpush.msra.mxu0 %v160
    %289 = vmatmul.f32.gmra.mxu0 %v222
    %v290 = vpop.f32.mrf.mxu0
    %v291 = vadd.f32 %v217, %v290
    %292 = vmatmul.f32.gmra.mxu0 %v225
    %v293 = vpop.f32.mrf.mxu0
    %v294 = vadd.f32 %v217, %v293
    %295 = vdwg.mxu0
    %296 = vmatpush.msra.mxu0 %v209
    %297 = vmatpush.msra.mxu0 %v206
    %298 = vmatpush.msra.mxu0 %v203
    %299 = vmatpush.msra.mxu0 %v200
    %300 = vmatpush.msra.mxu0 %v197
    %301 = vmatpush.msra.mxu0 %v194
    %302 = vmatpush.msra.mxu0 %v191
    %303 = vmatpush.msra.mxu0 %v188
    %304 = vmatpush.msra.mxu0 %v185
    %305 = vmatpush.msra.mxu0 %v182
    %306 = vmatpush.msra.mxu0 %v179
    %307 = vmatpush.msra.mxu0 %v176
    %308 = vmatpush.msra.mxu0 %v173
    %309 = vmatpush.msra.mxu0 %v170
    %310 = vmatpush.msra.mxu0 %v167
    %311 = vmatpush.msra.mxu0 %v164
    %312 = vmatmul.f32.gmra.mxu0 0.0
    %v313 = vpop.f32.mrf.mxu0
    %v314 = vadd.f32 0.0, %v313
    %315 = vdwg.mxu0
    %316 = vmatpush.msra.mxu0 %v210
    %317 = vmatpush.msra.mxu0 %v207
    %318 = vmatpush.msra.mxu0 %v204
    %319 = vmatpush.msra.mxu0 %v201
    %320 = vmatpush.msra.mxu0 %v198
    %321 = vmatpush.msra.mxu0 %v195
    %322 = vmatpush.msra.mxu0 %v192
    %323 = vmatpush.msra.mxu0 %v189
    %324 = vmatpush.msra.mxu0 %v186
    %325 = vmatpush.msra.mxu0 %v183
    %326 = vmatpush.msra.mxu0 %v180
    %327 = vmatpush.msra.mxu0 %v177
    %328 = vmatpush.msra.mxu0 %v174
    %329 = vmatpush.msra.mxu0 %v171
    %330 = vmatpush.msra.mxu0 %v168
    %331 = vmatpush.msra.mxu0 %v165
    %332 = vmatmul.f32.gmra.mxu0 0.0
    %v333 = vpop.f32.mrf.mxu0
    %v334 = vadd.f32 0.0, %v333
    %335 = vdwg.mxu0
    %336 = vmatpush.msra.mxu0 %v211
    %337 = vmatpush.msra.mxu0 %v208
    %338 = vmatpush.msra.mxu0 %v205
    %339 = vmatpush.msra.mxu0 %v202
    %340 = vmatpush.msra.mxu0 %v199
    %341 = vmatpush.msra.mxu0 %v196
    %342 = vmatpush.msra.mxu0 %v193
    %343 = vmatpush.msra.mxu0 %v190
    %344 = vmatpush.msra.mxu0 %v187
    %345 = vmatpush.msra.mxu0 %v184
    %346 = vmatpush.msra.mxu0 %v181
    %347 = vmatpush.msra.mxu0 %v178
    %348 = vmatpush.msra.mxu0 %v175
    %349 = vmatpush.msra.mxu0 %v172
    %350 = vmatpush.msra.mxu0 %v169
    %351 = vmatpush.msra.mxu0 %v166
    %352 = vmatmul.f32.gmra.mxu0 0.0
    %v353 = vpop.f32.mrf.mxu0
    %v354 = vadd.f32 0.0, %v353
    %355 = vdwg.mxu0
    %v356 = vadd.f32 %v245, %v314
    %v357 = vxor.u32 %v356, 2147483648
    %v358 = vmul.f32 %v357, 1.442695
    %v359 = vpow.pop %v358
    %v360 = vadd.f32 %v359, 1.0
    %v361 = vrcp.pop %v360
    %v362 = vmul.f32 %v360, %v361
    %v363 = vsub.f32 1.0, %v362
    %v364 = vmul.f32 %v361, %v363
    %v365 = vadd.f32 %v361, %v364
    %vm366 = vweird.f32 %v360
    %vm367 = vweird.f32 %v361
    %vm368 = vmor %vm366, %vm367
    %v369 = vsel %vm368, %v361, %v365
    %v370 = vand.u32 2147483647, %v360
    %vm371 = vcmp.eq.f32.partialorder %v370, 8.507059e+37
    %v372 = vand.u32 %v360, 2147483648
    %v373 = vor.u32 1.1754944e-38, %v372
    %v374 = vsel %vm371, %v373, %v369
    %v375 = vmul.f32 1.0, %v374
    %v376 = vadd.f32 %v268, %v334
    %v377 = vxor.u32 %v376, 2147483648
    %v378 = vmul.f32 %v377, 1.442695
    %v379 = vpow.pop %v378
    %v380 = vadd.f32 %v379, 1.0
    %v381 = vrcp.pop %v380
    %v382 = vmul.f32 %v380, %v381
    %v383 = vsub.f32 1.0, %v382
    %v384 = vmul.f32 %v381, %v383
    %v385 = vadd.f32 %v381, %v384
    %vm386 = vweird.f32 %v380
    %vm387 = vweird.f32 %v381
    %vm388 = vmor %vm386, %vm387
    %v389 = vsel %vm388, %v381, %v385
    %v390 = vand.u32 2147483647, %v380
    %vm391 = vcmp.eq.f32.partialorder %v390, 8.507059e+37
    %v392 = vand.u32 %v380, 2147483648
    %v393 = vor.u32 1.1754944e-38, %v392
    %v394 = vsel %vm391, %v393, %v389
    %v395 = vmul.f32 1.0, %v394
    %v397 = vperm.slane %v213, 0
    %v399 = vadd.f32 %v354, %v397
    %v400 = vmul.f32 %v375, %v399
    %v401 = vadd.f32 %v291, %v400
    %v402 = vtanh.pop %v401
    %v403 = vsub.f32 1.0, %v395
    %v404 = vmul.f32 %v403, %v402
    %v405 = vmul.f32 %v395, 0.0
    %v406 = vadd.f32 %v404, %v405
    %407 = vmatpush.msra.mxu0 %v209
    %408 = vmatpush.msra.mxu0 %v206
    %409 = vmatpush.msra.mxu0 %v203
    %410 = vmatpush.msra.mxu0 %v200
    %411 = vmatpush.msra.mxu0 %v197
    %412 = vmatpush.msra.mxu0 %v194
    %413 = vmatpush.msra.mxu0 %v191
    %414 = vmatpush.msra.mxu0 %v188
    %415 = vmatpush.msra.mxu0 %v185
    %416 = vmatpush.msra.mxu0 %v182
    %417 = vmatpush.msra.mxu0 %v179
    %418 = vmatpush.msra.mxu0 %v176
    %419 = vmatpush.msra.mxu0 %v173
    %420 = vmatpush.msra.mxu0 %v170
    %421 = vmatpush.msra.mxu0 %v167
    %422 = vmatpush.msra.mxu0 %v164
    %423 = vmatmul.f32.gmra.mxu0 %v406
    %v424 = vpop.f32.mrf.mxu0
    %v425 = vadd.f32 0.0, %v424
    %426 = vdwg.mxu0
    %427 = vmatpush.msra.mxu0 %v210
    %428 = vmatpush.msra.mxu0 %v207
    %429 = vmatpush.msra.mxu0 %v204
    %430 = vmatpush.msra.mxu0 %v201
    %431 = vmatpush.msra.mxu0 %v198
    %432 = vmatpush.msra.mxu0 %v195
    %433 = vmatpush.msra.mxu0 %v192
    %434 = vmatpush.msra.mxu0 %v189
    %435 = vmatpush.msra.mxu0 %v186
    %436 = vmatpush.msra.mxu0 %v183
    %437 = vmatpush.msra.mxu0 %v180
    %438 = vmatpush.msra.mxu0 %v177
    %439 = vmatpush.msra.mxu0 %v174
    %440 = vmatpush.msra.mxu0 %v171
    %441 = vmatpush.msra.mxu0 %v168
    %442 = vmatpush.msra.mxu0 %v165
    %443 = vmatmul.f32.gmra.mxu0 %v406
    %v444 = vpop.f32.mrf.mxu0
    %v445 = vadd.f32 0.0, %v444
    %446 = vdwg.mxu0
    %447 = vmatpush.msra.mxu0 %v211
    %448 = vmatpush.msra.mxu0 %v208
    %449 = vmatpush.msra.mxu0 %v205
    %450 = vmatpush.msra.mxu0 %v202
    %451 = vmatpush.msra.mxu0 %v199
    %452 = vmatpush.msra.mxu0 %v196
    %453 = vmatpush.msra.mxu0 %v193
    %454 = vmatpush.msra.mxu0 %v190
    %455 = vmatpush.msra.mxu0 %v187
    %456 = vmatpush.msra.mxu0 %v184
    %457 = vmatpush.msra.mxu0 %v181
    %458 = vmatpush.msra.mxu0 %v178
    %459 = vmatpush.msra.mxu0 %v175
    %460 = vmatpush.msra.mxu0 %v172
    %461 = vmatpush.msra.mxu0 %v169
    %462 = vmatpush.msra.mxu0 %v166
    %463 = vmatmul.f32.gmra.mxu0 %v406
    %v464 = vpop.f32.mrf.mxu0
    %v465 = vadd.f32 0.0, %v464
    %466 = vdwg.mxu0
    %v468 = vrot.slane %v425, 6
    %v470 = vadd.f32 %v245, %v468
    %v471 = vxor.u32 %v470, 2147483648
    %v472 = vmul.f32 %v471, 1.442695
    %v473 = vpow.pop %v472
    %v474 = vadd.f32 %v473, 1.0
    %v475 = vrcp.pop %v474
    %v476 = vmul.f32 %v474, %v475
    %v477 = vsub.f32 1.0, %v476
    %v478 = vmul.f32 %v475, %v477
    %v479 = vadd.f32 %v475, %v478
    %vm480 = vweird.f32 %v474
    %vm481 = vweird.f32 %v475
    %vm482 = vmor %vm480, %vm481
    %v483 = vsel %vm482, %v475, %v479
    %v484 = vand.u32 2147483647, %v474
    %vm485 = vcmp.eq.f32.partialorder %v484, 8.507059e+37
    %v486 = vand.u32 %v474, 2147483648
    %v487 = vor.u32 1.1754944e-38, %v486
    %v488 = vsel %vm485, %v487, %v483
    %v489 = vmul.f32 1.0, %v488
    %v491 = vrot.slane %v445, 6
    %v493 = vadd.f32 %v268, %v491
    %v494 = vxor.u32 %v493, 2147483648
    %v495 = vmul.f32 %v494, 1.442695
    %v496 = vpow.pop %v495
    %v497 = vadd.f32 %v496, 1.0
    %v498 = vrcp.pop %v497
    %v499 = vmul.f32 %v497, %v498
    %v500 = vsub.f32 1.0, %v499
    %v501 = vmul.f32 %v498, %v500
    %v502 = vadd.f32 %v498, %v501
    %vm503 = vweird.f32 %v497
    %vm504 = vweird.f32 %v498
    %vm505 = vmor %vm503, %vm504
    %v506 = vsel %vm505, %v498, %v502
    %v507 = vand.u32 2147483647, %v497
    %vm508 = vcmp.eq.f32.partialorder %v507, 8.507059e+37
    %v509 = vand.u32 %v497, 2147483648
    %v510 = vor.u32 1.1754944e-38, %v509
    %v511 = vsel %vm508, %v510, %v506
    %v512 = vmul.f32 1.0, %v511
    %v513 = vadd.f32 %v465, %v397
    %v515 = vrot.slane %v513, 6
    %v517 = vmul.f32 %v489, %v515
    %v518 = vadd.f32 %v291, %v517
    %v519 = vtanh.pop %v518
    %v520 = vsub.f32 1.0, %v512
    %v521 = vmul.f32 %v520, %v519
    %v523 = vrot.slane %v406, 6
    %v525 = vmul.f32 %v512, %v523
    %v526 = vadd.f32 %v521, %v525
    %v528 = vrot.slane %v526, 2
    %530 = vmatpush.msra.mxu0 %v209
    %531 = vmatpush.msra.mxu0 %v206
    %532 = vmatpush.msra.mxu0 %v203
    %533 = vmatpush.msra.mxu0 %v200
    %534 = vmatpush.msra.mxu0 %v197
    %535 = vmatpush.msra.mxu0 %v194
    %536 = vmatpush.msra.mxu0 %v191
    %537 = vmatpush.msra.mxu0 %v188
    %538 = vmatpush.msra.mxu0 %v185
    %539 = vmatpush.msra.mxu0 %v182
    %540 = vmatpush.msra.mxu0 %v179
    %541 = vmatpush.msra.mxu0 %v176
    %542 = vmatpush.msra.mxu0 %v173
    %543 = vmatpush.msra.mxu0 %v170
    %544 = vmatpush.msra.mxu0 %v167
    %545 = vmatpush.msra.mxu0 %v164
    %546 = vmatmul.f32.gmra.mxu0 %v528
    %v547 = vpop.f32.mrf.mxu0
    %v548 = vadd.f32 0.0, %v547
    %549 = vdwg.mxu0
    %550 = vmatpush.msra.mxu0 %v210
    %551 = vmatpush.msra.mxu0 %v207
    %552 = vmatpush.msra.mxu0 %v204
    %553 = vmatpush.msra.mxu0 %v201
    %554 = vmatpush.msra.mxu0 %v198
    %555 = vmatpush.msra.mxu0 %v195
    %556 = vmatpush.msra.mxu0 %v192
    %557 = vmatpush.msra.mxu0 %v189
    %558 = vmatpush.msra.mxu0 %v186
    %559 = vmatpush.msra.mxu0 %v183
    %560 = vmatpush.msra.mxu0 %v180
    %561 = vmatpush.msra.mxu0 %v177
    %562 = vmatpush.msra.mxu0 %v174
    %563 = vmatpush.msra.mxu0 %v171
    %564 = vmatpush.msra.mxu0 %v168
    %565 = vmatpush.msra.mxu0 %v165
    %566 = vmatmul.f32.gmra.mxu0 %v528
    %v567 = vpop.f32.mrf.mxu0
    %v568 = vadd.f32 0.0, %v567
    %569 = vdwg.mxu0
    %570 = vmatpush.msra.mxu0 %v211
    %571 = vmatpush.msra.mxu0 %v208
    %572 = vmatpush.msra.mxu0 %v205
    %573 = vmatpush.msra.mxu0 %v202
    %574 = vmatpush.msra.mxu0 %v199
    %575 = vmatpush.msra.mxu0 %v196
    %576 = vmatpush.msra.mxu0 %v193
    %577 = vmatpush.msra.mxu0 %v190
    %578 = vmatpush.msra.mxu0 %v187
    %579 = vmatpush.msra.mxu0 %v184
    %580 = vmatpush.msra.mxu0 %v181
    %581 = vmatpush.msra.mxu0 %v178
    %582 = vmatpush.msra.mxu0 %v175
    %583 = vmatpush.msra.mxu0 %v172
    %584 = vmatpush.msra.mxu0 %v169
    %585 = vmatpush.msra.mxu0 %v166
    %586 = vmatmul.f32.gmra.mxu0 %v528
    %v587 = vpop.f32.mrf.mxu0
    %v588 = vadd.f32 0.0, %v587
    %589 = vdwg.mxu0
    %v591 = vrot.slane %v548, 4
    %v593 = vadd.f32 %v245, %v591
    %v594 = vxor.u32 %v593, 2147483648
    %v595 = vmul.f32 %v594, 1.442695
    %v596 = vpow.pop %v595
    %v597 = vadd.f32 %v596, 1.0
    %v598 = vrcp.pop %v597
    %v599 = vmul.f32 %v597, %v598
    %v600 = vsub.f32 1.0, %v599
    %v601 = vmul.f32 %v598, %v600
    %v602 = vadd.f32 %v598, %v601
    %vm603 = vweird.f32 %v597
    %vm604 = vweird.f32 %v598
    %vm605 = vmor %vm603, %vm604
    %v606 = vsel %vm605, %v598, %v602
    %v607 = vand.u32 2147483647, %v597
    %vm608 = vcmp.eq.f32.partialorder %v607, 8.507059e+37
    %v609 = vand.u32 %v597, 2147483648
    %v610 = vor.u32 1.1754944e-38, %v609
    %v611 = vsel %vm608, %v610, %v606
    %v612 = vmul.f32 1.0, %v611
    %v614 = vrot.slane %v568, 4
    %v616 = vadd.f32 %v268, %v614
    %v617 = vxor.u32 %v616, 2147483648
    %v618 = vmul.f32 %v617, 1.442695
    %v619 = vpow.pop %v618
    %v620 = vadd.f32 %v619, 1.0
    %v621 = vrcp.pop %v620
    %v622 = vmul.f32 %v620, %v621
    %v623 = vsub.f32 1.0, %v622
    %v624 = vmul.f32 %v621, %v623
    %v625 = vadd.f32 %v621, %v624
    %vm626 = vweird.f32 %v620
    %vm627 = vweird.f32 %v621
    %vm628 = vmor %vm626, %vm627
    %v629 = vsel %vm628, %v621, %v625
    %v630 = vand.u32 2147483647, %v620
    %vm631 = vcmp.eq.f32.partialorder %v630, 8.507059e+37
    %v632 = vand.u32 %v620, 2147483648
    %v633 = vor.u32 1.1754944e-38, %v632
    %v634 = vsel %vm631, %v633, %v629
    %v635 = vmul.f32 1.0, %v634
    %v636 = vadd.f32 %v588, %v397
    %v638 = vrot.slane %v636, 4
    %v640 = vmul.f32 %v612, %v638
    %v641 = vadd.f32 %v291, %v640
    %v642 = vtanh.pop %v641
    %v643 = vsub.f32 1.0, %v635
    %v644 = vmul.f32 %v643, %v642
    %v645 = vrot.slane %v526, 6
    %v647 = vmul.f32 %v635, %v645
    %v648 = vadd.f32 %v644, %v647
    %v650 = vrot.slane %v648, 4
    %652 = vmatpush.msra.mxu0 %v209
    %653 = vmatpush.msra.mxu0 %v206
    %654 = vmatpush.msra.mxu0 %v203
    %655 = vmatpush.msra.mxu0 %v200
    %656 = vmatpush.msra.mxu0 %v197
    %657 = vmatpush.msra.mxu0 %v194
    %658 = vmatpush.msra.mxu0 %v191
    %659 = vmatpush.msra.mxu0 %v188
    %660 = vmatpush.msra.mxu0 %v185
    %661 = vmatpush.msra.mxu0 %v182
    %662 = vmatpush.msra.mxu0 %v179
    %663 = vmatpush.msra.mxu0 %v176
    %664 = vmatpush.msra.mxu0 %v173
    %665 = vmatpush.msra.mxu0 %v170
    %666 = vmatpush.msra.mxu0 %v167
    %667 = vmatpush.msra.mxu0 %v164
    %668 = vmatmul.f32.gmra.mxu0 %v650
    %v669 = vpop.f32.mrf.mxu0
    %v670 = vadd.f32 0.0, %v669
    %671 = vdwg.mxu0
    %672 = vmatpush.msra.mxu0 %v210
    %673 = vmatpush.msra.mxu0 %v207
    %674 = vmatpush.msra.mxu0 %v204
    %675 = vmatpush.msra.mxu0 %v201
    %676 = vmatpush.msra.mxu0 %v198
    %677 = vmatpush.msra.mxu0 %v195
    %678 = vmatpush.msra.mxu0 %v192
    %679 = vmatpush.msra.mxu0 %v189
    %680 = vmatpush.msra.mxu0 %v186
    %681 = vmatpush.msra.mxu0 %v183
    %682 = vmatpush.msra.mxu0 %v180
    %683 = vmatpush.msra.mxu0 %v177
    %684 = vmatpush.msra.mxu0 %v174
    %685 = vmatpush.msra.mxu0 %v171
    %686 = vmatpush.msra.mxu0 %v168
    %687 = vmatpush.msra.mxu0 %v165
    %688 = vmatmul.f32.gmra.mxu0 %v650
    %v689 = vpop.f32.mrf.mxu0
    %v690 = vadd.f32 0.0, %v689
    %691 = vdwg.mxu0
    %692 = vmatpush.msra.mxu0 %v211
    %693 = vmatpush.msra.mxu0 %v208
    %694 = vmatpush.msra.mxu0 %v205
    %695 = vmatpush.msra.mxu0 %v202
    %696 = vmatpush.msra.mxu0 %v199
    %697 = vmatpush.msra.mxu0 %v196
    %698 = vmatpush.msra.mxu0 %v193
    %699 = vmatpush.msra.mxu0 %v190
    %700 = vmatpush.msra.mxu0 %v187
    %701 = vmatpush.msra.mxu0 %v184
    %702 = vmatpush.msra.mxu0 %v181
    %703 = vmatpush.msra.mxu0 %v178
    %704 = vmatpush.msra.mxu0 %v175
    %705 = vmatpush.msra.mxu0 %v172
    %706 = vmatpush.msra.mxu0 %v169
    %707 = vmatpush.msra.mxu0 %v166
    %708 = vmatmul.f32.gmra.mxu0 %v650
    %v709 = vpop.f32.mrf.mxu0
    %v710 = vadd.f32 0.0, %v709
    %711 = vdwg.mxu0
    %v713 = vrot.slane %v670, 2
    %v715 = vadd.f32 %v245, %v713
    %v716 = vxor.u32 %v715, 2147483648
    %v717 = vmul.f32 %v716, 1.442695
    %v718 = vpow.pop %v717
    %v719 = vadd.f32 %v718, 1.0
    %v720 = vrcp.pop %v719
    %v721 = vmul.f32 %v719, %v720
    %v722 = vsub.f32 1.0, %v721
    %v723 = vmul.f32 %v720, %v722
    %v724 = vadd.f32 %v720, %v723
    %vm725 = vweird.f32 %v719
    %vm726 = vweird.f32 %v720
    %vm727 = vmor %vm725, %vm726
    %v728 = vsel %vm727, %v720, %v724
    %v729 = vand.u32 2147483647, %v719
    %vm730 = vcmp.eq.f32.partialorder %v729, 8.507059e+37
    %v731 = vand.u32 %v719, 2147483648
    %v732 = vor.u32 1.1754944e-38, %v731
    %v733 = vsel %vm730, %v732, %v728
    %v734 = vmul.f32 1.0, %v733
    %v736 = vrot.slane %v690, 2
    %v738 = vadd.f32 %v268, %v736
    %v739 = vxor.u32 %v738, 2147483648
    %v740 = vmul.f32 %v739, 1.442695
    %v741 = vpow.pop %v740
    %v742 = vadd.f32 %v741, 1.0
    %v743 = vrcp.pop %v742
    %v744 = vmul.f32 %v742, %v743
    %v745 = vsub.f32 1.0, %v744
    %v746 = vmul.f32 %v743, %v745
    %v747 = vadd.f32 %v743, %v746
    %vm748 = vweird.f32 %v742
    %vm749 = vweird.f32 %v743
    %vm750 = vmor %vm748, %vm749
    %v751 = vsel %vm750, %v743, %v747
    %v752 = vand.u32 2147483647, %v742
    %vm753 = vcmp.eq.f32.partialorder %v752, 8.507059e+37
    %v754 = vand.u32 %v742, 2147483648
    %v755 = vor.u32 1.1754944e-38, %v754
    %v756 = vsel %vm753, %v755, %v751
    %v757 = vmul.f32 1.0, %v756
    %v758 = vadd.f32 %v710, %v397
    %v760 = vrot.slane %v758, 2
    %v762 = vmul.f32 %v734, %v760
    %v763 = vadd.f32 %v291, %v762
    %v764 = vtanh.pop %v763
    %v765 = vsub.f32 1.0, %v757
    %v766 = vmul.f32 %v765, %v764
    %v767 = vrot.slane %v648, 6
    %v769 = vmul.f32 %v757, %v767
    %v770 = vadd.f32 %v766, %v769
    %v772 = vrot.slane %v770, 6
    %774 = vmatpush.msra.mxu0 %v209
    %775 = vmatpush.msra.mxu0 %v206
    %776 = vmatpush.msra.mxu0 %v203
    %777 = vmatpush.msra.mxu0 %v200
    %778 = vmatpush.msra.mxu0 %v197
    %779 = vmatpush.msra.mxu0 %v194
    %780 = vmatpush.msra.mxu0 %v191
    %781 = vmatpush.msra.mxu0 %v188
    %782 = vmatpush.msra.mxu0 %v185
    %783 = vmatpush.msra.mxu0 %v182
    %784 = vmatpush.msra.mxu0 %v179
    %785 = vmatpush.msra.mxu0 %v176
    %786 = vmatpush.msra.mxu0 %v173
    %787 = vmatpush.msra.mxu0 %v170
    %788 = vmatpush.msra.mxu0 %v167
    %789 = vmatpush.msra.mxu0 %v164
    %790 = vmatmul.f32.gmra.mxu0 %v772
    %v791 = vpop.f32.mrf.mxu0
    %v792 = vadd.f32 0.0, %v791
    %793 = vdwg.mxu0
    %794 = vmatpush.msra.mxu0 %v210
    %795 = vmatpush.msra.mxu0 %v207
    %796 = vmatpush.msra.mxu0 %v204
    %797 = vmatpush.msra.mxu0 %v201
    %798 = vmatpush.msra.mxu0 %v198
    %799 = vmatpush.msra.mxu0 %v195
    %800 = vmatpush.msra.mxu0 %v192
    %801 = vmatpush.msra.mxu0 %v189
    %802 = vmatpush.msra.mxu0 %v186
    %803 = vmatpush.msra.mxu0 %v183
    %804 = vmatpush.msra.mxu0 %v180
    %805 = vmatpush.msra.mxu0 %v177
    %806 = vmatpush.msra.mxu0 %v174
    %807 = vmatpush.msra.mxu0 %v171
    %808 = vmatpush.msra.mxu0 %v168
    %809 = vmatpush.msra.mxu0 %v165
    %810 = vmatmul.f32.gmra.mxu0 %v772
    %v811 = vpop.f32.mrf.mxu0
    %v812 = vadd.f32 0.0, %v811
    %813 = vdwg.mxu0
    %814 = vmatpush.msra.mxu0 %v211
    %815 = vmatpush.msra.mxu0 %v208
    %816 = vmatpush.msra.mxu0 %v205
    %817 = vmatpush.msra.mxu0 %v202
    %818 = vmatpush.msra.mxu0 %v199
    %819 = vmatpush.msra.mxu0 %v196
    %820 = vmatpush.msra.mxu0 %v193
    %821 = vmatpush.msra.mxu0 %v190
    %822 = vmatpush.msra.mxu0 %v187
    %823 = vmatpush.msra.mxu0 %v184
    %824 = vmatpush.msra.mxu0 %v181
    %825 = vmatpush.msra.mxu0 %v178
    %826 = vmatpush.msra.mxu0 %v175
    %827 = vmatpush.msra.mxu0 %v172
    %828 = vmatpush.msra.mxu0 %v169
    %829 = vmatpush.msra.mxu0 %v166
    %830 = vmatmul.f32.gmra.mxu0 %v772
    %v831 = vpop.f32.mrf.mxu0
    %v832 = vadd.f32 0.0, %v831
    %833 = vdwg.mxu0
    %v834 = vadd.f32 %v248, %v792
    %v835 = vxor.u32 %v834, 2147483648
    %v836 = vmul.f32 %v835, 1.442695
    %v837 = vpow.pop %v836
    %v838 = vadd.f32 %v837, 1.0
    %v839 = vrcp.pop %v838
    %v840 = vmul.f32 %v838, %v839
    %v841 = vsub.f32 1.0, %v840
    %v842 = vmul.f32 %v839, %v841
    %v843 = vadd.f32 %v839, %v842
    %vm844 = vweird.f32 %v838
    %vm845 = vweird.f32 %v839
    %vm846 = vmor %vm844, %vm845
    %v847 = vsel %vm846, %v839, %v843
    %v848 = vand.u32 2147483647, %v838
    %vm849 = vcmp.eq.f32.partialorder %v848, 8.507059e+37
    %v850 = vand.u32 %v838, 2147483648
    %v851 = vor.u32 1.1754944e-38, %v850
    %v852 = vsel %vm849, %v851, %v847
    %v853 = vmul.f32 1.0, %v852
    %v854 = vadd.f32 %v271, %v812
    %v855 = vxor.u32 %v854, 2147483648
    %v856 = vmul.f32 %v855, 1.442695
    %v857 = vpow.pop %v856
    %v858 = vadd.f32 %v857, 1.0
    %v859 = vrcp.pop %v858
    %v860 = vmul.f32 %v858, %v859
    %v861 = vsub.f32 1.0, %v860
    %v862 = vmul.f32 %v859, %v861
    %v863 = vadd.f32 %v859, %v862
    %vm864 = vweird.f32 %v858
    %vm865 = vweird.f32 %v859
    %vm866 = vmor %vm864, %vm865
    %v867 = vsel %vm866, %v859, %v863
    %v868 = vand.u32 2147483647, %v858
    %vm869 = vcmp.eq.f32.partialorder %v868, 8.507059e+37
    %v870 = vand.u32 %v858, 2147483648
    %v871 = vor.u32 1.1754944e-38, %v870
    %v872 = vsel %vm869, %v871, %v867
    %v873 = vmul.f32 1.0, %v872
    %v874 = vadd.f32 %v832, %v397
    %v875 = vmul.f32 %v853, %v874
    %v876 = vadd.f32 %v294, %v875
    %v877 = vtanh.pop %v876
    %v878 = vsub.f32 1.0, %v873
    %v879 = vmul.f32 %v878, %v877
    %v880 = vmul.f32 %v873, %v772
    %v881 = vadd.f32 %v879, %v880
    %882 = vmatpush.msra.mxu0 %v209
    %883 = vmatpush.msra.mxu0 %v206
    %884 = vmatpush.msra.mxu0 %v203
    %885 = vmatpush.msra.mxu0 %v200
    %886 = vmatpush.msra.mxu0 %v197
    %887 = vmatpush.msra.mxu0 %v194
    %888 = vmatpush.msra.mxu0 %v191
    %889 = vmatpush.msra.mxu0 %v188
    %890 = vmatpush.msra.mxu0 %v185
    %891 = vmatpush.msra.mxu0 %v182
    %892 = vmatpush.msra.mxu0 %v179
    %893 = vmatpush.msra.mxu0 %v176
    %894 = vmatpush.msra.mxu0 %v173
    %895 = vmatpush.msra.mxu0 %v170
    %896 = vmatpush.msra.mxu0 %v167
    %897 = vmatpush.msra.mxu0 %v164
    %898 = vmatmul.f32.gmra.mxu0 %v881
    %v899 = vpop.f32.mrf.mxu0
    %v900 = vadd.f32 0.0, %v899
    %901 = vdwg.mxu0
    %902 = vmatpush.msra.mxu0 %v210
    %903 = vmatpush.msra.mxu0 %v207
    %904 = vmatpush.msra.mxu0 %v204
    %905 = vmatpush.msra.mxu0 %v201
    %906 = vmatpush.msra.mxu0 %v198
    %907 = vmatpush.msra.mxu0 %v195
    %908 = vmatpush.msra.mxu0 %v192
    %909 = vmatpush.msra.mxu0 %v189
    %910 = vmatpush.msra.mxu0 %v186
    %911 = vmatpush.msra.mxu0 %v183
    %912 = vmatpush.msra.mxu0 %v180
    %913 = vmatpush.msra.mxu0 %v177
    %914 = vmatpush.msra.mxu0 %v174
    %915 = vmatpush.msra.mxu0 %v171
    %916 = vmatpush.msra.mxu0 %v168
    %917 = vmatpush.msra.mxu0 %v165
    %918 = vmatmul.f32.gmra.mxu0 %v881
    %v919 = vpop.f32.mrf.mxu0
    %v920 = vadd.f32 0.0, %v919
    %921 = vdwg.mxu0
    %922 = vmatpush.msra.mxu0 %v211
    %923 = vmatpush.msra.mxu0 %v208
    %924 = vmatpush.msra.mxu0 %v205
    %925 = vmatpush.msra.mxu0 %v202
    %926 = vmatpush.msra.mxu0 %v199
    %927 = vmatpush.msra.mxu0 %v196
    %928 = vmatpush.msra.mxu0 %v193
    %929 = vmatpush.msra.mxu0 %v190
    %930 = vmatpush.msra.mxu0 %v187
    %931 = vmatpush.msra.mxu0 %v184
    %932 = vmatpush.msra.mxu0 %v181
    %933 = vmatpush.msra.mxu0 %v178
    %934 = vmatpush.msra.mxu0 %v175
    %935 = vmatpush.msra.mxu0 %v172
    %936 = vmatpush.msra.mxu0 %v169
    %937 = vmatpush.msra.mxu0 %v166
    %938 = vmatmul.f32.gmra.mxu0 %v881
    %v939 = vpop.f32.mrf.mxu0
    %v940 = vadd.f32 0.0, %v939
    %941 = vdwg.mxu0
    %v943 = vrot.slane %v900, 6
    %v945 = vadd.f32 %v248, %v943
    %v946 = vxor.u32 %v945, 2147483648
    %v947 = vmul.f32 %v946, 1.442695
    %v948 = vpow.pop %v947
    %v949 = vadd.f32 %v948, 1.0
    %v950 = vrcp.pop %v949
    %v951 = vmul.f32 %v949, %v950
    %v952 = vsub.f32 1.0, %v951
    %v953 = vmul.f32 %v950, %v952
    %v954 = vadd.f32 %v950, %v953
    %vm955 = vweird.f32 %v949
    %vm956 = vweird.f32 %v950
    %vm957 = vmor %vm955, %vm956
    %v958 = vsel %vm957, %v950, %v954
    %v959 = vand.u32 2147483647, %v949
    %vm960 = vcmp.eq.f32.partialorder %v959, 8.507059e+37
    %v961 = vand.u32 %v949, 2147483648
    %v962 = vor.u32 1.1754944e-38, %v961
    %v963 = vsel %vm960, %v962, %v958
    %v964 = vmul.f32 1.0, %v963
    %v966 = vrot.slane %v920, 6
    %v968 = vadd.f32 %v271, %v966
    %v969 = vxor.u32 %v968, 2147483648
    %v970 = vmul.f32 %v969, 1.442695
    %v971 = vpow.pop %v970
    %v972 = vadd.f32 %v971, 1.0
    %v973 = vrcp.pop %v972
    %v974 = vmul.f32 %v972, %v973
    %v975 = vsub.f32 1.0, %v974
    %v976 = vmul.f32 %v973, %v975
    %v977 = vadd.f32 %v973, %v976
    %vm978 = vweird.f32 %v972
    %vm979 = vweird.f32 %v973
    %vm980 = vmor %vm978, %vm979
    %v981 = vsel %vm980, %v973, %v977
    %v982 = vand.u32 2147483647, %v972
    %vm983 = vcmp.eq.f32.partialorder %v982, 8.507059e+37
    %v984 = vand.u32 %v972, 2147483648
    %v985 = vor.u32 1.1754944e-38, %v984
    %v986 = vsel %vm983, %v985, %v981
    %v987 = vmul.f32 1.0, %v986
    %v988 = vadd.f32 %v940, %v397
    %v990 = vrot.slane %v988, 6
    %v992 = vmul.f32 %v964, %v990
    %v993 = vadd.f32 %v294, %v992
    %v994 = vtanh.pop %v993
    %v995 = vsub.f32 1.0, %v987
    %v996 = vmul.f32 %v995, %v994
    %v998 = vrot.slane %v881, 6
    %v1000 = vmul.f32 %v987, %v998
    %v1001 = vadd.f32 %v996, %v1000
    %v1003 = vrot.slane %v1001, 2
    %1005 = vmatpush.msra.mxu0 %v209
    %1006 = vmatpush.msra.mxu0 %v206
    %1007 = vmatpush.msra.mxu0 %v203
    %1008 = vmatpush.msra.mxu0 %v200
    %1009 = vmatpush.msra.mxu0 %v197
    %1010 = vmatpush.msra.mxu0 %v194
    %1011 = vmatpush.msra.mxu0 %v191
    %1012 = vmatpush.msra.mxu0 %v188
    %1013 = vmatpush.msra.mxu0 %v185
    %1014 = vmatpush.msra.mxu0 %v182
    %1015 = vmatpush.msra.mxu0 %v179
    %1016 = vmatpush.msra.mxu0 %v176
    %1017 = vmatpush.msra.mxu0 %v173
    %1018 = vmatpush.msra.mxu0 %v170
    %1019 = vmatpush.msra.mxu0 %v167
    %1020 = vmatpush.msra.mxu0 %v164
    %1021 = vmatmul.f32.gmra.mxu0 %v1003
    %v1022 = vpop.f32.mrf.mxu0
    %v1023 = vadd.f32 0.0, %v1022
    %1024 = vdwg.mxu0
    %1025 = vmatpush.msra.mxu0 %v210
    %1026 = vmatpush.msra.mxu0 %v207
    %1027 = vmatpush.msra.mxu0 %v204
    %1028 = vmatpush.msra.mxu0 %v201
    %1029 = vmatpush.msra.mxu0 %v198
    %1030 = vmatpush.msra.mxu0 %v195
    %1031 = vmatpush.msra.mxu0 %v192
    %1032 = vmatpush.msra.mxu0 %v189
    %1033 = vmatpush.msra.mxu0 %v186
    %1034 = vmatpush.msra.mxu0 %v183
    %1035 = vmatpush.msra.mxu0 %v180
    %1036 = vmatpush.msra.mxu0 %v177
    %1037 = vmatpush.msra.mxu0 %v174
    %1038 = vmatpush.msra.mxu0 %v171
    %1039 = vmatpush.msra.mxu0 %v168
    %1040 = vmatpush.msra.mxu0 %v165
    %1041 = vmatmul.f32.gmra.mxu0 %v1003
    %v1042 = vpop.f32.mrf.mxu0
    %v1043 = vadd.f32 0.0, %v1042
    %1044 = vdwg.mxu0
    %1045 = vmatpush.msra.mxu0 %v211
    %1046 = vmatpush.msra.mxu0 %v208
    %1047 = vmatpush.msra.mxu0 %v205
    %1048 = vmatpush.msra.mxu0 %v202
    %1049 = vmatpush.msra.mxu0 %v199
    %1050 = vmatpush.msra.mxu0 %v196
    %1051 = vmatpush.msra.mxu0 %v193
    %1052 = vmatpush.msra.mxu0 %v190
    %1053 = vmatpush.msra.mxu0 %v187
    %1054 = vmatpush.msra.mxu0 %v184
    %1055 = vmatpush.msra.mxu0 %v181
    %1056 = vmatpush.msra.mxu0 %v178
    %1057 = vmatpush.msra.mxu0 %v175
    %1058 = vmatpush.msra.mxu0 %v172
    %1059 = vmatpush.msra.mxu0 %v169
    %1060 = vmatpush.msra.mxu0 %v166
    %1061 = vmatmul.f32.gmra.mxu0 %v1003
    %v1062 = vpop.f32.mrf.mxu0
    %v1063 = vadd.f32 0.0, %v1062
    %1064 = vdwg.mxu0
    %v1066 = vrot.slane %v1023, 4
    %v1068 = vadd.f32 %v248, %v1066
    %v1069 = vxor.u32 %v1068, 2147483648
    %v1070 = vmul.f32 %v1069, 1.442695
    %v1071 = vpow.pop %v1070
    %v1072 = vadd.f32 %v1071, 1.0
    %v1073 = vrcp.pop %v1072
    %v1074 = vmul.f32 %v1072, %v1073
    %v1075 = vsub.f32 1.0, %v1074
    %v1076 = vmul.f32 %v1073, %v1075
    %v1077 = vadd.f32 %v1073, %v1076
    %vm1078 = vweird.f32 %v1072
    %vm1079 = vweird.f32 %v1073
    %vm1080 = vmor %vm1078, %vm1079
    %v1081 = vsel %vm1080, %v1073, %v1077
    %v1082 = vand.u32 2147483647, %v1072
    %vm1083 = vcmp.eq.f32.partialorder %v1082, 8.507059e+37
    %v1084 = vand.u32 %v1072, 2147483648
    %v1085 = vor.u32 1.1754944e-38, %v1084
    %v1086 = vsel %vm1083, %v1085, %v1081
    %v1087 = vmul.f32 1.0, %v1086
    %v1089 = vrot.slane %v1043, 4
    %v1091 = vadd.f32 %v271, %v1089
    %v1092 = vxor.u32 %v1091, 2147483648
    %v1093 = vmul.f32 %v1092, 1.442695
    %v1094 = vpow.pop %v1093
    %v1095 = vadd.f32 %v1094, 1.0
    %v1096 = vrcp.pop %v1095
    %v1097 = vmul.f32 %v1095, %v1096
    %v1098 = vsub.f32 1.0, %v1097
    %v1099 = vmul.f32 %v1096, %v1098
    %v1100 = vadd.f32 %v1096, %v1099
    %vm1101 = vweird.f32 %v1095
    %vm1102 = vweird.f32 %v1096
    %vm1103 = vmor %vm1101, %vm1102
    %v1104 = vsel %vm1103, %v1096, %v1100
    %v1105 = vand.u32 2147483647, %v1095
    %vm1106 = vcmp.eq.f32.partialorder %v1105, 8.507059e+37
    %v1107 = vand.u32 %v1095, 2147483648
    %v1108 = vor.u32 1.1754944e-38, %v1107
    %v1109 = vsel %vm1106, %v1108, %v1104
    %v1110 = vmul.f32 1.0, %v1109
    %v1111 = vadd.f32 %v1063, %v397
    %v1113 = vrot.slane %v1111, 4
    %v1115 = vmul.f32 %v1087, %v1113
    %v1116 = vadd.f32 %v294, %v1115
    %v1117 = vtanh.pop %v1116
    %v1118 = vsub.f32 1.0, %v1110
    %v1119 = vmul.f32 %v1118, %v1117
    %v1120 = vrot.slane %v1001, 6
    %v1122 = vmul.f32 %v1110, %v1120
    %v1123 = vadd.f32 %v1119, %v1122
    %v1125 = vrot.slane %v1123, 4
    %1127 = vmatpush.msra.mxu0 %v209
    %1128 = vmatpush.msra.mxu0 %v206
    %1129 = vmatpush.msra.mxu0 %v203
    %1130 = vmatpush.msra.mxu0 %v200
    %1131 = vmatpush.msra.mxu0 %v197
    %1132 = vmatpush.msra.mxu0 %v194
    %1133 = vmatpush.msra.mxu0 %v191
    %1134 = vmatpush.msra.mxu0 %v188
    %1135 = vmatpush.msra.mxu0 %v185
    %1136 = vmatpush.msra.mxu0 %v182
    %1137 = vmatpush.msra.mxu0 %v179
    %1138 = vmatpush.msra.mxu0 %v176
    %1139 = vmatpush.msra.mxu0 %v173
    %1140 = vmatpush.msra.mxu0 %v170
    %1141 = vmatpush.msra.mxu0 %v167
    %1142 = vmatpush.msra.mxu0 %v164
    %1143 = vmatmul.f32.gmra.mxu0 %v1125
    %v1144 = vpop.f32.mrf.mxu0
    %v1145 = vadd.f32 0.0, %v1144
    %1146 = vdwg.mxu0
    %1147 = vmatpush.msra.mxu0 %v210
    %1148 = vmatpush.msra.mxu0 %v207
    %1149 = vmatpush.msra.mxu0 %v204
    %1150 = vmatpush.msra.mxu0 %v201
    %1151 = vmatpush.msra.mxu0 %v198
    %1152 = vmatpush.msra.mxu0 %v195
    %1153 = vmatpush.msra.mxu0 %v192
    %1154 = vmatpush.msra.mxu0 %v189
    %1155 = vmatpush.msra.mxu0 %v186
    %1156 = vmatpush.msra.mxu0 %v183
    %1157 = vmatpush.msra.mxu0 %v180
    %1158 = vmatpush.msra.mxu0 %v177
    %1159 = vmatpush.msra.mxu0 %v174
    %1160 = vmatpush.msra.mxu0 %v171
    %1161 = vmatpush.msra.mxu0 %v168
    %1162 = vmatpush.msra.mxu0 %v165
    %1163 = vmatmul.f32.gmra.mxu0 %v1125
    %v1164 = vpop.f32.mrf.mxu0
    %v1165 = vadd.f32 0.0, %v1164
    %1166 = vdwg.mxu0
    %1167 = vmatpush.msra.mxu0 %v211
    %1168 = vmatpush.msra.mxu0 %v208
    %1169 = vmatpush.msra.mxu0 %v205
    %1170 = vmatpush.msra.mxu0 %v202
    %1171 = vmatpush.msra.mxu0 %v199
    %1172 = vmatpush.msra.mxu0 %v196
    %1173 = vmatpush.msra.mxu0 %v193
    %1174 = vmatpush.msra.mxu0 %v190
    %1175 = vmatpush.msra.mxu0 %v187
    %1176 = vmatpush.msra.mxu0 %v184
    %1177 = vmatpush.msra.mxu0 %v181
    %1178 = vmatpush.msra.mxu0 %v178
    %1179 = vmatpush.msra.mxu0 %v175
    %1180 = vmatpush.msra.mxu0 %v172
    %1181 = vmatpush.msra.mxu0 %v169
    %1182 = vmatpush.msra.mxu0 %v166
    %1183 = vmatmul.f32.gmra.mxu0 %v1125
    %v1184 = vpop.f32.mrf.mxu0
    %v1185 = vadd.f32 0.0, %v1184
    %1186 = vdwg.mxu0
    %v1188 = vrot.slane %v1145, 2
    %v1190 = vadd.f32 %v248, %v1188
    %v1191 = vxor.u32 %v1190, 2147483648
    %v1192 = vmul.f32 %v1191, 1.442695
    %v1193 = vpow.pop %v1192
    %v1194 = vadd.f32 %v1193, 1.0
    %v1195 = vrcp.pop %v1194
    %v1196 = vmul.f32 %v1194, %v1195
    %v1197 = vsub.f32 1.0, %v1196
    %v1198 = vmul.f32 %v1195, %v1197
    %v1199 = vadd.f32 %v1195, %v1198
    %vm1200 = vweird.f32 %v1194
    %vm1201 = vweird.f32 %v1195
    %vm1202 = vmor %vm1200, %vm1201
    %v1203 = vsel %vm1202, %v1195, %v1199
    %v1204 = vand.u32 2147483647, %v1194
    %vm1205 = vcmp.eq.f32.partialorder %v1204, 8.507059e+37
    %v1206 = vand.u32 %v1194, 2147483648
    %v1207 = vor.u32 1.1754944e-38, %v1206
    %v1208 = vsel %vm1205, %v1207, %v1203
    %v1209 = vmul.f32 1.0, %v1208
    %v1211 = vrot.slane %v1165, 2
    %v1213 = vadd.f32 %v271, %v1211
    %v1214 = vxor.u32 %v1213, 2147483648
    %v1215 = vmul.f32 %v1214, 1.442695
    %v1216 = vpow.pop %v1215
    %v1217 = vadd.f32 %v1216, 1.0
    %v1218 = vrcp.pop %v1217
    %v1219 = vmul.f32 %v1217, %v1218
    %v1220 = vsub.f32 1.0, %v1219
    %v1221 = vmul.f32 %v1218, %v1220
    %v1222 = vadd.f32 %v1218, %v1221
    %vm1223 = vweird.f32 %v1217
    %vm1224 = vweird.f32 %v1218
    %vm1225 = vmor %vm1223, %vm1224
    %v1226 = vsel %vm1225, %v1218, %v1222
    %v1227 = vand.u32 2147483647, %v1217
    %vm1228 = vcmp.eq.f32.partialorder %v1227, 8.507059e+37
    %v1229 = vand.u32 %v1217, 2147483648
    %v1230 = vor.u32 1.1754944e-38, %v1229
    %v1231 = vsel %vm1228, %v1230, %v1226
    %v1232 = vmul.f32 1.0, %v1231
    %v1233 = vadd.f32 %v1185, %v397
    %v1235 = vrot.slane %v1233, 2
    %v1237 = vmul.f32 %v1209, %v1235
    %v1238 = vadd.f32 %v294, %v1237
    %v1239 = vtanh.pop %v1238
    %v1240 = vsub.f32 1.0, %v1232
    %v1241 = vmul.f32 %v1240, %v1239
    %v1242 = vrot.slane %v1123, 6
    %v1244 = vmul.f32 %v1232, %v1242
    %v1245 = vadd.f32 %v1241, %v1244
    %vm1246 = vcmask 1041408
    %v1247 = vsel %vm1246, %v406, %v526
    %vm1248 = vcmask 1043456
    %v1249 = vsel %vm1248, %v1247, %v648
    %vm1250 = vcmask 1045504
    %v1251 = vsel %vm1250, %v1249, %v770
    %v1252 = vsel %vm1246, %v881, %v1001
    %v1253 = vsel %vm1248, %v1252, %v1123
    %v1254 = vsel %vm1250, %v1253, %v1245
    %v1255 = vld [vmem:[#allocation5] sm:$0xff]
    %v1256 = vld [vmem:[#allocation5 + $0x8] sm:$0xff]
    %v1257 = vld [vmem:[#allocation5 + $0x10] sm:$0xff]
    %v1258 = vld [vmem:[#allocation5 + $0x18] sm:$0xff]
    %v1259 = vld [vmem:[#allocation5 + $0x20] sm:$0xff]
    %v1260 = vld [vmem:[#allocation5 + $0x28] sm:$0xff]
    %v1261 = vld [vmem:[#allocation5 + $0x30] sm:$0xff]
    %v1262 = vld [vmem:[#allocation5 + $0x38] sm:$0xff]
    %v1263 = vld [vmem:[#allocation5 + $0x40] sm:$0xff]
    %v1264 = vld [vmem:[#allocation5 + $0x48] sm:$0xff]
    %v1265 = vld [vmem:[#allocation5 + $0x50] sm:$0xff]
    %v1266 = vld [vmem:[#allocation5 + $0x58] sm:$0xff]
    %v1267 = vld [vmem:[#allocation5 + $0x60] sm:$0xff]
    %v1268 = vld [vmem:[#allocation5 + $0x68] sm:$0xff]
    %v1269 = vld [vmem:[#allocation5 + $0x70] sm:$0xff]
    %v1270 = vld [vmem:[#allocation5 + $0x78] sm:$0xff]
    %v1271 = vld [vmem:[#allocation5 + $0x80] sm:$0xff]
    %v1272 = vld [vmem:[#allocation5 + $0x88] sm:$0xff]
    %v1273 = vld [vmem:[#allocation5 + $0x90] sm:$0xff]
    %v1274 = vld [vmem:[#allocation5 + $0x98] sm:$0xff]
    %v1275 = vld [vmem:[#allocation5 + $0xa0] sm:$0xff]
    %v1276 = vld [vmem:[#allocation5 + $0xa8] sm:$0xff]
    %v1277 = vld [vmem:[#allocation5 + $0xb0] sm:$0xff]
    %v1278 = vld [vmem:[#allocation5 + $0xb8] sm:$0xff]
    %v1279 = vld [vmem:[#allocation5 + $0xc0] sm:$0xff]
    %v1280 = vld [vmem:[#allocation5 + $0xc8] sm:$0xff]
    %v1281 = vld [vmem:[#allocation5 + $0xd0] sm:$0xff]
    %v1282 = vld [vmem:[#allocation5 + $0xd8] sm:$0xff]
    %v1283 = vld [vmem:[#allocation5 + $0xe0] sm:$0xff]
    %v1284 = vld [vmem:[#allocation5 + $0xe8] sm:$0xff]
    %v1285 = vld [vmem:[#allocation5 + $0xf0] sm:$0xff]
    %v1286 = vld [vmem:[#allocation5 + $0xf8] sm:$0xff]
    %v1287 = vld [vmem:[#allocation5 + $0x100] sm:$0xff]
    %v1288 = vld [vmem:[#allocation5 + $0x108] sm:$0xff]
    %v1289 = vld [vmem:[#allocation5 + $0x110] sm:$0xff]
    %v1290 = vld [vmem:[#allocation5 + $0x118] sm:$0xff]
    %v1291 = vld [vmem:[#allocation5 + $0x120] sm:$0xff]
    %v1292 = vld [vmem:[#allocation5 + $0x128] sm:$0xff]
    %v1293 = vld [vmem:[#allocation5 + $0x130] sm:$0xff]
    %v1294 = vld [vmem:[#allocation5 + $0x138] sm:$0xff]
    %v1295 = vld [vmem:[#allocation5 + $0x140] sm:$0xff]
    %v1296 = vld [vmem:[#allocation5 + $0x148] sm:$0xff]
    %v1297 = vld [vmem:[#allocation5 + $0x150] sm:$0xff]
    %v1298 = vld [vmem:[#allocation5 + $0x158] sm:$0xff]
    %v1299 = vld [vmem:[#allocation5 + $0x160] sm:$0xff]
    %v1300 = vld [vmem:[#allocation5 + $0x168] sm:$0xff]
    %v1301 = vld [vmem:[#allocation5 + $0x170] sm:$0xff]
    %v1302 = vld [vmem:[#allocation5 + $0x178] sm:$0xff]
    %v1303 = vld [vmem:[#allocation7] sm:$0xff]
    %v1304 = vld [vmem:[#allocation7 + $0x8] sm:$0xff]
    %v1305 = vld [vmem:[#allocation7 + $0x10] sm:$0xff]
    %v1306 = vld [vmem:[#allocation7 + $0x18] sm:$0xff]
    %v1307 = vld [vmem:[#allocation7 + $0x20] sm:$0xff]
    %v1308 = vld [vmem:[#allocation7 + $0x28] sm:$0xff]
    %v1309 = vld [vmem:[#allocation7 + $0x30] sm:$0xff]
    %v1310 = vld [vmem:[#allocation7 + $0x38] sm:$0xff]
    %v1311 = vld [vmem:[#allocation7 + $0x40] sm:$0xff]
    %v1312 = vld [vmem:[#allocation7 + $0x48] sm:$0xff]
    %v1313 = vld [vmem:[#allocation7 + $0x50] sm:$0xff]
    %v1314 = vld [vmem:[#allocation7 + $0x58] sm:$0xff]
    %v1315 = vld [vmem:[#allocation7 + $0x60] sm:$0xff]
    %v1316 = vld [vmem:[#allocation7 + $0x68] sm:$0xff]
    %v1317 = vld [vmem:[#allocation7 + $0x70] sm:$0xff]
    %v1318 = vld [vmem:[#allocation7 + $0x78] sm:$0xff]
    %v1319 = vld [vmem:[#allocation7 + $0x80] sm:$0xff]
    %v1320 = vld [vmem:[#allocation7 + $0x88] sm:$0xff]
    %v1321 = vld [vmem:[#allocation7 + $0x90] sm:$0xff]
    %v1322 = vld [vmem:[#allocation7 + $0x98] sm:$0xff]
    %v1323 = vld [vmem:[#allocation7 + $0xa0] sm:$0xff]
    %v1324 = vld [vmem:[#allocation7 + $0xa8] sm:$0xff]
    %v1325 = vld [vmem:[#allocation7 + $0xb0] sm:$0xff]
    %v1326 = vld [vmem:[#allocation7 + $0xb8] sm:$0xff]
    %v1327 = vld [vmem:[#allocation7 + $0xc0] sm:$0xff]
    %v1328 = vld [vmem:[#allocation7 + $0xc8] sm:$0xff]
    %v1329 = vld [vmem:[#allocation7 + $0xd0] sm:$0xff]
    %v1330 = vld [vmem:[#allocation7 + $0xd8] sm:$0xff]
    %v1331 = vld [vmem:[#allocation7 + $0xe0] sm:$0xff]
    %v1332 = vld [vmem:[#allocation7 + $0xe8] sm:$0xff]
    %v1333 = vld [vmem:[#allocation7 + $0xf0] sm:$0xff]
    %v1334 = vld [vmem:[#allocation7 + $0xf8] sm:$0xff]
    %v1335 = vld [vmem:[#allocation7 + $0x100] sm:$0xff]
    %v1336 = vld [vmem:[#allocation7 + $0x108] sm:$0xff]
    %v1337 = vld [vmem:[#allocation7 + $0x110] sm:$0xff]
    %v1338 = vld [vmem:[#allocation7 + $0x118] sm:$0xff]
    %v1339 = vld [vmem:[#allocation7 + $0x120] sm:$0xff]
    %v1340 = vld [vmem:[#allocation7 + $0x128] sm:$0xff]
    %v1341 = vld [vmem:[#allocation7 + $0x130] sm:$0xff]
    %v1342 = vld [vmem:[#allocation7 + $0x138] sm:$0xff]
    %v1343 = vld [vmem:[#allocation7 + $0x140] sm:$0xff]
    %v1344 = vld [vmem:[#allocation7 + $0x148] sm:$0xff]
    %v1345 = vld [vmem:[#allocation7 + $0x150] sm:$0xff]
    %v1346 = vld [vmem:[#allocation7 + $0x158] sm:$0xff]
    %v1347 = vld [vmem:[#allocation7 + $0x160] sm:$0xff]
    %v1348 = vld [vmem:[#allocation7 + $0x168] sm:$0xff]
    %v1349 = vld [vmem:[#allocation7 + $0x170] sm:$0xff]
    %v1350 = vld [vmem:[#allocation7 + $0x178] sm:$0xff]
    %v1351 = vld [vmem:[%s9] sm:$0x7]
    %v1352 = vld [vmem:[%s10] sm:$0x1]
    %v1354 = vperm.slane %v1351, 0
    %v1355 = vperm.slane %v1351, 1
    %v1356 = vperm.slane %v1351, 2
    %1360 = vmatpush.msra.mxu0 %v1300
    %1361 = vmatpush.msra.mxu0 %v1297
    %1362 = vmatpush.msra.mxu0 %v1294
    %1363 = vmatpush.msra.mxu0 %v1291
    %1364 = vmatpush.msra.mxu0 %v1288
    %1365 = vmatpush.msra.mxu0 %v1285
    %1366 = vmatpush.msra.mxu0 %v1282
    %1367 = vmatpush.msra.mxu0 %v1279
    %1368 = vmatpush.msra.mxu0 %v1276
    %1369 = vmatpush.msra.mxu0 %v1273
    %1370 = vmatpush.msra.mxu0 %v1270
    %1371 = vmatpush.msra.mxu0 %v1267
    %1372 = vmatpush.msra.mxu0 %v1264
    %1373 = vmatpush.msra.mxu0 %v1261
    %1374 = vmatpush.msra.mxu0 %v1258
    %1375 = vmatpush.msra.mxu0 %v1255
    %1376 = vmatmul.f32.gmra.mxu0 %v1251
    %v1377 = vpop.f32.mrf.mxu0
    %v1378 = vadd.f32 %v1354, %v1377
    %1379 = vmatmul.f32.gmra.mxu0 %v1254
    %v1380 = vpop.f32.mrf.mxu0
    %v1381 = vadd.f32 %v1354, %v1380
    %1382 = vdwg.mxu0
    %1383 = vmatpush.msra.mxu0 %v1301
    %1384 = vmatpush.msra.mxu0 %v1298
    %1385 = vmatpush.msra.mxu0 %v1295
    %1386 = vmatpush.msra.mxu0 %v1292
    %1387 = vmatpush.msra.mxu0 %v1289
    %1388 = vmatpush.msra.mxu0 %v1286
    %1389 = vmatpush.msra.mxu0 %v1283
    %1390 = vmatpush.msra.mxu0 %v1280
    %1391 = vmatpush.msra.mxu0 %v1277
    %1392 = vmatpush.msra.mxu0 %v1274
    %1393 = vmatpush.msra.mxu0 %v1271
    %1394 = vmatpush.msra.mxu0 %v1268
    %1395 = vmatpush.msra.mxu0 %v1265
    %1396 = vmatpush.msra.mxu0 %v1262
    %1397 = vmatpush.msra.mxu0 %v1259
    %1398 = vmatpush.msra.mxu0 %v1256
    %1399 = vmatmul.f32.gmra.mxu0 %v1251
    %v1400 = vpop.f32.mrf.mxu0
    %v1401 = vadd.f32 %v1355, %v1400
    %1402 = vmatmul.f32.gmra.mxu0 %v1254
    %v1403 = vpop.f32.mrf.mxu0
    %v1404 = vadd.f32 %v1355, %v1403
    %1405 = vdwg.mxu0
    %1406 = vmatpush.msra.mxu0 %v1302
    %1407 = vmatpush.msra.mxu0 %v1299
    %1408 = vmatpush.msra.mxu0 %v1296
    %1409 = vmatpush.msra.mxu0 %v1293
    %1410 = vmatpush.msra.mxu0 %v1290
    %1411 = vmatpush.msra.mxu0 %v1287
    %1412 = vmatpush.msra.mxu0 %v1284
    %1413 = vmatpush.msra.mxu0 %v1281
    %1414 = vmatpush.msra.mxu0 %v1278
    %1415 = vmatpush.msra.mxu0 %v1275
    %1416 = vmatpush.msra.mxu0 %v1272
    %1417 = vmatpush.msra.mxu0 %v1269
    %1418 = vmatpush.msra.mxu0 %v1266
    %1419 = vmatpush.msra.mxu0 %v1263
    %1420 = vmatpush.msra.mxu0 %v1260
    %1421 = vmatpush.msra.mxu0 %v1257
    %1422 = vmatmul.f32.gmra.mxu0 %v1251
    %v1423 = vpop.f32.mrf.mxu0
    %v1424 = vadd.f32 %v1356, %v1423
    %1425 = vmatmul.f32.gmra.mxu0 %v1254
    %v1426 = vpop.f32.mrf.mxu0
    %v1427 = vadd.f32 %v1356, %v1426
    %1428 = vdwg.mxu0
    %1429 = vmatpush.msra.mxu0 %v1348
    %1430 = vmatpush.msra.mxu0 %v1345
    %1431 = vmatpush.msra.mxu0 %v1342
    %1432 = vmatpush.msra.mxu0 %v1339
    %1433 = vmatpush.msra.mxu0 %v1336
    %1434 = vmatpush.msra.mxu0 %v1333
    %1435 = vmatpush.msra.mxu0 %v1330
    %1436 = vmatpush.msra.mxu0 %v1327
    %1437 = vmatpush.msra.mxu0 %v1324
    %1438 = vmatpush.msra.mxu0 %v1321
    %1439 = vmatpush.msra.mxu0 %v1318
    %1440 = vmatpush.msra.mxu0 %v1315
    %1441 = vmatpush.msra.mxu0 %v1312
    %1442 = vmatpush.msra.mxu0 %v1309
    %1443 = vmatpush.msra.mxu0 %v1306
    %1444 = vmatpush.msra.mxu0 %v1303
    %1445 = vmatmul.f32.gmra.mxu0 0.0
    %v1446 = vpop.f32.mrf.mxu0
    %v1447 = vadd.f32 0.0, %v1446
    %1448 = vdwg.mxu0
    %1449 = vmatpush.msra.mxu0 %v1349
    %1450 = vmatpush.msra.mxu0 %v1346
    %1451 = vmatpush.msra.mxu0 %v1343
    %1452 = vmatpush.msra.mxu0 %v1340
    %1453 = vmatpush.msra.mxu0 %v1337
    %1454 = vmatpush.msra.mxu0 %v1334
    %1455 = vmatpush.msra.mxu0 %v1331
    %1456 = vmatpush.msra.mxu0 %v1328
    %1457 = vmatpush.msra.mxu0 %v1325
    %1458 = vmatpush.msra.mxu0 %v1322
    %1459 = vmatpush.msra.mxu0 %v1319
    %1460 = vmatpush.msra.mxu0 %v1316
    %1461 = vmatpush.msra.mxu0 %v1313
    %1462 = vmatpush.msra.mxu0 %v1310
    %1463 = vmatpush.msra.mxu0 %v1307
    %1464 = vmatpush.msra.mxu0 %v1304
    %1465 = vmatmul.f32.gmra.mxu0 0.0
    %v1466 = vpop.f32.mrf.mxu0
    %v1467 = vadd.f32 0.0, %v1466
    %1468 = vdwg.mxu0
    %1469 = vmatpush.msra.mxu0 %v1350
    %1470 = vmatpush.msra.mxu0 %v1347
    %1471 = vmatpush.msra.mxu0 %v1344
    %1472 = vmatpush.msra.mxu0 %v1341
    %1473 = vmatpush.msra.mxu0 %v1338
    %1474 = vmatpush.msra.mxu0 %v1335
    %1475 = vmatpush.msra.mxu0 %v1332
    %1476 = vmatpush.msra.mxu0 %v1329
    %1477 = vmatpush.msra.mxu0 %v1326
    %1478 = vmatpush.msra.mxu0 %v1323
    %1479 = vmatpush.msra.mxu0 %v1320
    %1480 = vmatpush.msra.mxu0 %v1317
    %1481 = vmatpush.msra.mxu0 %v1314
    %1482 = vmatpush.msra.mxu0 %v1311
    %1483 = vmatpush.msra.mxu0 %v1308
    %1484 = vmatpush.msra.mxu0 %v1305
    %1485 = vmatmul.f32.gmra.mxu0 0.0
    %v1486 = vpop.f32.mrf.mxu0
    %v1487 = vadd.f32 0.0, %v1486
    %1488 = vdwg.mxu0
    %v1489 = vadd.f32 %v1378, %v1447
    %v1490 = vxor.u32 %v1489, 2147483648
    %v1491 = vmul.f32 %v1490, 1.442695
    %v1492 = vpow.pop %v1491
    %v1493 = vadd.f32 %v1492, 1.0
    %v1494 = vrcp.pop %v1493
    %v1495 = vmul.f32 %v1493, %v1494
    %v1496 = vsub.f32 1.0, %v1495
    %v1497 = vmul.f32 %v1494, %v1496
    %v1498 = vadd.f32 %v1494, %v1497
    %vm1499 = vweird.f32 %v1493
    %vm1500 = vweird.f32 %v1494
    %vm1501 = vmor %vm1499, %vm1500
    %v1502 = vsel %vm1501, %v1494, %v1498
    %v1503 = vand.u32 2147483647, %v1493
    %vm1504 = vcmp.eq.f32.partialorder %v1503, 8.507059e+37
    %v1505 = vand.u32 %v1493, 2147483648
    %v1506 = vor.u32 1.1754944e-38, %v1505
    %v1507 = vsel %vm1504, %v1506, %v1502
    %v1508 = vmul.f32 1.0, %v1507
    %v1509 = vadd.f32 %v1401, %v1467
    %v1510 = vxor.u32 %v1509, 2147483648
    %v1511 = vmul.f32 %v1510, 1.442695
    %v1512 = vpow.pop %v1511
    %v1513 = vadd.f32 %v1512, 1.0
    %v1514 = vrcp.pop %v1513
    %v1515 = vmul.f32 %v1513, %v1514
    %v1516 = vsub.f32 1.0, %v1515
    %v1517 = vmul.f32 %v1514, %v1516
    %v1518 = vadd.f32 %v1514, %v1517
    %vm1519 = vweird.f32 %v1513
    %vm1520 = vweird.f32 %v1514
    %vm1521 = vmor %vm1519, %vm1520
    %v1522 = vsel %vm1521, %v1514, %v1518
    %v1523 = vand.u32 2147483647, %v1513
    %vm1524 = vcmp.eq.f32.partialorder %v1523, 8.507059e+37
    %v1525 = vand.u32 %v1513, 2147483648
    %v1526 = vor.u32 1.1754944e-38, %v1525
    %v1527 = vsel %vm1524, %v1526, %v1522
    %v1528 = vmul.f32 1.0, %v1527
    %v1530 = vperm.slane %v1352, 0
    %v1532 = vadd.f32 %v1487, %v1530
    %v1533 = vmul.f32 %v1508, %v1532
    %v1534 = vadd.f32 %v1424, %v1533
    %v1535 = vtanh.pop %v1534
    %v1536 = vsub.f32 1.0, %v1528
    %v1537 = vmul.f32 %v1536, %v1535
    %v1538 = vmul.f32 %v1528, 0.0
    %v1539 = vadd.f32 %v1537, %v1538
    %1540 = vmatpush.msra.mxu0 %v1348
    %1541 = vmatpush.msra.mxu0 %v1345
    %1542 = vmatpush.msra.mxu0 %v1342
    %1543 = vmatpush.msra.mxu0 %v1339
    %1544 = vmatpush.msra.mxu0 %v1336
    %1545 = vmatpush.msra.mxu0 %v1333
    %1546 = vmatpush.msra.mxu0 %v1330
    %1547 = vmatpush.msra.mxu0 %v1327
    %1548 = vmatpush.msra.mxu0 %v1324
    %1549 = vmatpush.msra.mxu0 %v1321
    %1550 = vmatpush.msra.mxu0 %v1318
    %1551 = vmatpush.msra.mxu0 %v1315
    %1552 = vmatpush.msra.mxu0 %v1312
    %1553 = vmatpush.msra.mxu0 %v1309
    %1554 = vmatpush.msra.mxu0 %v1306
    %1555 = vmatpush.msra.mxu0 %v1303
    %1556 = vmatmul.f32.gmra.mxu0 %v1539
    %v1557 = vpop.f32.mrf.mxu0
    %v1558 = vadd.f32 0.0, %v1557
    %1559 = vdwg.mxu0
    %1560 = vmatpush.msra.mxu0 %v1349
    %1561 = vmatpush.msra.mxu0 %v1346
    %1562 = vmatpush.msra.mxu0 %v1343
    %1563 = vmatpush.msra.mxu0 %v1340
    %1564 = vmatpush.msra.mxu0 %v1337
    %1565 = vmatpush.msra.mxu0 %v1334
    %1566 = vmatpush.msra.mxu0 %v1331
    %1567 = vmatpush.msra.mxu0 %v1328
    %1568 = vmatpush.msra.mxu0 %v1325
    %1569 = vmatpush.msra.mxu0 %v1322
    %1570 = vmatpush.msra.mxu0 %v1319
    %1571 = vmatpush.msra.mxu0 %v1316
    %1572 = vmatpush.msra.mxu0 %v1313
    %1573 = vmatpush.msra.mxu0 %v1310
    %1574 = vmatpush.msra.mxu0 %v1307
    %1575 = vmatpush.msra.mxu0 %v1304
    %1576 = vmatmul.f32.gmra.mxu0 %v1539
    %v1577 = vpop.f32.mrf.mxu0
    %v1578 = vadd.f32 0.0, %v1577
    %1579 = vdwg.mxu0
    %1580 = vmatpush.msra.mxu0 %v1350
    %1581 = vmatpush.msra.mxu0 %v1347
    %1582 = vmatpush.msra.mxu0 %v1344
    %1583 = vmatpush.msra.mxu0 %v1341
    %1584 = vmatpush.msra.mxu0 %v1338
    %1585 = vmatpush.msra.mxu0 %v1335
    %1586 = vmatpush.msra.mxu0 %v1332
    %1587 = vmatpush.msra.mxu0 %v1329
    %1588 = vmatpush.msra.mxu0 %v1326
    %1589 = vmatpush.msra.mxu0 %v1323
    %1590 = vmatpush.msra.mxu0 %v1320
    %1591 = vmatpush.msra.mxu0 %v1317
    %1592 = vmatpush.msra.mxu0 %v1314
    %1593 = vmatpush.msra.mxu0 %v1311
    %1594 = vmatpush.msra.mxu0 %v1308
    %1595 = vmatpush.msra.mxu0 %v1305
    %1596 = vmatmul.f32.gmra.mxu0 %v1539
    %v1597 = vpop.f32.mrf.mxu0
    %v1598 = vadd.f32 0.0, %v1597
    %1599 = vdwg.mxu0
    %v1601 = vrot.slane %v1558, 6
    %v1603 = vadd.f32 %v1378, %v1601
    %v1604 = vxor.u32 %v1603, 2147483648
    %v1605 = vmul.f32 %v1604, 1.442695
    %v1606 = vpow.pop %v1605
    %v1607 = vadd.f32 %v1606, 1.0
    %v1608 = vrcp.pop %v1607
    %v1609 = vmul.f32 %v1607, %v1608
    %v1610 = vsub.f32 1.0, %v1609
    %v1611 = vmul.f32 %v1608, %v1610
    %v1612 = vadd.f32 %v1608, %v1611
    %vm1613 = vweird.f32 %v1607
    %vm1614 = vweird.f32 %v1608
    %vm1615 = vmor %vm1613, %vm1614
    %v1616 = vsel %vm1615, %v1608, %v1612
    %v1617 = vand.u32 2147483647, %v1607
    %vm1618 = vcmp.eq.f32.partialorder %v1617, 8.507059e+37
    %v1619 = vand.u32 %v1607, 2147483648
    %v1620 = vor.u32 1.1754944e-38, %v1619
    %v1621 = vsel %vm1618, %v1620, %v1616
    %v1622 = vmul.f32 1.0, %v1621
    %v1624 = vrot.slane %v1578, 6
    %v1626 = vadd.f32 %v1401, %v1624
    %v1627 = vxor.u32 %v1626, 2147483648
    %v1628 = vmul.f32 %v1627, 1.442695
    %v1629 = vpow.pop %v1628
    %v1630 = vadd.f32 %v1629, 1.0
    %v1631 = vrcp.pop %v1630
    %v1632 = vmul.f32 %v1630, %v1631
    %v1633 = vsub.f32 1.0, %v1632
    %v1634 = vmul.f32 %v1631, %v1633
    %v1635 = vadd.f32 %v1631, %v1634
    %vm1636 = vweird.f32 %v1630
    %vm1637 = vweird.f32 %v1631
    %vm1638 = vmor %vm1636, %vm1637
    %v1639 = vsel %vm1638, %v1631, %v1635
    %v1640 = vand.u32 2147483647, %v1630
    %vm1641 = vcmp.eq.f32.partialorder %v1640, 8.507059e+37
    %v1642 = vand.u32 %v1630, 2147483648
    %v1643 = vor.u32 1.1754944e-38, %v1642
    %v1644 = vsel %vm1641, %v1643, %v1639
    %v1645 = vmul.f32 1.0, %v1644
    %v1646 = vadd.f32 %v1598, %v1530
    %v1648 = vrot.slane %v1646, 6
    %v1650 = vmul.f32 %v1622, %v1648
    %v1651 = vadd.f32 %v1424, %v1650
    %v1652 = vtanh.pop %v1651
    %v1653 = vsub.f32 1.0, %v1645
    %v1654 = vmul.f32 %v1653, %v1652
    %v1656 = vrot.slane %v1539, 6
    %v1658 = vmul.f32 %v1645, %v1656
    %v1659 = vadd.f32 %v1654, %v1658
    %v1661 = vrot.slane %v1659, 2
    %1663 = vmatpush.msra.mxu0 %v1348
    %1664 = vmatpush.msra.mxu0 %v1345
    %1665 = vmatpush.msra.mxu0 %v1342
    %1666 = vmatpush.msra.mxu0 %v1339
    %1667 = vmatpush.msra.mxu0 %v1336
    %1668 = vmatpush.msra.mxu0 %v1333
    %1669 = vmatpush.msra.mxu0 %v1330
    %1670 = vmatpush.msra.mxu0 %v1327
    %1671 = vmatpush.msra.mxu0 %v1324
    %1672 = vmatpush.msra.mxu0 %v1321
    %1673 = vmatpush.msra.mxu0 %v1318
    %1674 = vmatpush.msra.mxu0 %v1315
    %1675 = vmatpush.msra.mxu0 %v1312
    %1676 = vmatpush.msra.mxu0 %v1309
    %1677 = vmatpush.msra.mxu0 %v1306
    %1678 = vmatpush.msra.mxu0 %v1303
    %1679 = vmatmul.f32.gmra.mxu0 %v1661
    %v1680 = vpop.f32.mrf.mxu0
    %v1681 = vadd.f32 0.0, %v1680
    %1682 = vdwg.mxu0
    %1683 = vmatpush.msra.mxu0 %v1349
    %1684 = vmatpush.msra.mxu0 %v1346
    %1685 = vmatpush.msra.mxu0 %v1343
    %1686 = vmatpush.msra.mxu0 %v1340
    %1687 = vmatpush.msra.mxu0 %v1337
    %1688 = vmatpush.msra.mxu0 %v1334
    %1689 = vmatpush.msra.mxu0 %v1331
    %1690 = vmatpush.msra.mxu0 %v1328
    %1691 = vmatpush.msra.mxu0 %v1325
    %1692 = vmatpush.msra.mxu0 %v1322
    %1693 = vmatpush.msra.mxu0 %v1319
    %1694 = vmatpush.msra.mxu0 %v1316
    %1695 = vmatpush.msra.mxu0 %v1313
    %1696 = vmatpush.msra.mxu0 %v1310
    %1697 = vmatpush.msra.mxu0 %v1307
    %1698 = vmatpush.msra.mxu0 %v1304
    %1699 = vmatmul.f32.gmra.mxu0 %v1661
    %v1700 = vpop.f32.mrf.mxu0
    %v1701 = vadd.f32 0.0, %v1700
    %1702 = vdwg.mxu0
    %1703 = vmatpush.msra.mxu0 %v1350
    %1704 = vmatpush.msra.mxu0 %v1347
    %1705 = vmatpush.msra.mxu0 %v1344
    %1706 = vmatpush.msra.mxu0 %v1341
    %1707 = vmatpush.msra.mxu0 %v1338
    %1708 = vmatpush.msra.mxu0 %v1335
    %1709 = vmatpush.msra.mxu0 %v1332
    %1710 = vmatpush.msra.mxu0 %v1329
    %1711 = vmatpush.msra.mxu0 %v1326
    %1712 = vmatpush.msra.mxu0 %v1323
    %1713 = vmatpush.msra.mxu0 %v1320
    %1714 = vmatpush.msra.mxu0 %v1317
    %1715 = vmatpush.msra.mxu0 %v1314
    %1716 = vmatpush.msra.mxu0 %v1311
    %1717 = vmatpush.msra.mxu0 %v1308
    %1718 = vmatpush.msra.mxu0 %v1305
    %1719 = vmatmul.f32.gmra.mxu0 %v1661
    %v1720 = vpop.f32.mrf.mxu0
    %v1721 = vadd.f32 0.0, %v1720
    %1722 = vdwg.mxu0
    %v1724 = vrot.slane %v1681, 4
    %v1726 = vadd.f32 %v1378, %v1724
    %v1727 = vxor.u32 %v1726, 2147483648
    %v1728 = vmul.f32 %v1727, 1.442695
    %v1729 = vpow.pop %v1728
    %v1730 = vadd.f32 %v1729, 1.0
    %v1731 = vrcp.pop %v1730
    %v1732 = vmul.f32 %v1730, %v1731
    %v1733 = vsub.f32 1.0, %v1732
    %v1734 = vmul.f32 %v1731, %v1733
    %v1735 = vadd.f32 %v1731, %v1734
    %vm1736 = vweird.f32 %v1730
    %vm1737 = vweird.f32 %v1731
    %vm1738 = vmor %vm1736, %vm1737
    %v1739 = vsel %vm1738, %v1731, %v1735
    %v1740 = vand.u32 2147483647, %v1730
    %vm1741 = vcmp.eq.f32.partialorder %v1740, 8.507059e+37
    %v1742 = vand.u32 %v1730, 2147483648
    %v1743 = vor.u32 1.1754944e-38, %v1742
    %v1744 = vsel %vm1741, %v1743, %v1739
    %v1745 = vmul.f32 1.0, %v1744
    %v1747 = vrot.slane %v1701, 4
    %v1749 = vadd.f32 %v1401, %v1747
    %v1750 = vxor.u32 %v1749, 2147483648
    %v1751 = vmul.f32 %v1750, 1.442695
    %v1752 = vpow.pop %v1751
    %v1753 = vadd.f32 %v1752, 1.0
    %v1754 = vrcp.pop %v1753
    %v1755 = vmul.f32 %v1753, %v1754
    %v1756 = vsub.f32 1.0, %v1755
    %v1757 = vmul.f32 %v1754, %v1756
    %v1758 = vadd.f32 %v1754, %v1757
    %vm1759 = vweird.f32 %v1753
    %vm1760 = vweird.f32 %v1754
    %vm1761 = vmor %vm1759, %vm1760
    %v1762 = vsel %vm1761, %v1754, %v1758
    %v1763 = vand.u32 2147483647, %v1753
    %vm1764 = vcmp.eq.f32.partialorder %v1763, 8.507059e+37
    %v1765 = vand.u32 %v1753, 2147483648
    %v1766 = vor.u32 1.1754944e-38, %v1765
    %v1767 = vsel %vm1764, %v1766, %v1762
    %v1768 = vmul.f32 1.0, %v1767
    %v1769 = vadd.f32 %v1721, %v1530
    %v1771 = vrot.slane %v1769, 4
    %v1773 = vmul.f32 %v1745, %v1771
    %v1774 = vadd.f32 %v1424, %v1773
    %v1775 = vtanh.pop %v1774
    %v1776 = vsub.f32 1.0, %v1768
    %v1777 = vmul.f32 %v1776, %v1775
    %v1778 = vrot.slane %v1659, 6
    %v1780 = vmul.f32 %v1768, %v1778
    %v1781 = vadd.f32 %v1777, %v1780
    %v1783 = vrot.slane %v1781, 4
    %1785 = vmatpush.msra.mxu0 %v1348
    %1786 = vmatpush.msra.mxu0 %v1345
    %1787 = vmatpush.msra.mxu0 %v1342
    %1788 = vmatpush.msra.mxu0 %v1339
    %1789 = vmatpush.msra.mxu0 %v1336
    %1790 = vmatpush.msra.mxu0 %v1333
    %1791 = vmatpush.msra.mxu0 %v1330
    %1792 = vmatpush.msra.mxu0 %v1327
    %1793 = vmatpush.msra.mxu0 %v1324
    %1794 = vmatpush.msra.mxu0 %v1321
    %1795 = vmatpush.msra.mxu0 %v1318
    %1796 = vmatpush.msra.mxu0 %v1315
    %1797 = vmatpush.msra.mxu0 %v1312
    %1798 = vmatpush.msra.mxu0 %v1309
    %1799 = vmatpush.msra.mxu0 %v1306
    %1800 = vmatpush.msra.mxu0 %v1303
    %1801 = vmatmul.f32.gmra.mxu0 %v1783
    %v1802 = vpop.f32.mrf.mxu0
    %v1803 = vadd.f32 0.0, %v1802
    %1804 = vdwg.mxu0
    %1805 = vmatpush.msra.mxu0 %v1349
    %1806 = vmatpush.msra.mxu0 %v1346
    %1807 = vmatpush.msra.mxu0 %v1343
    %1808 = vmatpush.msra.mxu0 %v1340
    %1809 = vmatpush.msra.mxu0 %v1337
    %1810 = vmatpush.msra.mxu0 %v1334
    %1811 = vmatpush.msra.mxu0 %v1331
    %1812 = vmatpush.msra.mxu0 %v1328
    %1813 = vmatpush.msra.mxu0 %v1325
    %1814 = vmatpush.msra.mxu0 %v1322
    %1815 = vmatpush.msra.mxu0 %v1319
    %1816 = vmatpush.msra.mxu0 %v1316
    %1817 = vmatpush.msra.mxu0 %v1313
    %1818 = vmatpush.msra.mxu0 %v1310
    %1819 = vmatpush.msra.mxu0 %v1307
    %1820 = vmatpush.msra.mxu0 %v1304
    %1821 = vmatmul.f32.gmra.mxu0 %v1783
    %v1822 = vpop.f32.mrf.mxu0
    %v1823 = vadd.f32 0.0, %v1822
    %1824 = vdwg.mxu0
    %1825 = vmatpush.msra.mxu0 %v1350
    %1826 = vmatpush.msra.mxu0 %v1347
    %1827 = vmatpush.msra.mxu0 %v1344
    %1828 = vmatpush.msra.mxu0 %v1341
    %1829 = vmatpush.msra.mxu0 %v1338
    %1830 = vmatpush.msra.mxu0 %v1335
    %1831 = vmatpush.msra.mxu0 %v1332
    %1832 = vmatpush.msra.mxu0 %v1329
    %1833 = vmatpush.msra.mxu0 %v1326
    %1834 = vmatpush.msra.mxu0 %v1323
    %1835 = vmatpush.msra.mxu0 %v1320
    %1836 = vmatpush.msra.mxu0 %v1317
    %1837 = vmatpush.msra.mxu0 %v1314
    %1838 = vmatpush.msra.mxu0 %v1311
    %1839 = vmatpush.msra.mxu0 %v1308
    %1840 = vmatpush.msra.mxu0 %v1305
    %1841 = vmatmul.f32.gmra.mxu0 %v1783
    %v1842 = vpop.f32.mrf.mxu0
    %v1843 = vadd.f32 0.0, %v1842
    %1844 = vdwg.mxu0
    %v1846 = vrot.slane %v1803, 2
    %v1848 = vadd.f32 %v1378, %v1846
    %v1849 = vxor.u32 %v1848, 2147483648
    %v1850 = vmul.f32 %v1849, 1.442695
    %v1851 = vpow.pop %v1850
    %v1852 = vadd.f32 %v1851, 1.0
    %v1853 = vrcp.pop %v1852
    %v1854 = vmul.f32 %v1852, %v1853
    %v1855 = vsub.f32 1.0, %v1854
    %v1856 = vmul.f32 %v1853, %v1855
    %v1857 = vadd.f32 %v1853, %v1856
    %vm1858 = vweird.f32 %v1852
    %vm1859 = vweird.f32 %v1853
    %vm1860 = vmor %vm1858, %vm1859
    %v1861 = vsel %vm1860, %v1853, %v1857
    %v1862 = vand.u32 2147483647, %v1852
    %vm1863 = vcmp.eq.f32.partialorder %v1862, 8.507059e+37
    %v1864 = vand.u32 %v1852, 2147483648
    %v1865 = vor.u32 1.1754944e-38, %v1864
    %v1866 = vsel %vm1863, %v1865, %v1861
    %v1867 = vmul.f32 1.0, %v1866
    %v1869 = vrot.slane %v1823, 2
    %v1871 = vadd.f32 %v1401, %v1869
    %v1872 = vxor.u32 %v1871, 2147483648
    %v1873 = vmul.f32 %v1872, 1.442695
    %v1874 = vpow.pop %v1873
    %v1875 = vadd.f32 %v1874, 1.0
    %v1876 = vrcp.pop %v1875
    %v1877 = vmul.f32 %v1875, %v1876
    %v1878 = vsub.f32 1.0, %v1877
    %v1879 = vmul.f32 %v1876, %v1878
    %v1880 = vadd.f32 %v1876, %v1879
    %vm1881 = vweird.f32 %v1875
    %vm1882 = vweird.f32 %v1876
    %vm1883 = vmor %vm1881, %vm1882
    %v1884 = vsel %vm1883, %v1876, %v1880
    %v1885 = vand.u32 2147483647, %v1875
    %vm1886 = vcmp.eq.f32.partialorder %v1885, 8.507059e+37
    %v1887 = vand.u32 %v1875, 2147483648
    %v1888 = vor.u32 1.1754944e-38, %v1887
    %v1889 = vsel %vm1886, %v1888, %v1884
    %v1890 = vmul.f32 1.0, %v1889
    %v1891 = vadd.f32 %v1843, %v1530
    %v1893 = vrot.slane %v1891, 2
    %v1895 = vmul.f32 %v1867, %v1893
    %v1896 = vadd.f32 %v1424, %v1895
    %v1897 = vtanh.pop %v1896
    %v1898 = vsub.f32 1.0, %v1890
    %v1899 = vmul.f32 %v1898, %v1897
    %v1900 = vrot.slane %v1781, 6
    %v1902 = vmul.f32 %v1890, %v1900
    %v1903 = vadd.f32 %v1899, %v1902
    %v1905 = vrot.slane %v1903, 6
    %1907 = vmatpush.msra.mxu0 %v1348
    %1908 = vmatpush.msra.mxu0 %v1345
    %1909 = vmatpush.msra.mxu0 %v1342
    %1910 = vmatpush.msra.mxu0 %v1339
    %1911 = vmatpush.msra.mxu0 %v1336
    %1912 = vmatpush.msra.mxu0 %v1333
    %1913 = vmatpush.msra.mxu0 %v1330
    %1914 = vmatpush.msra.mxu0 %v1327
    %1915 = vmatpush.msra.mxu0 %v1324
    %1916 = vmatpush.msra.mxu0 %v1321
    %1917 = vmatpush.msra.mxu0 %v1318
    %1918 = vmatpush.msra.mxu0 %v1315
    %1919 = vmatpush.msra.mxu0 %v1312
    %1920 = vmatpush.msra.mxu0 %v1309
    %1921 = vmatpush.msra.mxu0 %v1306
    %1922 = vmatpush.msra.mxu0 %v1303
    %1923 = vmatmul.f32.gmra.mxu0 %v1905
    %v1924 = vpop.f32.mrf.mxu0
    %v1925 = vadd.f32 0.0, %v1924
    %1926 = vdwg.mxu0
    %1927 = vmatpush.msra.mxu0 %v1349
    %1928 = vmatpush.msra.mxu0 %v1346
    %1929 = vmatpush.msra.mxu0 %v1343
    %1930 = vmatpush.msra.mxu0 %v1340
    %1931 = vmatpush.msra.mxu0 %v1337
    %1932 = vmatpush.msra.mxu0 %v1334
    %1933 = vmatpush.msra.mxu0 %v1331
    %1934 = vmatpush.msra.mxu0 %v1328
    %1935 = vmatpush.msra.mxu0 %v1325
    %1936 = vmatpush.msra.mxu0 %v1322
    %1937 = vmatpush.msra.mxu0 %v1319
    %1938 = vmatpush.msra.mxu0 %v1316
    %1939 = vmatpush.msra.mxu0 %v1313
    %1940 = vmatpush.msra.mxu0 %v1310
    %1941 = vmatpush.msra.mxu0 %v1307
    %1942 = vmatpush.msra.mxu0 %v1304
    %1943 = vmatmul.f32.gmra.mxu0 %v1905
    %v1944 = vpop.f32.mrf.mxu0
    %v1945 = vadd.f32 0.0, %v1944
    %1946 = vdwg.mxu0
    %1947 = vmatpush.msra.mxu0 %v1350
    %1948 = vmatpush.msra.mxu0 %v1347
    %1949 = vmatpush.msra.mxu0 %v1344
    %1950 = vmatpush.msra.mxu0 %v1341
    %1951 = vmatpush.msra.mxu0 %v1338
    %1952 = vmatpush.msra.mxu0 %v1335
    %1953 = vmatpush.msra.mxu0 %v1332
    %1954 = vmatpush.msra.mxu0 %v1329
    %1955 = vmatpush.msra.mxu0 %v1326
    %1956 = vmatpush.msra.mxu0 %v1323
    %1957 = vmatpush.msra.mxu0 %v1320
    %1958 = vmatpush.msra.mxu0 %v1317
    %1959 = vmatpush.msra.mxu0 %v1314
    %1960 = vmatpush.msra.mxu0 %v1311
    %1961 = vmatpush.msra.mxu0 %v1308
    %1962 = vmatpush.msra.mxu0 %v1305
    %1963 = vmatmul.f32.gmra.mxu0 %v1905
    %v1964 = vpop.f32.mrf.mxu0
    %v1965 = vadd.f32 0.0, %v1964
    %1966 = vdwg.mxu0
    %v1967 = vadd.f32 %v1381, %v1925
    %v1968 = vxor.u32 %v1967, 2147483648
    %v1969 = vmul.f32 %v1968, 1.442695
    %v1970 = vpow.pop %v1969
    %v1971 = vadd.f32 %v1970, 1.0
    %v1972 = vrcp.pop %v1971
    %v1973 = vmul.f32 %v1971, %v1972
    %v1974 = vsub.f32 1.0, %v1973
    %v1975 = vmul.f32 %v1972, %v1974
    %v1976 = vadd.f32 %v1972, %v1975
    %vm1977 = vweird.f32 %v1971
    %vm1978 = vweird.f32 %v1972
    %vm1979 = vmor %vm1977, %vm1978
    %v1980 = vsel %vm1979, %v1972, %v1976
    %v1981 = vand.u32 2147483647, %v1971
    %vm1982 = vcmp.eq.f32.partialorder %v1981, 8.507059e+37
    %v1983 = vand.u32 %v1971, 2147483648
    %v1984 = vor.u32 1.1754944e-38, %v1983
    %v1985 = vsel %vm1982, %v1984, %v1980
    %v1986 = vmul.f32 1.0, %v1985
    %v1987 = vadd.f32 %v1404, %v1945
    %v1988 = vxor.u32 %v1987, 2147483648
    %v1989 = vmul.f32 %v1988, 1.442695
    %v1990 = vpow.pop %v1989
    %v1991 = vadd.f32 %v1990, 1.0
    %v1992 = vrcp.pop %v1991
    %v1993 = vmul.f32 %v1991, %v1992
    %v1994 = vsub.f32 1.0, %v1993
    %v1995 = vmul.f32 %v1992, %v1994
    %v1996 = vadd.f32 %v1992, %v1995
    %vm1997 = vweird.f32 %v1991
    %vm1998 = vweird.f32 %v1992
    %vm1999 = vmor %vm1997, %vm1998
    %v2000 = vsel %vm1999, %v1992, %v1996
    %v2001 = vand.u32 2147483647, %v1991
    %vm2002 = vcmp.eq.f32.partialorder %v2001, 8.507059e+37
    %v2003 = vand.u32 %v1991, 2147483648
    %v2004 = vor.u32 1.1754944e-38, %v2003
    %v2005 = vsel %vm2002, %v2004, %v2000
    %v2006 = vmul.f32 1.0, %v2005
    %v2007 = vadd.f32 %v1965, %v1530
    %v2008 = vmul.f32 %v1986, %v2007
    %v2009 = vadd.f32 %v1427, %v2008
    %v2010 = vtanh.pop %v2009
    %v2011 = vsub.f32 1.0, %v2006
    %v2012 = vmul.f32 %v2011, %v2010
    %v2013 = vmul.f32 %v2006, %v1905
    %v2014 = vadd.f32 %v2012, %v2013
    %2015 = vmatpush.msra.mxu0 %v1348
    %2016 = vmatpush.msra.mxu0 %v1345
    %2017 = vmatpush.msra.mxu0 %v1342
    %2018 = vmatpush.msra.mxu0 %v1339
    %2019 = vmatpush.msra.mxu0 %v1336
    %2020 = vmatpush.msra.mxu0 %v1333
    %2021 = vmatpush.msra.mxu0 %v1330
    %2022 = vmatpush.msra.mxu0 %v1327
    %2023 = vmatpush.msra.mxu0 %v1324
    %2024 = vmatpush.msra.mxu0 %v1321
    %2025 = vmatpush.msra.mxu0 %v1318
    %2026 = vmatpush.msra.mxu0 %v1315
    %2027 = vmatpush.msra.mxu0 %v1312
    %2028 = vmatpush.msra.mxu0 %v1309
    %2029 = vmatpush.msra.mxu0 %v1306
    %2030 = vmatpush.msra.mxu0 %v1303
    %2031 = vmatmul.f32.gmra.mxu0 %v2014
    %v2032 = vpop.f32.mrf.mxu0
    %v2033 = vadd.f32 0.0, %v2032
    %2034 = vdwg.mxu0
    %2035 = vmatpush.msra.mxu0 %v1349
    %2036 = vmatpush.msra.mxu0 %v1346
    %2037 = vmatpush.msra.mxu0 %v1343
    %2038 = vmatpush.msra.mxu0 %v1340
    %2039 = vmatpush.msra.mxu0 %v1337
    %2040 = vmatpush.msra.mxu0 %v1334
    %2041 = vmatpush.msra.mxu0 %v1331
    %2042 = vmatpush.msra.mxu0 %v1328
    %2043 = vmatpush.msra.mxu0 %v1325
    %2044 = vmatpush.msra.mxu0 %v1322
    %2045 = vmatpush.msra.mxu0 %v1319
    %2046 = vmatpush.msra.mxu0 %v1316
    %2047 = vmatpush.msra.mxu0 %v1313
    %2048 = vmatpush.msra.mxu0 %v1310
    %2049 = vmatpush.msra.mxu0 %v1307
    %2050 = vmatpush.msra.mxu0 %v1304
    %2051 = vmatmul.f32.gmra.mxu0 %v2014
    %v2052 = vpop.f32.mrf.mxu0
    %v2053 = vadd.f32 0.0, %v2052
    %2054 = vdwg.mxu0
    %2055 = vmatpush.msra.mxu0 %v1350
    %2056 = vmatpush.msra.mxu0 %v1347
    %2057 = vmatpush.msra.mxu0 %v1344
    %2058 = vmatpush.msra.mxu0 %v1341
    %2059 = vmatpush.msra.mxu0 %v1338
    %2060 = vmatpush.msra.mxu0 %v1335
    %2061 = vmatpush.msra.mxu0 %v1332
    %2062 = vmatpush.msra.mxu0 %v1329
    %2063 = vmatpush.msra.mxu0 %v1326
    %2064 = vmatpush.msra.mxu0 %v1323
    %2065 = vmatpush.msra.mxu0 %v1320
    %2066 = vmatpush.msra.mxu0 %v1317
    %2067 = vmatpush.msra.mxu0 %v1314
    %2068 = vmatpush.msra.mxu0 %v1311
    %2069 = vmatpush.msra.mxu0 %v1308
    %2070 = vmatpush.msra.mxu0 %v1305
    %2071 = vmatmul.f32.gmra.mxu0 %v2014
    %v2072 = vpop.f32.mrf.mxu0
    %v2073 = vadd.f32 0.0, %v2072
    %2074 = vdwg.mxu0
    %v2076 = vrot.slane %v2033, 6
    %v2078 = vadd.f32 %v1381, %v2076
    %v2079 = vxor.u32 %v2078, 2147483648
    %v2080 = vmul.f32 %v2079, 1.442695
    %v2081 = vpow.pop %v2080
    %v2082 = vadd.f32 %v2081, 1.0
    %v2083 = vrcp.pop %v2082
    %v2084 = vmul.f32 %v2082, %v2083
    %v2085 = vsub.f32 1.0, %v2084
    %v2086 = vmul.f32 %v2083, %v2085
    %v2087 = vadd.f32 %v2083, %v2086
    %vm2088 = vweird.f32 %v2082
    %vm2089 = vweird.f32 %v2083
    %vm2090 = vmor %vm2088, %vm2089
    %v2091 = vsel %vm2090, %v2083, %v2087
    %v2092 = vand.u32 2147483647, %v2082
    %vm2093 = vcmp.eq.f32.partialorder %v2092, 8.507059e+37
    %v2094 = vand.u32 %v2082, 2147483648
    %v2095 = vor.u32 1.1754944e-38, %v2094
    %v2096 = vsel %vm2093, %v2095, %v2091
    %v2097 = vmul.f32 1.0, %v2096
    %v2099 = vrot.slane %v2053, 6
    %v2101 = vadd.f32 %v1404, %v2099
    %v2102 = vxor.u32 %v2101, 2147483648
    %v2103 = vmul.f32 %v2102, 1.442695
    %v2104 = vpow.pop %v2103
    %v2105 = vadd.f32 %v2104, 1.0
    %v2106 = vrcp.pop %v2105
    %v2107 = vmul.f32 %v2105, %v2106
    %v2108 = vsub.f32 1.0, %v2107
    %v2109 = vmul.f32 %v2106, %v2108
    %v2110 = vadd.f32 %v2106, %v2109
    %vm2111 = vweird.f32 %v2105
    %vm2112 = vweird.f32 %v2106
    %vm2113 = vmor %vm2111, %vm2112
    %v2114 = vsel %vm2113, %v2106, %v2110
    %v2115 = vand.u32 2147483647, %v2105
    %vm2116 = vcmp.eq.f32.partialorder %v2115, 8.507059e+37
    %v2117 = vand.u32 %v2105, 2147483648
    %v2118 = vor.u32 1.1754944e-38, %v2117
    %v2119 = vsel %vm2116, %v2118, %v2114
    %v2120 = vmul.f32 1.0, %v2119
    %v2121 = vadd.f32 %v2073, %v1530
    %v2123 = vrot.slane %v2121, 6
    %v2125 = vmul.f32 %v2097, %v2123
    %v2126 = vadd.f32 %v1427, %v2125
    %v2127 = vtanh.pop %v2126
    %v2128 = vsub.f32 1.0, %v2120
    %v2129 = vmul.f32 %v2128, %v2127
    %v2131 = vrot.slane %v2014, 6
    %v2133 = vmul.f32 %v2120, %v2131
    %v2134 = vadd.f32 %v2129, %v2133
    %v2136 = vrot.slane %v2134, 2
    %2138 = vmatpush.msra.mxu0 %v1348
    %2139 = vmatpush.msra.mxu0 %v1345
    %2140 = vmatpush.msra.mxu0 %v1342
    %2141 = vmatpush.msra.mxu0 %v1339
    %2142 = vmatpush.msra.mxu0 %v1336
    %2143 = vmatpush.msra.mxu0 %v1333
    %2144 = vmatpush.msra.mxu0 %v1330
    %2145 = vmatpush.msra.mxu0 %v1327
    %2146 = vmatpush.msra.mxu0 %v1324
    %2147 = vmatpush.msra.mxu0 %v1321
    %2148 = vmatpush.msra.mxu0 %v1318
    %2149 = vmatpush.msra.mxu0 %v1315
    %2150 = vmatpush.msra.mxu0 %v1312
    %2151 = vmatpush.msra.mxu0 %v1309
    %2152 = vmatpush.msra.mxu0 %v1306
    %2153 = vmatpush.msra.mxu0 %v1303
    %2154 = vmatmul.f32.gmra.mxu0 %v2136
    %v2155 = vpop.f32.mrf.mxu0
    %v2156 = vadd.f32 0.0, %v2155
    %2157 = vdwg.mxu0
    %2158 = vmatpush.msra.mxu0 %v1349
    %2159 = vmatpush.msra.mxu0 %v1346
    %2160 = vmatpush.msra.mxu0 %v1343
    %2161 = vmatpush.msra.mxu0 %v1340
    %2162 = vmatpush.msra.mxu0 %v1337
    %2163 = vmatpush.msra.mxu0 %v1334
    %2164 = vmatpush.msra.mxu0 %v1331
    %2165 = vmatpush.msra.mxu0 %v1328
    %2166 = vmatpush.msra.mxu0 %v1325
    %2167 = vmatpush.msra.mxu0 %v1322
    %2168 = vmatpush.msra.mxu0 %v1319
    %2169 = vmatpush.msra.mxu0 %v1316
    %2170 = vmatpush.msra.mxu0 %v1313
    %2171 = vmatpush.msra.mxu0 %v1310
    %2172 = vmatpush.msra.mxu0 %v1307
    %2173 = vmatpush.msra.mxu0 %v1304
    %2174 = vmatmul.f32.gmra.mxu0 %v2136
    %v2175 = vpop.f32.mrf.mxu0
    %v2176 = vadd.f32 0.0, %v2175
    %2177 = vdwg.mxu0
    %2178 = vmatpush.msra.mxu0 %v1350
    %2179 = vmatpush.msra.mxu0 %v1347
    %2180 = vmatpush.msra.mxu0 %v1344
    %2181 = vmatpush.msra.mxu0 %v1341
    %2182 = vmatpush.msra.mxu0 %v1338
    %2183 = vmatpush.msra.mxu0 %v1335
    %2184 = vmatpush.msra.mxu0 %v1332
    %2185 = vmatpush.msra.mxu0 %v1329
    %2186 = vmatpush.msra.mxu0 %v1326
    %2187 = vmatpush.msra.mxu0 %v1323
    %2188 = vmatpush.msra.mxu0 %v1320
    %2189 = vmatpush.msra.mxu0 %v1317
    %2190 = vmatpush.msra.mxu0 %v1314
    %2191 = vmatpush.msra.mxu0 %v1311
    %2192 = vmatpush.msra.mxu0 %v1308
    %2193 = vmatpush.msra.mxu0 %v1305
    %2194 = vmatmul.f32.gmra.mxu0 %v2136
    %v2195 = vpop.f32.mrf.mxu0
    %v2196 = vadd.f32 0.0, %v2195
    %2197 = vdwg.mxu0
    %v2199 = vrot.slane %v2156, 4
    %v2201 = vadd.f32 %v1381, %v2199
    %v2202 = vxor.u32 %v2201, 2147483648
    %v2203 = vmul.f32 %v2202, 1.442695
    %v2204 = vpow.pop %v2203
    %v2205 = vadd.f32 %v2204, 1.0
    %v2206 = vrcp.pop %v2205
    %v2207 = vmul.f32 %v2205, %v2206
    %v2208 = vsub.f32 1.0, %v2207
    %v2209 = vmul.f32 %v2206, %v2208
    %v2210 = vadd.f32 %v2206, %v2209
    %vm2211 = vweird.f32 %v2205
    %vm2212 = vweird.f32 %v2206
    %vm2213 = vmor %vm2211, %vm2212
    %v2214 = vsel %vm2213, %v2206, %v2210
    %v2215 = vand.u32 2147483647, %v2205
    %vm2216 = vcmp.eq.f32.partialorder %v2215, 8.507059e+37
    %v2217 = vand.u32 %v2205, 2147483648
    %v2218 = vor.u32 1.1754944e-38, %v2217
    %v2219 = vsel %vm2216, %v2218, %v2214
    %v2220 = vmul.f32 1.0, %v2219
    %v2222 = vrot.slane %v2176, 4
    %v2224 = vadd.f32 %v1404, %v2222
    %v2225 = vxor.u32 %v2224, 2147483648
    %v2226 = vmul.f32 %v2225, 1.442695
    %v2227 = vpow.pop %v2226
    %v2228 = vadd.f32 %v2227, 1.0
    %v2229 = vrcp.pop %v2228
    %v2230 = vmul.f32 %v2228, %v2229
    %v2231 = vsub.f32 1.0, %v2230
    %v2232 = vmul.f32 %v2229, %v2231
    %v2233 = vadd.f32 %v2229, %v2232
    %vm2234 = vweird.f32 %v2228
    %vm2235 = vweird.f32 %v2229
    %vm2236 = vmor %vm2234, %vm2235
    %v2237 = vsel %vm2236, %v2229, %v2233
    %v2238 = vand.u32 2147483647, %v2228
    %vm2239 = vcmp.eq.f32.partialorder %v2238, 8.507059e+37
    %v2240 = vand.u32 %v2228, 2147483648
    %v2241 = vor.u32 1.1754944e-38, %v2240
    %v2242 = vsel %vm2239, %v2241, %v2237
    %v2243 = vmul.f32 1.0, %v2242
    %v2244 = vadd.f32 %v2196, %v1530
    %v2246 = vrot.slane %v2244, 4
    %v2248 = vmul.f32 %v2220, %v2246
    %v2249 = vadd.f32 %v1427, %v2248
    %v2250 = vtanh.pop %v2249
    %v2251 = vsub.f32 1.0, %v2243
    %v2252 = vmul.f32 %v2251, %v2250
    %v2253 = vrot.slane %v2134, 6
    %v2255 = vmul.f32 %v2243, %v2253
    %v2256 = vadd.f32 %v2252, %v2255
    %v2258 = vrot.slane %v2256, 4
    %2260 = vmatpush.msra.mxu0 %v1348
    %2261 = vmatpush.msra.mxu0 %v1345
    %2262 = vmatpush.msra.mxu0 %v1342
    %2263 = vmatpush.msra.mxu0 %v1339
    %2264 = vmatpush.msra.mxu0 %v1336
    %2265 = vmatpush.msra.mxu0 %v1333
    %2266 = vmatpush.msra.mxu0 %v1330
    %2267 = vmatpush.msra.mxu0 %v1327
    %2268 = vmatpush.msra.mxu0 %v1324
    %2269 = vmatpush.msra.mxu0 %v1321
    %2270 = vmatpush.msra.mxu0 %v1318
    %2271 = vmatpush.msra.mxu0 %v1315
    %2272 = vmatpush.msra.mxu0 %v1312
    %2273 = vmatpush.msra.mxu0 %v1309
    %2274 = vmatpush.msra.mxu0 %v1306
    %2275 = vmatpush.msra.mxu0 %v1303
    %2276 = vmatmul.f32.gmra.mxu0 %v2258
    %v2277 = vpop.f32.mrf.mxu0
    %v2278 = vadd.f32 0.0, %v2277
    %2279 = vdwg.mxu0
    %2280 = vmatpush.msra.mxu0 %v1349
    %2281 = vmatpush.msra.mxu0 %v1346
    %2282 = vmatpush.msra.mxu0 %v1343
    %2283 = vmatpush.msra.mxu0 %v1340
    %2284 = vmatpush.msra.mxu0 %v1337
    %2285 = vmatpush.msra.mxu0 %v1334
    %2286 = vmatpush.msra.mxu0 %v1331
    %2287 = vmatpush.msra.mxu0 %v1328
    %2288 = vmatpush.msra.mxu0 %v1325
    %2289 = vmatpush.msra.mxu0 %v1322
    %2290 = vmatpush.msra.mxu0 %v1319
    %2291 = vmatpush.msra.mxu0 %v1316
    %2292 = vmatpush.msra.mxu0 %v1313
    %2293 = vmatpush.msra.mxu0 %v1310
    %2294 = vmatpush.msra.mxu0 %v1307
    %2295 = vmatpush.msra.mxu0 %v1304
    %2296 = vmatmul.f32.gmra.mxu0 %v2258
    %v2297 = vpop.f32.mrf.mxu0
    %v2298 = vadd.f32 0.0, %v2297
    %2299 = vdwg.mxu0
    %2300 = vmatpush.msra.mxu0 %v1350
    %2301 = vmatpush.msra.mxu0 %v1347
    %2302 = vmatpush.msra.mxu0 %v1344
    %2303 = vmatpush.msra.mxu0 %v1341
    %2304 = vmatpush.msra.mxu0 %v1338
    %2305 = vmatpush.msra.mxu0 %v1335
    %2306 = vmatpush.msra.mxu0 %v1332
    %2307 = vmatpush.msra.mxu0 %v1329
    %2308 = vmatpush.msra.mxu0 %v1326
    %2309 = vmatpush.msra.mxu0 %v1323
    %2310 = vmatpush.msra.mxu0 %v1320
    %2311 = vmatpush.msra.mxu0 %v1317
    %2312 = vmatpush.msra.mxu0 %v1314
    %2313 = vmatpush.msra.mxu0 %v1311
    %2314 = vmatpush.msra.mxu0 %v1308
    %2315 = vmatpush.msra.mxu0 %v1305
    %2316 = vmatmul.f32.gmra.mxu0 %v2258
    %v2317 = vpop.f32.mrf.mxu0
    %v2318 = vadd.f32 0.0, %v2317
    %2319 = vdwg.mxu0
    %v2321 = vrot.slane %v2278, 2
    %v2323 = vadd.f32 %v1381, %v2321
    %v2324 = vxor.u32 %v2323, 2147483648
    %v2325 = vmul.f32 %v2324, 1.442695
    %v2326 = vpow.pop %v2325
    %v2327 = vadd.f32 %v2326, 1.0
    %v2328 = vrcp.pop %v2327
    %v2329 = vmul.f32 %v2327, %v2328
    %v2330 = vsub.f32 1.0, %v2329
    %v2331 = vmul.f32 %v2328, %v2330
    %v2332 = vadd.f32 %v2328, %v2331
    %vm2333 = vweird.f32 %v2327
    %vm2334 = vweird.f32 %v2328
    %vm2335 = vmor %vm2333, %vm2334
    %v2336 = vsel %vm2335, %v2328, %v2332
    %v2337 = vand.u32 2147483647, %v2327
    %vm2338 = vcmp.eq.f32.partialorder %v2337, 8.507059e+37
    %v2339 = vand.u32 %v2327, 2147483648
    %v2340 = vor.u32 1.1754944e-38, %v2339
    %v2341 = vsel %vm2338, %v2340, %v2336
    %v2342 = vmul.f32 1.0, %v2341
    %v2344 = vrot.slane %v2298, 2
    %v2346 = vadd.f32 %v1404, %v2344
    %v2347 = vxor.u32 %v2346, 2147483648
    %v2348 = vmul.f32 %v2347, 1.442695
    %v2349 = vpow.pop %v2348
    %v2350 = vadd.f32 %v2349, 1.0
    %v2351 = vrcp.pop %v2350
    %v2352 = vmul.f32 %v2350, %v2351
    %v2353 = vsub.f32 1.0, %v2352
    %v2354 = vmul.f32 %v2351, %v2353
    %v2355 = vadd.f32 %v2351, %v2354
    %vm2356 = vweird.f32 %v2350
    %vm2357 = vweird.f32 %v2351
    %vm2358 = vmor %vm2356, %vm2357
    %v2359 = vsel %vm2358, %v2351, %v2355
    %v2360 = vand.u32 2147483647, %v2350
    %vm2361 = vcmp.eq.f32.partialorder %v2360, 8.507059e+37
    %v2362 = vand.u32 %v2350, 2147483648
    %v2363 = vor.u32 1.1754944e-38, %v2362
    %v2364 = vsel %vm2361, %v2363, %v2359
    %v2365 = vmul.f32 1.0, %v2364
    %v2366 = vadd.f32 %v2318, %v1530
    %v2368 = vrot.slane %v2366, 2
    %v2370 = vmul.f32 %v2342, %v2368
    %v2371 = vadd.f32 %v1427, %v2370
    %v2372 = vtanh.pop %v2371
    %v2373 = vsub.f32 1.0, %v2365
    %v2374 = vmul.f32 %v2373, %v2372
    %v2375 = vrot.slane %v2256, 6
    %v2377 = vmul.f32 %v2365, %v2375
    %v2378 = vadd.f32 %v2374, %v2377
    %v2379 = vld [vmem:[%s11] sm:$0xff]
    %v2380 = vld [vmem:[%s11 + $0x8] sm:$0xff]
    %v2381 = vld [vmem:[%s11 + $0x10] sm:$0xff]
    %v2382 = vld [vmem:[%s11 + $0x18] sm:$0xff]
    %v2383 = vld [vmem:[%s11 + $0x20] sm:$0xff]
    %v2384 = vld [vmem:[%s11 + $0x28] sm:$0xff]
    %v2385 = vld [vmem:[%s11 + $0x30] sm:$0xff]
    %v2386 = vld [vmem:[%s11 + $0x38] sm:$0xff]
    %v2387 = vld [vmem:[%s11 + $0x40] sm:$0xff]
    %v2388 = vld [vmem:[%s11 + $0x48] sm:$0xff]
    %v2389 = vld [vmem:[%s11 + $0x50] sm:$0xff]
    %v2390 = vld [vmem:[%s11 + $0x58] sm:$0xff]
    %v2391 = vld [vmem:[%s11 + $0x60] sm:$0xff]
    %v2392 = vld [vmem:[%s11 + $0x68] sm:$0xff]
    %v2393 = vld [vmem:[%s11 + $0x70] sm:$0xff]
    %v2394 = vld [vmem:[%s11 + $0x78] sm:$0xff]
    %v2395 = vld [vmem:[%s12] sm:$0x1]
    %v2397 = vperm.slane %v2395, 0
    %v2400 = vrot.slane %v2378, 6
    %2402 = vmatpush.msra.mxu0 %v2394
    %2403 = vmatpush.msra.mxu0 %v2393
    %2404 = vmatpush.msra.mxu0 %v2392
    %2405 = vmatpush.msra.mxu0 %v2391
    %2406 = vmatpush.msra.mxu0 %v2390
    %2407 = vmatpush.msra.mxu0 %v2389
    %2408 = vmatpush.msra.mxu0 %v2388
    %2409 = vmatpush.msra.mxu0 %v2387
    %2410 = vmatpush.msra.mxu0 %v2386
    %2411 = vmatpush.msra.mxu0 %v2385
    %2412 = vmatpush.msra.mxu0 %v2384
    %2413 = vmatpush.msra.mxu0 %v2383
    %2414 = vmatpush.msra.mxu0 %v2382
    %2415 = vmatpush.msra.mxu0 %v2381
    %2416 = vmatpush.msra.mxu0 %v2380
    %2417 = vmatpush.msra.mxu0 %v2379
    %2418 = vmatmul.f32.gmra.mxu0 %v2400
    %v2419 = vpop.f32.mrf.mxu0
    %v2420 = vadd.f32 %v2397, %v2419
    %2421 = vdwg.mxu0
    %vm2422 = vcmask 74752
    %2423 = vst.msk [vmem:[#allocation8] sm:$0x3] %vm2422, %v2420
    // Predicated region
    $region66: #{tpu_custom_call.1} parent=1 // pred_check
      _
    $region67: #{tpu_custom_call.1} parent=1 // pred_check_branch
      %2425 = sbr.rel (0) target = $region69
    $region68: #{tpu_custom_call.1} parent=1 // pred_region
      %2427 = vsyncadd [#allocation4], 0
      %s2429 = sshll.u32 [#allocation8], 4
      %s2430 = int_to_ptr.vmem [resolvable:$true] %s2429
      %s2431 = sshll.u32 %s13, 4
      %s2432 = int_to_ptr.hbm [resolvable:$true] %s2431
      %2434 = dma.vmem_to_hbm [thread:$0]  %s2430, 32, %s2432, [#allocation4]
    $region69: #{tpu_custom_call.1} parent=1 // pred_fallthru
      _
    // Predicated region
    $region70: #{tpu_custom_call.1} parent=1 // pred_check
      _
    $region71: #{tpu_custom_call.1} parent=1 // pred_check_branch
      %2436 = sbr.rel (0) target = $region73
    $region72: #{tpu_custom_call.1} parent=1 // pred_region
      %2438 = dma.done [#allocation4], 32
    $region73: #{tpu_custom_call.1} parent=1 // pred_fallthru
      _
    %2439 = vsyncpa [#allocation3], 1
    %2440 = vsyncpa [#allocation6], 1
    %2441 = vsyncpa [#allocation4], 1

</llo_original>
